<compile_context>
chip_gen: v6e
topology: v6e:2x2x1
jax: 0.10.0
libtpu: 0.0.40
codegen_flags: <defaults>
</compile_context>

<pallas_src>
import numpy as np
import jax
import jax.numpy as jnp
from jax import lax
from jax.experimental import pallas as pl
from jax.experimental.pallas import tpu as pltpu

_INV_SQRT2 = 0.7071067811865476


# ----------------------------------------------------------------------------
# Pallas kernel
# ----------------------------------------------------------------------------
def _geglu_kernel(x_ref, w0_ref, w1_ref, o_ref, acc0_ref, acc1_ref):
    """Fused GeGLU tile: o = GELU(x @ w0) * (x @ w1), f32 accumulation."""
    k = pl.program_id(2)

    @pl.when(k == 0)
    def _():
        acc0_ref[...] = jnp.zeros_like(acc0_ref)
        acc1_ref[...] = jnp.zeros_like(acc1_ref)

    x = x_ref[...]  # load once, feed both MXU pushes
    acc0_ref[...] += jnp.dot(x, w0_ref[...], preferred_element_type=jnp.float32)
    acc1_ref[...] += jnp.dot(x, w1_ref[...], preferred_element_type=jnp.float32)

    @pl.when(k == pl.num_programs(2) - 1)
    def _():
        g = acc0_ref[...]
        # exact GELU (matches torch.nn.GELU default); erf runs on the EUP.
        gelu = 0.5 * g * (1.0 + lax.erf(g * _INV_SQRT2))
        o_ref[...] = (gelu * acc1_ref[...]).astype(o_ref.dtype)


# ----------------------------------------------------------------------------
# Tiling helpers
# ----------------------------------------------------------------------------
def _sublane_unit(dtype):
    return {4: 8, 2: 16, 1: 32}.get(jnp.dtype(dtype).itemsize, 8)


def _pick_tile(dim, cap, unit=128):
    """Largest multiple of `unit` <= cap that divides dim; else the full dim."""
    t = (min(cap, dim) // unit) * unit
    while t >= unit:
        if dim % t == 0:
            return t
        t -= unit
    return dim  # dim < unit or no aligned divisor: use the full dimension.


def _pick_row_tile(M, cap, unit):
    """Multiple of `unit` (<= cap) minimizing padded rows; prefer larger tm."""
    m_up = -(-M // unit) * unit
    cap = max(unit, min(cap, m_up))
    best_t, best_pad = unit, None
    for t in range(unit, cap + 1, unit):
        mp = -(-M // t) * t
        if best_pad is None or mp < best_pad or (mp == best_pad and t > best_t):
            best_pad, best_t = mp, t
    return best_t


# ----------------------------------------------------------------------------
# Wrapper
# ----------------------------------------------------------------------------
def geglu(x, w0, w1, *, tm=512, tf=512, tk=512):
    """GeGLU forward.

    x : (..., E)    activations
    w0: (F, E)      wi_0.weight (PyTorch nn.Linear layout, no bias)
    w1: (F, E)      wi_1.weight
    returns (..., F)
    """
    *lead, E = x.shape
    F_dim, E_w = w0.shape
    assert E_w == E and w1.shape == (F_dim, E), (x.shape, w0.shape, w1.shape)

    x2d = x.reshape(-1, E)
    M = x2d.shape[0]

    # Row tile: minimize padding, keep sublane alignment for the input dtype.
    tm = _pick_row_tile(M, tm, _sublane_unit(x.dtype))
    Mp = -(-M // tm) * tm
    if Mp != M:
        x2d = jnp.pad(x2d, ((0, Mp - M), (0, 0)))

    tk = _pick_tile(E, tk)
    tf = _pick_tile(F_dim, tf)

    # Present weights as (E, F): kernel computes x @ w directly -> lane-dense
    # output slab (unmasked stores).  In a full model this transpose is a
    # one-time / fused layout change on the constant weights.
    w0t = jnp.transpose(w0)
    w1t = jnp.transpose(w1)

    grid = (Mp // tm, F_dim // tf, E // tk)

    out = pl.pallas_call(
        _geglu_kernel,
        out_shape=jax.ShapeDtypeStruct((Mp, F_dim), x.dtype),
        grid_spec=pltpu.PrefetchScalarGridSpec(
            num_scalar_prefetch=0,
            grid=grid,
            in_specs=[
                pl.BlockSpec((tm, tk), lambda i, j, k: (i, k)),
                pl.BlockSpec((tk, tf), lambda i, j, k: (k, j)),
                pl.BlockSpec((tk, tf), lambda i, j, k: (k, j)),
            ],
            out_specs=pl.BlockSpec((tm, tf), lambda i, j, k: (i, j)),
            scratch_shapes=[
                pltpu.VMEM((tm, tf), jnp.float32),
                pltpu.VMEM((tm, tf), jnp.float32),
            ],
        ),
        compiler_params=pltpu.CompilerParams(
            dimension_semantics=("parallel", "parallel", "arbitrary"),
        ),
    )(x2d, w0t, w1t)

    if Mp != M:
        out = out[:M]
    return out.reshape(*lead, F_dim)


# ----------------------------------------------------------------------------
# Pure-JAX reference (for correctness check)
# ----------------------------------------------------------------------------
def reference_geglu(x, w0, w1):
    g = jnp.einsum("...e,fe->...f", x, w0, precision=lax.Precision.HIGHEST)
    l = jnp.einsum("...e,fe->...f", x, w1, precision=lax.Precision.HIGHEST)
    gelu = 0.5 * g * (1.0 + lax.erf(g * _INV_SQRT2))
    return gelu * l


# ----------------------------------------------------------------------------
# Main
# ----------------------------------------------------------------------------
if __name__ == "__main__":
    # Small config: batch=2, seq=320 (M=640 -> tm=320, zero padded rows),
    # embed_dim=256, ffn_dim=512 (lane-dense output, multiple of 128).
    B, N, E, F_dim = 2, 320, 256, 512

    key = jax.random.PRNGKey(0)
    kx, k0, k1 = jax.random.split(key, 3)
    f32 = jnp.float32
    x = jax.random.normal(kx, (B, N, E), f32)
    w0 = 0.05 * jax.random.normal(k0, (F_dim, E), f32)
    w1 = 0.05 * jax.random.normal(k1, (F_dim, E), f32)

    ref = reference_geglu(x, w0, w1)

    # 1) Default large tiles (padding-minimizing row tile, few grid steps).
    out = geglu(x, w0, w1)
    jax.block_until_ready(out)
    assert out.shape == (B, N, F_dim)
    np.testing.assert_allclose(np.asarray(out), np.asarray(ref),
                               atol=1e-2, rtol=1e-2)

    # 2) Small tiles to exercise the full (i, j, k) grid + K-reduction accumulator.
    out_small = geglu(x, w0, w1, tm=128, tf=128, tk=128)
    jax.block_until_ready(out_small)
    np.testing.assert_allclose(np.asarray(out_small), np.asarray(ref),
                               atol=1e-2, rtol=1e-2)

    # 3) Ragged M path (forces row padding) to exercise the masked-edge case.
    x_odd = x[:, : N - 7]
    out_odd = geglu(x_odd, w0, w1)
    jax.block_until_ready(out_odd)
    np.testing.assert_allclose(np.asarray(out_odd),
                               np.asarray(reference_geglu(x_odd, w0, w1)),
                               atol=1e-2, rtol=1e-2)

    print("KERNEL_OK")
</pallas_src>

<mosaic_0001>
module attributes {stable_mosaic.version = 11 : i64} {
  func.func @_geglu_kernel(%arg0: i32, %arg1: i32, %arg2: i32, %arg3: memref<320x256xf32, #tpu.memory_space<vmem>>, %arg4: memref<256x512xf32, #tpu.memory_space<vmem>>, %arg5: memref<256x512xf32, #tpu.memory_space<vmem>>, %arg6: memref<320x512xf32, #tpu.memory_space<vmem>>, %arg7: memref<320x512xf32, #tpu.memory_space<vmem>>, %arg8: memref<320x512xf32, #tpu.memory_space<vmem>>) attributes {dimension_semantics = [#tpu.dimension_semantics<parallel>, #tpu.dimension_semantics<parallel>, #tpu.dimension_semantics<arbitrary>], iteration_bounds = array<i64: 2, 1, 1>, scalar_prefetch = 0 : i64, scratch_operands = 2 : i64, tpu.core_type = #tpu.core_type<tc>, window_params = [{transform_indices = @transform_0, window_bounds = array<i64: 320, 256>}, {transform_indices = @transform_1, window_bounds = array<i64: 256, 512>}, {transform_indices = @transform_2, window_bounds = array<i64: 256, 512>}, {transform_indices = @transform_3, window_bounds = array<i64: 320, 512>}]} {
    %c0_i32 = arith.constant 0 : i32
    %0 = arith.cmpi eq, %arg2, %c0_i32 : i32
    %1 = arith.extui %0 : i1 to i32
    %c0_i32_0 = arith.constant 0 : i32
    %2 = arith.cmpi ne, %1, %c0_i32_0 : i32
    scf.if %2 {
      %cst_17 = arith.constant 0.000000e+00 : f32
      %17 = vector.broadcast %cst_17 : f32 to vector<320x512xf32>
      %c0_18 = arith.constant 0 : index
      %c0_19 = arith.constant 0 : index
      %18 = vector.load %arg7[%c0_18, %c0_19] : memref<320x512xf32, #tpu.memory_space<vmem>>, vector<320x512xf32>
      tpu.vector_store %arg7[%c0_18, %c0_19], %17 {strides = array<i32>} : memref<320x512xf32, #tpu.memory_space<vmem>>, vector<320x512xf32>,
      %cst_20 = arith.constant 0.000000e+00 : f32
      %19 = vector.broadcast %cst_20 : f32 to vector<320x512xf32>
      %c0_21 = arith.constant 0 : index
      %c0_22 = arith.constant 0 : index
      %20 = vector.load %arg8[%c0_21, %c0_22] : memref<320x512xf32, #tpu.memory_space<vmem>>, vector<320x512xf32>
      tpu.vector_store %arg8[%c0_21, %c0_22], %19 {strides = array<i32>} : memref<320x512xf32, #tpu.memory_space<vmem>>, vector<320x512xf32>,
    } else {
    }
    %c0 = arith.constant 0 : index
    %c0_1 = arith.constant 0 : index
    %3 = vector.load %arg3[%c0, %c0_1] : memref<320x256xf32, #tpu.memory_space<vmem>>, vector<320x256xf32>
    %c0_2 = arith.constant 0 : index
    %c0_3 = arith.constant 0 : index
    %4 = vector.load %arg7[%c0_2, %c0_3] : memref<320x512xf32, #tpu.memory_space<vmem>>, vector<320x512xf32>
    %c0_4 = arith.constant 0 : index
    %c0_5 = arith.constant 0 : index
    %5 = vector.load %arg4[%c0_4, %c0_5] : memref<256x512xf32, #tpu.memory_space<vmem>>, vector<256x512xf32>
    %cst = arith.constant dense<0.000000e+00> : vector<320x512xf32>
    %6 = tpu.matmul %3, %5, %cst {dimension_numbers = #tpu.dot_dimension_numbers<[1], [0], [0], [1], [0, 0, 1, 1], [], []>} : vector<320x256xf32>, vector<256x512xf32>, vector<320x512xf32> -> vector<320x512xf32>
    %7 = arith.addf %4, %6 : vector<320x512xf32>
    %c0_6 = arith.constant 0 : index
    %c0_7 = arith.constant 0 : index
    %8 = vector.load %arg7[%c0_6, %c0_7] : memref<320x512xf32, #tpu.memory_space<vmem>>, vector<320x512xf32>
    tpu.vector_store %arg7[%c0_6, %c0_7], %7 {strides = array<i32>} : memref<320x512xf32, #tpu.memory_space<vmem>>, vector<320x512xf32>,
    %c0_8 = arith.constant 0 : index
    %c0_9 = arith.constant 0 : index
    %9 = vector.load %arg8[%c0_8, %c0_9] : memref<320x512xf32, #tpu.memory_space<vmem>>, vector<320x512xf32>
    %c0_10 = arith.constant 0 : index
    %c0_11 = arith.constant 0 : index
    %10 = vector.load %arg5[%c0_10, %c0_11] : memref<256x512xf32, #tpu.memory_space<vmem>>, vector<256x512xf32>
    %cst_12 = arith.constant dense<0.000000e+00> : vector<320x512xf32>
    %11 = tpu.matmul %3, %10, %cst_12 {dimension_numbers = #tpu.dot_dimension_numbers<[1], [0], [0], [1], [0, 0, 1, 1], [], []>} : vector<320x256xf32>, vector<256x512xf32>, vector<320x512xf32> -> vector<320x512xf32>
    %12 = arith.addf %9, %11 : vector<320x512xf32>
    %c0_13 = arith.constant 0 : index
    %c0_14 = arith.constant 0 : index
    %13 = vector.load %arg8[%c0_13, %c0_14] : memref<320x512xf32, #tpu.memory_space<vmem>>, vector<320x512xf32>
    tpu.vector_store %arg8[%c0_13, %c0_14], %12 {strides = array<i32>} : memref<320x512xf32, #tpu.memory_space<vmem>>, vector<320x512xf32>,
    %c0_i32_15 = arith.constant 0 : i32
    %14 = arith.cmpi eq, %arg2, %c0_i32_15 : i32
    %15 = arith.extui %14 : i1 to i32
    %c0_i32_16 = arith.constant 0 : i32
    %16 = arith.cmpi ne, %15, %c0_i32_16 : i32
    scf.if %16 {
      %c0_17 = arith.constant 0 : index
      %c0_18 = arith.constant 0 : index
      %17 = vector.load %arg7[%c0_17, %c0_18] : memref<320x512xf32, #tpu.memory_space<vmem>>, vector<320x512xf32>
      %cst_19 = arith.constant 5.000000e-01 : f32
      %18 = vector.broadcast %cst_19 : f32 to vector<320x512xf32>
      %19 = arith.mulf %18, %17 : vector<320x512xf32>
      %cst_20 = arith.constant 0.707106769 : f32
      %20 = vector.broadcast %cst_20 : f32 to vector<320x512xf32>
      %21 = arith.mulf %17, %20 : vector<320x512xf32>
      %22 = math.erf %21 : vector<320x512xf32>
      %cst_21 = arith.constant 1.000000e+00 : f32
      %23 = vector.broadcast %cst_21 : f32 to vector<320x512xf32>
      %24 = arith.addf %23, %22 : vector<320x512xf32>
      %25 = arith.mulf %19, %24 : vector<320x512xf32>
      %c0_22 = arith.constant 0 : index
      %c0_23 = arith.constant 0 : index
      %26 = vector.load %arg8[%c0_22, %c0_23] : memref<320x512xf32, #tpu.memory_space<vmem>>, vector<320x512xf32>
      %27 = arith.mulf %25, %26 : vector<320x512xf32>
      %c0_24 = arith.constant 0 : index
      %c0_25 = arith.constant 0 : index
      %28 = vector.load %arg6[%c0_24, %c0_25] : memref<320x512xf32, #tpu.memory_space<vmem>>, vector<320x512xf32>
      tpu.vector_store %arg6[%c0_24, %c0_25], %27 {strides = array<i32>} : memref<320x512xf32, #tpu.memory_space<vmem>>, vector<320x512xf32>,
    } else {
    }
    return
  }
  func.func @transform_0(%arg0: i32, %arg1: i32, %arg2: i32) -> (i32, i32) {
    %c0_i32 = arith.constant 0 : i32
    return %arg0, %arg2 : i32, i32
  }
  func.func @transform_1(%arg0: i32, %arg1: i32, %arg2: i32) -> (i32, i32) {
    %c0_i32 = arith.constant 0 : i32
    return %arg2, %arg1 : i32, i32
  }
  func.func @transform_2(%arg0: i32, %arg1: i32, %arg2: i32) -> (i32, i32) {
    %c0_i32 = arith.constant 0 : i32
    return %arg2, %arg1 : i32, i32
  }
  func.func @transform_3(%arg0: i32, %arg1: i32, %arg2: i32) -> (i32, i32) {
    %c0_i32 = arith.constant 0 : i32
    return %arg0, %arg1 : i32, i32
  }
}

</mosaic_0001>

<llo_original>
// kernel: tpu_custom_call.1
$region0: #{tpu_custom_call.1}
  #allocation0 [shape = 'u32[]', space=smem, size = 0x4, offset = 0x4, fixed_abs, tag = 'smem constant byte address 0x4 - core index']
  #allocation1 [shape = 'u32[144,128]{1,0:T(1,128)}', space=vmem, size = 0x12000, scoped, tag = 'internal scratch']
  #allocation2 [shape = 'f32[320,512]{1,0:T(8,128)}', space=vmem, size = 0xa0000, scoped, tag = 'scratch operand']
  #allocation3 [shape = 'f32[320,512]{1,0:T(8,128)}', space=vmem, size = 0xa0000, scoped, tag = 'scratch operand']
  %s0 = inlined_call_operand.hbm [shape: f32[640,256], index: 0, kind: input, shape index: {}]
  %s1 = inlined_call_operand.hbm [shape: f32[256,512], index: 1, kind: input, shape index: {}]
  %s2 = inlined_call_operand.hbm [shape: f32[256,512], index: 2, kind: input, shape index: {}]
  %s3 = inlined_call_operand.hbm [shape: f32[640,512], index: 3, kind: output, shape index: {}]
  %s4 = sld [smem:[#allocation0]]
  $region65: #{tpu_custom_call.1} parent=0
    _
  %s6 = ssub.s32 1, %s4
  %s7 = scalar_select 0, %s6, %s4
  $region1: #{tpu_custom_call.1} parent=0
    #allocation4 [shape = 'u8[655360]{0}', space=vmem, size = 0xa0000, scoped, tag = 'input window, operand 0']
    #allocation5 [shape = 's32[2]{0}', space=sflag, size = 0x8, scoped, tag = 'scoped memory for tpu_custom_call.1']
    #allocation6 [shape = 's32[2]{0}', space=sflag, size = 0x8, scoped, tag = 'scoped memory for tpu_custom_call.1']
    #allocation7 [shape = 'u8[524288]{0}', space=vmem, size = 0x80000, scoped, tag = 'input window, operand 1, single buffered']
    #allocation8 [shape = 's32[1]{0}', space=sflag, size = 0x4, scoped, tag = 'scoped memory for tpu_custom_call.1']
    #allocation9 [shape = 'u8[524288]{0}', space=vmem, size = 0x80000, scoped, tag = 'input window, operand 2, single buffered']
    #allocation10 [shape = 'u8[1310720]{0}', space=vmem, size = 0x140000, scoped, tag = 'output window, operand 0']
    %8 = vsyncpa [#allocation5], 0
    %s9 = scalar_lea.sflag [#allocation5], 1
    %10 = vsyncpa %s9, 0
    %11 = vsyncpa [#allocation8], 0
    %12 = vsyncpa [#allocation6], 0
    %s13 = scalar_lea.sflag [#allocation6], 1
    %14 = vsyncpa %s13, 0
    loop: start=0, step=1, limit=4
    $region2: #{tpu_custom_call.1} parent=1 // loop_pre_header
      _
    $region3: #{tpu_custom_call.1} parent=1 // loop_header
      %s16 = sphi 0, %s20
      %p17 = scmp.ge.s32.totalorder %s16, 4
      %s23 = sphi 0, %s42
      %s24 = sphi 0, %s38
      %s25 = sphi 0, %s34
      %s26 = sphi 0, %s23
      %s27 = sphi 0, %s24
      %s28 = sphi 0, %s25
      %s29 = sphi 0, %s26
      %s30 = sphi 0, %s27
      %s31 = sphi 0, %s28
      %s47 = sphi 0, %s49
      %s50 = sphi 0, %s47
      %s51 = sphi 0, %s50
      %s67 = sphi 0, %s51
      %s75 = sphi 0, %s77
      %s78 = sphi 0, %s75
      %s79 = sphi 0, %s78
      %s95 = sphi 0, %s79
      %s103 = sphi 0, %s105
      %s106 = sphi 0, %s103
      %s107 = sphi 0, %s106
      %s123 = sphi 0, %s107
      %s131 = sphi 0, %s133
      %s134 = sphi 0, %s131
      %s135 = sphi 0, %s134
      %s151 = sphi 0, %s135
    $region4: #{tpu_custom_call.1} parent=1 // loop_header_branch
      %19 = sbr.rel (%p17) target = $region8
    $region5: #{tpu_custom_call.1} parent=1 // loop_body
      %s21 = ssub.s32 %s16, 1
      %s22 = ssub.s32 %s16, 2
      %s32 = sadd.s32 1, %s25
      %p33 = scmp.ge.s32.totalorder %s32, 1
      %s34 = scalar_select %p33, 0, %s32
      %s35 = sadd.s32 1, %s24
      %s36 = scalar_select %p33, %s35, %s24
      %p37 = scmp.ge.s32.totalorder %s36, 1
      %s38 = scalar_select %p37, 0, %s36
      %s39 = sadd.s32 1, %s23
      %s40 = scalar_select %p37, %s39, %s23
      %p41 = scmp.ge.s32.totalorder %s40, 2
      %s42 = scalar_select %p41, 0, %s40
      %s43 = ssub.s32 %s23, %s42
      %s44 = ssub.s32 %s25, %s34
      %s45 = sor.u32 %s43, %s44
      %p46 = scmp.eq.s32.totalorder %s45, 0
      %s48 = sadd.s32 %s47, 1
      %s49 = scalar_select %p46, %s47, %s48
      %p52 = pneg %p46
      %p53 = scmp.eq.s32.totalorder %s16, 1
      %p54 = por %p52, %p53
      %p55 = scmp.ne.s32.totalorder %s47, %s50
      %p56 = scmp.eq.s32.totalorder %s16, 0
      %p57 = por %p55, %p56
      %p58 = scmp.ne.s32.totalorder %s47, %s50
      %p59 = scmp.eq.s32.totalorder %s21, 1
      %p60 = por %p58, %p59
      %p61 = scmp.ne.s32.totalorder %s50, %s51
      %p62 = scmp.eq.s32.totalorder %s21, 0
      %p63 = por %p61, %p62
      %p64 = scmp.ne.s32.totalorder %s50, %s51
      %p65 = scmp.eq.s32.totalorder %s22, 1
      %p66 = por %p64, %p65
      %p68 = scmp.ne.s32.totalorder %s51, %s67
      %p69 = scmp.eq.s32.totalorder %s22, 0
      %p70 = por %p68, %p69
      %s71 = ssub.s32 %s25, %s34
      %s72 = ssub.s32 %s24, %s38
      %s73 = sor.u32 %s71, %s72
      %p74 = scmp.eq.s32.totalorder %s73, 0
      %s76 = sadd.s32 %s75, 1
      %s77 = scalar_select %p74, %s75, %s76
      %p80 = pneg %p74
      %p81 = scmp.eq.s32.totalorder %s16, 1
      %p82 = por %p80, %p81
      %p83 = scmp.ne.s32.totalorder %s75, %s78
      %p84 = scmp.eq.s32.totalorder %s16, 0
      %p85 = por %p83, %p84
      %p86 = scmp.ne.s32.totalorder %s75, %s78
      %p87 = scmp.eq.s32.totalorder %s21, 1
      %p88 = por %p86, %p87
      %p89 = scmp.ne.s32.totalorder %s78, %s79
      %p90 = scmp.eq.s32.totalorder %s21, 0
      %p91 = por %p89, %p90
      %p92 = scmp.ne.s32.totalorder %s78, %s79
      %p93 = scmp.eq.s32.totalorder %s22, 1
      %p94 = por %p92, %p93
      %p96 = scmp.ne.s32.totalorder %s79, %s95
      %p97 = scmp.eq.s32.totalorder %s22, 0
      %p98 = por %p96, %p97
      %s99 = ssub.s32 %s25, %s34
      %s100 = ssub.s32 %s24, %s38
      %s101 = sor.u32 %s99, %s100
      %p102 = scmp.eq.s32.totalorder %s101, 0
      %s104 = sadd.s32 %s103, 1
      %s105 = scalar_select %p102, %s103, %s104
      %p108 = pneg %p102
      %p109 = scmp.eq.s32.totalorder %s16, 1
      %p110 = por %p108, %p109
      %p111 = scmp.ne.s32.totalorder %s103, %s106
      %p112 = scmp.eq.s32.totalorder %s16, 0
      %p113 = por %p111, %p112
      %p114 = scmp.ne.s32.totalorder %s103, %s106
      %p115 = scmp.eq.s32.totalorder %s21, 1
      %p116 = por %p114, %p115
      %p117 = scmp.ne.s32.totalorder %s106, %s107
      %p118 = scmp.eq.s32.totalorder %s21, 0
      %p119 = por %p117, %p118
      %p120 = scmp.ne.s32.totalorder %s106, %s107
      %p121 = scmp.eq.s32.totalorder %s22, 1
      %p122 = por %p120, %p121
      %p124 = scmp.ne.s32.totalorder %s107, %s123
      %p125 = scmp.eq.s32.totalorder %s22, 0
      %p126 = por %p124, %p125
      %s127 = ssub.s32 %s23, %s42
      %s128 = ssub.s32 %s24, %s38
      %s129 = sor.u32 %s127, %s128
      %p130 = scmp.eq.s32.totalorder %s129, 0
      %s132 = sadd.s32 %s131, 1
      %s133 = scalar_select %p130, %s131, %s132
      %p136 = pneg %p130
      %p137 = scmp.eq.s32.totalorder %s16, 1
      %p138 = por %p136, %p137
      %p139 = scmp.ne.s32.totalorder %s131, %s134
      %p140 = scmp.eq.s32.totalorder %s16, 0
      %p141 = por %p139, %p140
      %p142 = scmp.ne.s32.totalorder %s131, %s134
      %p143 = scmp.eq.s32.totalorder %s21, 1
      %p144 = por %p142, %p143
      %p145 = scmp.ne.s32.totalorder %s134, %s135
      %p146 = scmp.eq.s32.totalorder %s21, 0
      %p147 = por %p145, %p146
      %p148 = scmp.ne.s32.totalorder %s134, %s135
      %p149 = scmp.eq.s32.totalorder %s22, 1
      %p150 = por %p148, %p149
      %p152 = scmp.ne.s32.totalorder %s135, %s151
      %p153 = scmp.eq.s32.totalorder %s22, 0
      %p154 = por %p152, %p153
      %p155 = scmp.le.s32.totalorder 1, %s16
      %p156 = scmp.lt.s32.totalorder %s16, 3
      %p157 = pnand %p155, %p156
      %p158 = pneg %p157
      // Predicated region
      $region9: #{tpu_custom_call.1} parent=5 // pred_check
        _
      $region10: #{tpu_custom_call.1} parent=5 // pred_check_branch
        %160 = sbr.rel (%p157) target = $region12
      $region11: #{tpu_custom_call.1} parent=5 // pred_region
        %s161 = ssub.s32 %s16, 1
        // Predicated region
        $region13: #{tpu_custom_call.1} parent=11 // pred_check
          %p162 = pneg %p91
        $region14: #{tpu_custom_call.1} parent=11 // pred_check_branch
          %164 = sbr.rel (%p162) target = $region16
        $region15: #{tpu_custom_call.1} parent=11 // pred_region
          %s165 = smul.u32 32, %s28
          %s166 = smul.u32 4, %s27
          %s168 = ssub.s32 16384, 16384
          %169 = vsyncadd [#allocation8], %s168
          %s170 = smul.addr %s165, 4
          %s171 = sadd.s32 %s166, %s170
          %s172 = smul.addr %s171, 128
          %s173 = scalar_lea.hbm %s1, %s172
          %s174 = sshll.u32 [#allocation7], 4
          %s175 = int_to_ptr.vmem [resolvable:$true] %s174
          %180 = dma.hbm_to_vmem [thread:$0]  %s173, 16384, %s175, [#allocation8], 512, 512, 32
        $region16: #{tpu_custom_call.1} parent=11 // pred_fallthru
          _
        // Predicated region
        $region17: #{tpu_custom_call.1} parent=11 // pred_check
          %p181 = pneg %p119
        $region18: #{tpu_custom_call.1} parent=11 // pred_check_branch
          %183 = sbr.rel (%p181) target = $region20
        $region19: #{tpu_custom_call.1} parent=11 // pred_region
          %s184 = smul.u32 32, %s28
          %s185 = smul.u32 4, %s27
          %s187 = ssub.s32 16384, 16384
          %188 = vsyncadd [#allocation8], %s187
          %s189 = smul.addr %s184, 4
          %s190 = sadd.s32 %s185, %s189
          %s191 = smul.addr %s190, 128
          %s192 = scalar_lea.hbm %s2, %s191
          %s193 = sshll.u32 [#allocation9], 4
          %s194 = int_to_ptr.vmem [resolvable:$true] %s193
          %199 = dma.hbm_to_vmem [thread:$0]  %s192, 16384, %s194, [#allocation8], 512, 512, 32
        $region20: #{tpu_custom_call.1} parent=11 // pred_fallthru
          _
      $region12: #{tpu_custom_call.1} parent=5 // pred_fallthru
        _
      %p200 = scmp.lt.s32.totalorder %s16, 2
      // Predicated region
      $region21: #{tpu_custom_call.1} parent=5 // pred_check
        %p201 = pneg %p200
      $region22: #{tpu_custom_call.1} parent=5 // pred_check_branch
        %203 = sbr.rel (%p201) target = $region24
      $region23: #{tpu_custom_call.1} parent=5 // pred_region
        // Predicated region
        $region25: #{tpu_custom_call.1} parent=23 // pred_check
          %p204 = pneg %p57
        $region26: #{tpu_custom_call.1} parent=23 // pred_check_branch
          %206 = sbr.rel (%p204) target = $region28
        $region27: #{tpu_custom_call.1} parent=23 // pred_region
          %s207 = sand.u32 %s47, 1
          %s208 = scalar_lea.sflag [#allocation5], %s207
          %s209 = sand.u32 %s47, 1
          %s210 = smul.addr %s209, 640
          %s211 = scalar_lea.vmem [#allocation4], %s210
          %s212 = smul.u32 40, %s23
          %s213 = smul.u32 2, %s25
          %s215 = ssub.s32 10240, 10240
          %216 = vsyncadd %s208, %s215
          %s217 = smul.addr %s212, 2
          %s218 = sadd.s32 %s213, %s217
          %s219 = smul.addr %s218, 128
          %s220 = scalar_lea.hbm %s0, %s219
          %s221 = sshll.u32 %s211, 4
          %s222 = int_to_ptr.vmem [resolvable:$true] %s221
          %227 = dma.hbm_to_vmem [thread:$0]  %s220, 10240, %s222, %s208, 256, 256, 16
        $region28: #{tpu_custom_call.1} parent=23 // pred_fallthru
          _
      $region24: #{tpu_custom_call.1} parent=5 // pred_fallthru
        _
      %p228 = scmp.le.s32.totalorder 1, %s16
      %p229 = scmp.lt.s32.totalorder %s16, 3
      %p230 = pnand %p228, %p229
      %p231 = pneg %p230
      // Predicated region
      $region29: #{tpu_custom_call.1} parent=5 // pred_check
        _
      $region30: #{tpu_custom_call.1} parent=5 // pred_check_branch
        %233 = sbr.rel (%p230) target = $region32
      $region31: #{tpu_custom_call.1} parent=5 // pred_region
        %s234 = ssub.s32 %s16, 1
        %s235 = sand.u32 %s50, 1
        %s236 = scalar_lea.sflag [#allocation5], %s235
        %s237 = sand.u32 %s50, 1
        %s238 = smul.addr %s237, 640
        %s239 = scalar_lea.vmem [#allocation4], %s238
        // Predicated region
        $region33: #{tpu_custom_call.1} parent=31 // pred_check
          %p240 = pneg %p63
        $region34: #{tpu_custom_call.1} parent=31 // pred_check_branch
          %242 = sbr.rel (%p240) target = $region36
        $region35: #{tpu_custom_call.1} parent=31 // pred_region
          %243 = dma.done %s236, 10240
        $region36: #{tpu_custom_call.1} parent=31 // pred_fallthru
          _
        // Predicated region
        $region37: #{tpu_custom_call.1} parent=31 // pred_check
          %p244 = pneg %p91
        $region38: #{tpu_custom_call.1} parent=31 // pred_check_branch
          %246 = sbr.rel (%p244) target = $region40
        $region39: #{tpu_custom_call.1} parent=31 // pred_region
          %247 = dma.done [#allocation8], 16384
        $region40: #{tpu_custom_call.1} parent=31 // pred_fallthru
          _
        // Predicated region
        $region41: #{tpu_custom_call.1} parent=31 // pred_check
          %p248 = pneg %p119
        $region42: #{tpu_custom_call.1} parent=31 // pred_check_branch
          %250 = sbr.rel (%p248) target = $region44
        $region43: #{tpu_custom_call.1} parent=31 // pred_region
          %251 = dma.done [#allocation8], 16384
        $region44: #{tpu_custom_call.1} parent=31 // pred_fallthru
          _
        %s252 = sand.u32 %s50, 1
        %s253 = scalar_lea.sflag [#allocation5], %s252
        %s254 = sand.u32 %s50, 1
        %s255 = smul.addr %s254, 640
        %s256 = scalar_lea.vmem [#allocation4], %s255
        %p257 = pneg %p63
        %p258 = pneg %p60
        %p259 = pneg %p91
        %p260 = pneg %p88
        %p261 = pneg %p119
        %p262 = pneg %p116
        %p263 = pneg %p147
        %p264 = pneg %p144
        %s265 = sand.u32 %s134, 1
        %s266 = scalar_lea.sflag [#allocation6], %s265
        %s267 = sand.u32 %s134, 1
        %s268 = smul.addr %s267, 1280
        %s269 = scalar_lea.vmem [#allocation10], %s268
        %s270 = smul.u32 40, %s26
        %s271 = smul.u32 2, %s28
        %s272 = smul.u32 32, %s28
        %s273 = smul.u32 4, %s27
        %s274 = smul.u32 32, %s28
        %s275 = smul.u32 4, %s27
        %s276 = smul.u32 40, %s26
        %s277 = smul.u32 4, %s27
        %p278 = scmp.eq.s32.totalorder %s28, 0
        // Predicated region
        $region45: #{tpu_custom_call.1} parent=31 // pred_check
          %p279 = pneg %p278
        $region46: #{tpu_custom_call.1} parent=31 // pred_check_branch
          %281 = sbr.rel (%p279) target = $region48
        $region47: #{tpu_custom_call.1} parent=31 // pred_region
          %282 = vst [vmem:[#allocation2] sm:$0xff] 0.0
          %283 = vst [vmem:[#allocation2 + $0x8] sm:$0xff] 0.0
          %284 = vst [vmem:[#allocation2 + $0x10] sm:$0xff] 0.0
          %285 = vst [vmem:[#allocation2 + $0x18] sm:$0xff] 0.0
          %286 = vst [vmem:[#allocation2 + $0x20] sm:$0xff] 0.0
          %287 = vst [vmem:[#allocation2 + $0x28] sm:$0xff] 0.0
          %288 = vst [vmem:[#allocation2 + $0x30] sm:$0xff] 0.0
          %289 = vst [vmem:[#allocation2 + $0x38] sm:$0xff] 0.0
          %290 = vst [vmem:[#allocation2 + $0x40] sm:$0xff] 0.0
          %291 = vst [vmem:[#allocation2 + $0x48] sm:$0xff] 0.0
          %292 = vst [vmem:[#allocation2 + $0x50] sm:$0xff] 0.0
          %293 = vst [vmem:[#allocation2 + $0x58] sm:$0xff] 0.0
          %294 = vst [vmem:[#allocation2 + $0x60] sm:$0xff] 0.0
          %295 = vst [vmem:[#allocation2 + $0x68] sm:$0xff] 0.0
          %296 = vst [vmem:[#allocation2 + $0x70] sm:$0xff] 0.0
          %297 = vst [vmem:[#allocation2 + $0x78] sm:$0xff] 0.0
          %298 = vst [vmem:[#allocation2 + $0x80] sm:$0xff] 0.0
          %299 = vst [vmem:[#allocation2 + $0x88] sm:$0xff] 0.0
          %300 = vst [vmem:[#allocation2 + $0x90] sm:$0xff] 0.0
          %301 = vst [vmem:[#allocation2 + $0x98] sm:$0xff] 0.0
          %302 = vst [vmem:[#allocation2 + $0xa0] sm:$0xff] 0.0
          %303 = vst [vmem:[#allocation2 + $0xa8] sm:$0xff] 0.0
          %304 = vst [vmem:[#allocation2 + $0xb0] sm:$0xff] 0.0
          %305 = vst [vmem:[#allocation2 + $0xb8] sm:$0xff] 0.0
          %306 = vst [vmem:[#allocation2 + $0xc0] sm:$0xff] 0.0
          %307 = vst [vmem:[#allocation2 + $0xc8] sm:$0xff] 0.0
          %308 = vst [vmem:[#allocation2 + $0xd0] sm:$0xff] 0.0
          %309 = vst [vmem:[#allocation2 + $0xd8] sm:$0xff] 0.0
          %310 = vst [vmem:[#allocation2 + $0xe0] sm:$0xff] 0.0
          %311 = vst [vmem:[#allocation2 + $0xe8] sm:$0xff] 0.0
          %312 = vst [vmem:[#allocation2 + $0xf0] sm:$0xff] 0.0
          %313 = vst [vmem:[#allocation2 + $0xf8] sm:$0xff] 0.0
          %314 = vst [vmem:[#allocation2 + $0x100] sm:$0xff] 0.0
          %315 = vst [vmem:[#allocation2 + $0x108] sm:$0xff] 0.0
          %316 = vst [vmem:[#allocation2 + $0x110] sm:$0xff] 0.0
          %317 = vst [vmem:[#allocation2 + $0x118] sm:$0xff] 0.0
          %318 = vst [vmem:[#allocation2 + $0x120] sm:$0xff] 0.0
          %319 = vst [vmem:[#allocation2 + $0x128] sm:$0xff] 0.0
          %320 = vst [vmem:[#allocation2 + $0x130] sm:$0xff] 0.0
          %321 = vst [vmem:[#allocation2 + $0x138] sm:$0xff] 0.0
          %322 = vst [vmem:[#allocation2 + $0x140] sm:$0xff] 0.0
          %323 = vst [vmem:[#allocation2 + $0x148] sm:$0xff] 0.0
          %324 = vst [vmem:[#allocation2 + $0x150] sm:$0xff] 0.0
          %325 = vst [vmem:[#allocation2 + $0x158] sm:$0xff] 0.0
          %326 = vst [vmem:[#allocation2 + $0x160] sm:$0xff] 0.0
          %327 = vst [vmem:[#allocation2 + $0x168] sm:$0xff] 0.0
          %328 = vst [vmem:[#allocation2 + $0x170] sm:$0xff] 0.0
          %329 = vst [vmem:[#allocation2 + $0x178] sm:$0xff] 0.0
          %330 = vst [vmem:[#allocation2 + $0x180] sm:$0xff] 0.0
          %331 = vst [vmem:[#allocation2 + $0x188] sm:$0xff] 0.0
          %332 = vst [vmem:[#allocation2 + $0x190] sm:$0xff] 0.0
          %333 = vst [vmem:[#allocation2 + $0x198] sm:$0xff] 0.0
          %334 = vst [vmem:[#allocation2 + $0x1a0] sm:$0xff] 0.0
          %335 = vst [vmem:[#allocation2 + $0x1a8] sm:$0xff] 0.0
          %336 = vst [vmem:[#allocation2 + $0x1b0] sm:$0xff] 0.0
          %337 = vst [vmem:[#allocation2 + $0x1b8] sm:$0xff] 0.0
          %338 = vst [vmem:[#allocation2 + $0x1c0] sm:$0xff] 0.0
          %339 = vst [vmem:[#allocation2 + $0x1c8] sm:$0xff] 0.0
          %340 = vst [vmem:[#allocation2 + $0x1d0] sm:$0xff] 0.0
          %341 = vst [vmem:[#allocation2 + $0x1d8] sm:$0xff] 0.0
          %342 = vst [vmem:[#allocation2 + $0x1e0] sm:$0xff] 0.0
          %343 = vst [vmem:[#allocation2 + $0x1e8] sm:$0xff] 0.0
          %344 = vst [vmem:[#allocation2 + $0x1f0] sm:$0xff] 0.0
          %345 = vst [vmem:[#allocation2 + $0x1f8] sm:$0xff] 0.0
          %346 = vst [vmem:[#allocation2 + $0x200] sm:$0xff] 0.0
          %347 = vst [vmem:[#allocation2 + $0x208] sm:$0xff] 0.0
          %348 = vst [vmem:[#allocation2 + $0x210] sm:$0xff] 0.0
          %349 = vst [vmem:[#allocation2 + $0x218] sm:$0xff] 0.0
          %350 = vst [vmem:[#allocation2 + $0x220] sm:$0xff] 0.0
          %351 = vst [vmem:[#allocation2 + $0x228] sm:$0xff] 0.0
          %352 = vst [vmem:[#allocation2 + $0x230] sm:$0xff] 0.0
          %353 = vst [vmem:[#allocation2 + $0x238] sm:$0xff] 0.0
          %354 = vst [vmem:[#allocation2 + $0x240] sm:$0xff] 0.0
          %355 = vst [vmem:[#allocation2 + $0x248] sm:$0xff] 0.0
          %356 = vst [vmem:[#allocation2 + $0x250] sm:$0xff] 0.0
          %357 = vst [vmem:[#allocation2 + $0x258] sm:$0xff] 0.0
          %358 = vst [vmem:[#allocation2 + $0x260] sm:$0xff] 0.0
          %359 = vst [vmem:[#allocation2 + $0x268] sm:$0xff] 0.0
          %360 = vst [vmem:[#allocation2 + $0x270] sm:$0xff] 0.0
          %361 = vst [vmem:[#allocation2 + $0x278] sm:$0xff] 0.0
          %362 = vst [vmem:[#allocation2 + $0x280] sm:$0xff] 0.0
          %363 = vst [vmem:[#allocation2 + $0x288] sm:$0xff] 0.0
          %364 = vst [vmem:[#allocation2 + $0x290] sm:$0xff] 0.0
          %365 = vst [vmem:[#allocation2 + $0x298] sm:$0xff] 0.0
          %366 = vst [vmem:[#allocation2 + $0x2a0] sm:$0xff] 0.0
          %367 = vst [vmem:[#allocation2 + $0x2a8] sm:$0xff] 0.0
          %368 = vst [vmem:[#allocation2 + $0x2b0] sm:$0xff] 0.0
          %369 = vst [vmem:[#allocation2 + $0x2b8] sm:$0xff] 0.0
          %370 = vst [vmem:[#allocation2 + $0x2c0] sm:$0xff] 0.0
          %371 = vst [vmem:[#allocation2 + $0x2c8] sm:$0xff] 0.0
          %372 = vst [vmem:[#allocation2 + $0x2d0] sm:$0xff] 0.0
          %373 = vst [vmem:[#allocation2 + $0x2d8] sm:$0xff] 0.0
          %374 = vst [vmem:[#allocation2 + $0x2e0] sm:$0xff] 0.0
          %375 = vst [vmem:[#allocation2 + $0x2e8] sm:$0xff] 0.0
          %376 = vst [vmem:[#allocation2 + $0x2f0] sm:$0xff] 0.0
          %377 = vst [vmem:[#allocation2 + $0x2f8] sm:$0xff] 0.0
          %378 = vst [vmem:[#allocation2 + $0x300] sm:$0xff] 0.0
          %379 = vst [vmem:[#allocation2 + $0x308] sm:$0xff] 0.0
          %380 = vst [vmem:[#allocation2 + $0x310] sm:$0xff] 0.0
          %381 = vst [vmem:[#allocation2 + $0x318] sm:$0xff] 0.0
          %382 = vst [vmem:[#allocation2 + $0x320] sm:$0xff] 0.0
          %383 = vst [vmem:[#allocation2 + $0x328] sm:$0xff] 0.0
          %384 = vst [vmem:[#allocation2 + $0x330] sm:$0xff] 0.0
          %385 = vst [vmem:[#allocation2 + $0x338] sm:$0xff] 0.0
          %386 = vst [vmem:[#allocation2 + $0x340] sm:$0xff] 0.0
          %387 = vst [vmem:[#allocation2 + $0x348] sm:$0xff] 0.0
          %388 = vst [vmem:[#allocation2 + $0x350] sm:$0xff] 0.0
          %389 = vst [vmem:[#allocation2 + $0x358] sm:$0xff] 0.0
          %390 = vst [vmem:[#allocation2 + $0x360] sm:$0xff] 0.0
          %391 = vst [vmem:[#allocation2 + $0x368] sm:$0xff] 0.0
          %392 = vst [vmem:[#allocation2 + $0x370] sm:$0xff] 0.0
          %393 = vst [vmem:[#allocation2 + $0x378] sm:$0xff] 0.0
          %394 = vst [vmem:[#allocation2 + $0x380] sm:$0xff] 0.0
          %395 = vst [vmem:[#allocation2 + $0x388] sm:$0xff] 0.0
          %396 = vst [vmem:[#allocation2 + $0x390] sm:$0xff] 0.0
          %397 = vst [vmem:[#allocation2 + $0x398] sm:$0xff] 0.0
          %398 = vst [vmem:[#allocation2 + $0x3a0] sm:$0xff] 0.0
          %399 = vst [vmem:[#allocation2 + $0x3a8] sm:$0xff] 0.0
          %400 = vst [vmem:[#allocation2 + $0x3b0] sm:$0xff] 0.0
          %401 = vst [vmem:[#allocation2 + $0x3b8] sm:$0xff] 0.0
          %402 = vst [vmem:[#allocation2 + $0x3c0] sm:$0xff] 0.0
          %403 = vst [vmem:[#allocation2 + $0x3c8] sm:$0xff] 0.0
          %404 = vst [vmem:[#allocation2 + $0x3d0] sm:$0xff] 0.0
          %405 = vst [vmem:[#allocation2 + $0x3d8] sm:$0xff] 0.0
          %406 = vst [vmem:[#allocation2 + $0x3e0] sm:$0xff] 0.0
          %407 = vst [vmem:[#allocation2 + $0x3e8] sm:$0xff] 0.0
          %408 = vst [vmem:[#allocation2 + $0x3f0] sm:$0xff] 0.0
          %409 = vst [vmem:[#allocation2 + $0x3f8] sm:$0xff] 0.0
          %410 = vst [vmem:[#allocation2 + $0x400] sm:$0xff] 0.0
          %411 = vst [vmem:[#allocation2 + $0x408] sm:$0xff] 0.0
          %412 = vst [vmem:[#allocation2 + $0x410] sm:$0xff] 0.0
          %413 = vst [vmem:[#allocation2 + $0x418] sm:$0xff] 0.0
          %414 = vst [vmem:[#allocation2 + $0x420] sm:$0xff] 0.0
          %415 = vst [vmem:[#allocation2 + $0x428] sm:$0xff] 0.0
          %416 = vst [vmem:[#allocation2 + $0x430] sm:$0xff] 0.0
          %417 = vst [vmem:[#allocation2 + $0x438] sm:$0xff] 0.0
          %418 = vst [vmem:[#allocation2 + $0x440] sm:$0xff] 0.0
          %419 = vst [vmem:[#allocation2 + $0x448] sm:$0xff] 0.0
          %420 = vst [vmem:[#allocation2 + $0x450] sm:$0xff] 0.0
          %421 = vst [vmem:[#allocation2 + $0x458] sm:$0xff] 0.0
          %422 = vst [vmem:[#allocation2 + $0x460] sm:$0xff] 0.0
          %423 = vst [vmem:[#allocation2 + $0x468] sm:$0xff] 0.0
          %424 = vst [vmem:[#allocation2 + $0x470] sm:$0xff] 0.0
          %425 = vst [vmem:[#allocation2 + $0x478] sm:$0xff] 0.0
          %426 = vst [vmem:[#allocation2 + $0x480] sm:$0xff] 0.0
          %427 = vst [vmem:[#allocation2 + $0x488] sm:$0xff] 0.0
          %428 = vst [vmem:[#allocation2 + $0x490] sm:$0xff] 0.0
          %429 = vst [vmem:[#allocation2 + $0x498] sm:$0xff] 0.0
          %430 = vst [vmem:[#allocation2 + $0x4a0] sm:$0xff] 0.0
          %431 = vst [vmem:[#allocation2 + $0x4a8] sm:$0xff] 0.0
          %432 = vst [vmem:[#allocation2 + $0x4b0] sm:$0xff] 0.0
          %433 = vst [vmem:[#allocation2 + $0x4b8] sm:$0xff] 0.0
          %434 = vst [vmem:[#allocation2 + $0x4c0] sm:$0xff] 0.0
          %435 = vst [vmem:[#allocation2 + $0x4c8] sm:$0xff] 0.0
          %436 = vst [vmem:[#allocation2 + $0x4d0] sm:$0xff] 0.0
          %437 = vst [vmem:[#allocation2 + $0x4d8] sm:$0xff] 0.0
          %438 = vst [vmem:[#allocation2 + $0x4e0] sm:$0xff] 0.0
          %439 = vst [vmem:[#allocation2 + $0x4e8] sm:$0xff] 0.0
          %440 = vst [vmem:[#allocation2 + $0x4f0] sm:$0xff] 0.0
          %441 = vst [vmem:[#allocation2 + $0x4f8] sm:$0xff] 0.0
          %442 = vst [vmem:[#allocation3] sm:$0xff] 0.0
          %443 = vst [vmem:[#allocation3 + $0x8] sm:$0xff] 0.0
          %444 = vst [vmem:[#allocation3 + $0x10] sm:$0xff] 0.0
          %445 = vst [vmem:[#allocation3 + $0x18] sm:$0xff] 0.0
          %446 = vst [vmem:[#allocation3 + $0x20] sm:$0xff] 0.0
          %447 = vst [vmem:[#allocation3 + $0x28] sm:$0xff] 0.0
          %448 = vst [vmem:[#allocation3 + $0x30] sm:$0xff] 0.0
          %449 = vst [vmem:[#allocation3 + $0x38] sm:$0xff] 0.0
          %450 = vst [vmem:[#allocation3 + $0x40] sm:$0xff] 0.0
          %451 = vst [vmem:[#allocation3 + $0x48] sm:$0xff] 0.0
          %452 = vst [vmem:[#allocation3 + $0x50] sm:$0xff] 0.0
          %453 = vst [vmem:[#allocation3 + $0x58] sm:$0xff] 0.0
          %454 = vst [vmem:[#allocation3 + $0x60] sm:$0xff] 0.0
          %455 = vst [vmem:[#allocation3 + $0x68] sm:$0xff] 0.0
          %456 = vst [vmem:[#allocation3 + $0x70] sm:$0xff] 0.0
          %457 = vst [vmem:[#allocation3 + $0x78] sm:$0xff] 0.0
          %458 = vst [vmem:[#allocation3 + $0x80] sm:$0xff] 0.0
          %459 = vst [vmem:[#allocation3 + $0x88] sm:$0xff] 0.0
          %460 = vst [vmem:[#allocation3 + $0x90] sm:$0xff] 0.0
          %461 = vst [vmem:[#allocation3 + $0x98] sm:$0xff] 0.0
          %462 = vst [vmem:[#allocation3 + $0xa0] sm:$0xff] 0.0
          %463 = vst [vmem:[#allocation3 + $0xa8] sm:$0xff] 0.0
          %464 = vst [vmem:[#allocation3 + $0xb0] sm:$0xff] 0.0
          %465 = vst [vmem:[#allocation3 + $0xb8] sm:$0xff] 0.0
          %466 = vst [vmem:[#allocation3 + $0xc0] sm:$0xff] 0.0
          %467 = vst [vmem:[#allocation3 + $0xc8] sm:$0xff] 0.0
          %468 = vst [vmem:[#allocation3 + $0xd0] sm:$0xff] 0.0
          %469 = vst [vmem:[#allocation3 + $0xd8] sm:$0xff] 0.0
          %470 = vst [vmem:[#allocation3 + $0xe0] sm:$0xff] 0.0
          %471 = vst [vmem:[#allocation3 + $0xe8] sm:$0xff] 0.0
          %472 = vst [vmem:[#allocation3 + $0xf0] sm:$0xff] 0.0
          %473 = vst [vmem:[#allocation3 + $0xf8] sm:$0xff] 0.0
          %474 = vst [vmem:[#allocation3 + $0x100] sm:$0xff] 0.0
          %475 = vst [vmem:[#allocation3 + $0x108] sm:$0xff] 0.0
          %476 = vst [vmem:[#allocation3 + $0x110] sm:$0xff] 0.0
          %477 = vst [vmem:[#allocation3 + $0x118] sm:$0xff] 0.0
          %478 = vst [vmem:[#allocation3 + $0x120] sm:$0xff] 0.0
          %479 = vst [vmem:[#allocation3 + $0x128] sm:$0xff] 0.0
          %480 = vst [vmem:[#allocation3 + $0x130] sm:$0xff] 0.0
          %481 = vst [vmem:[#allocation3 + $0x138] sm:$0xff] 0.0
          %482 = vst [vmem:[#allocation3 + $0x140] sm:$0xff] 0.0
          %483 = vst [vmem:[#allocation3 + $0x148] sm:$0xff] 0.0
          %484 = vst [vmem:[#allocation3 + $0x150] sm:$0xff] 0.0
          %485 = vst [vmem:[#allocation3 + $0x158] sm:$0xff] 0.0
          %486 = vst [vmem:[#allocation3 + $0x160] sm:$0xff] 0.0
          %487 = vst [vmem:[#allocation3 + $0x168] sm:$0xff] 0.0
          %488 = vst [vmem:[#allocation3 + $0x170] sm:$0xff] 0.0
          %489 = vst [vmem:[#allocation3 + $0x178] sm:$0xff] 0.0
          %490 = vst [vmem:[#allocation3 + $0x180] sm:$0xff] 0.0
          %491 = vst [vmem:[#allocation3 + $0x188] sm:$0xff] 0.0
          %492 = vst [vmem:[#allocation3 + $0x190] sm:$0xff] 0.0
          %493 = vst [vmem:[#allocation3 + $0x198] sm:$0xff] 0.0
          %494 = vst [vmem:[#allocation3 + $0x1a0] sm:$0xff] 0.0
          %495 = vst [vmem:[#allocation3 + $0x1a8] sm:$0xff] 0.0
          %496 = vst [vmem:[#allocation3 + $0x1b0] sm:$0xff] 0.0
          %497 = vst [vmem:[#allocation3 + $0x1b8] sm:$0xff] 0.0
          %498 = vst [vmem:[#allocation3 + $0x1c0] sm:$0xff] 0.0
          %499 = vst [vmem:[#allocation3 + $0x1c8] sm:$0xff] 0.0
          %500 = vst [vmem:[#allocation3 + $0x1d0] sm:$0xff] 0.0
          %501 = vst [vmem:[#allocation3 + $0x1d8] sm:$0xff] 0.0
          %502 = vst [vmem:[#allocation3 + $0x1e0] sm:$0xff] 0.0
          %503 = vst [vmem:[#allocation3 + $0x1e8] sm:$0xff] 0.0
          %504 = vst [vmem:[#allocation3 + $0x1f0] sm:$0xff] 0.0
          %505 = vst [vmem:[#allocation3 + $0x1f8] sm:$0xff] 0.0
          %506 = vst [vmem:[#allocation3 + $0x200] sm:$0xff] 0.0
          %507 = vst [vmem:[#allocation3 + $0x208] sm:$0xff] 0.0
          %508 = vst [vmem:[#allocation3 + $0x210] sm:$0xff] 0.0
          %509 = vst [vmem:[#allocation3 + $0x218] sm:$0xff] 0.0
          %510 = vst [vmem:[#allocation3 + $0x220] sm:$0xff] 0.0
          %511 = vst [vmem:[#allocation3 + $0x228] sm:$0xff] 0.0
          %512 = vst [vmem:[#allocation3 + $0x230] sm:$0xff] 0.0
          %513 = vst [vmem:[#allocation3 + $0x238] sm:$0xff] 0.0
          %514 = vst [vmem:[#allocation3 + $0x240] sm:$0xff] 0.0
          %515 = vst [vmem:[#allocation3 + $0x248] sm:$0xff] 0.0
          %516 = vst [vmem:[#allocation3 + $0x250] sm:$0xff] 0.0
          %517 = vst [vmem:[#allocation3 + $0x258] sm:$0xff] 0.0
          %518 = vst [vmem:[#allocation3 + $0x260] sm:$0xff] 0.0
          %519 = vst [vmem:[#allocation3 + $0x268] sm:$0xff] 0.0
          %520 = vst [vmem:[#allocation3 + $0x270] sm:$0xff] 0.0
          %521 = vst [vmem:[#allocation3 + $0x278] sm:$0xff] 0.0
          %522 = vst [vmem:[#allocation3 + $0x280] sm:$0xff] 0.0
          %523 = vst [vmem:[#allocation3 + $0x288] sm:$0xff] 0.0
          %524 = vst [vmem:[#allocation3 + $0x290] sm:$0xff] 0.0
          %525 = vst [vmem:[#allocation3 + $0x298] sm:$0xff] 0.0
          %526 = vst [vmem:[#allocation3 + $0x2a0] sm:$0xff] 0.0
          %527 = vst [vmem:[#allocation3 + $0x2a8] sm:$0xff] 0.0
          %528 = vst [vmem:[#allocation3 + $0x2b0] sm:$0xff] 0.0
          %529 = vst [vmem:[#allocation3 + $0x2b8] sm:$0xff] 0.0
          %530 = vst [vmem:[#allocation3 + $0x2c0] sm:$0xff] 0.0
          %531 = vst [vmem:[#allocation3 + $0x2c8] sm:$0xff] 0.0
          %532 = vst [vmem:[#allocation3 + $0x2d0] sm:$0xff] 0.0
          %533 = vst [vmem:[#allocation3 + $0x2d8] sm:$0xff] 0.0
          %534 = vst [vmem:[#allocation3 + $0x2e0] sm:$0xff] 0.0
          %535 = vst [vmem:[#allocation3 + $0x2e8] sm:$0xff] 0.0
          %536 = vst [vmem:[#allocation3 + $0x2f0] sm:$0xff] 0.0
          %537 = vst [vmem:[#allocation3 + $0x2f8] sm:$0xff] 0.0
          %538 = vst [vmem:[#allocation3 + $0x300] sm:$0xff] 0.0
          %539 = vst [vmem:[#allocation3 + $0x308] sm:$0xff] 0.0
          %540 = vst [vmem:[#allocation3 + $0x310] sm:$0xff] 0.0
          %541 = vst [vmem:[#allocation3 + $0x318] sm:$0xff] 0.0
          %542 = vst [vmem:[#allocation3 + $0x320] sm:$0xff] 0.0
          %543 = vst [vmem:[#allocation3 + $0x328] sm:$0xff] 0.0
          %544 = vst [vmem:[#allocation3 + $0x330] sm:$0xff] 0.0
          %545 = vst [vmem:[#allocation3 + $0x338] sm:$0xff] 0.0
          %546 = vst [vmem:[#allocation3 + $0x340] sm:$0xff] 0.0
          %547 = vst [vmem:[#allocation3 + $0x348] sm:$0xff] 0.0
          %548 = vst [vmem:[#allocation3 + $0x350] sm:$0xff] 0.0
          %549 = vst [vmem:[#allocation3 + $0x358] sm:$0xff] 0.0
          %550 = vst [vmem:[#allocation3 + $0x360] sm:$0xff] 0.0
          %551 = vst [vmem:[#allocation3 + $0x368] sm:$0xff] 0.0
          %552 = vst [vmem:[#allocation3 + $0x370] sm:$0xff] 0.0
          %553 = vst [vmem:[#allocation3 + $0x378] sm:$0xff] 0.0
          %554 = vst [vmem:[#allocation3 + $0x380] sm:$0xff] 0.0
          %555 = vst [vmem:[#allocation3 + $0x388] sm:$0xff] 0.0
          %556 = vst [vmem:[#allocation3 + $0x390] sm:$0xff] 0.0
          %557 = vst [vmem:[#allocation3 + $0x398] sm:$0xff] 0.0
          %558 = vst [vmem:[#allocation3 + $0x3a0] sm:$0xff] 0.0
          %559 = vst [vmem:[#allocation3 + $0x3a8] sm:$0xff] 0.0
          %560 = vst [vmem:[#allocation3 + $0x3b0] sm:$0xff] 0.0
          %561 = vst [vmem:[#allocation3 + $0x3b8] sm:$0xff] 0.0
          %562 = vst [vmem:[#allocation3 + $0x3c0] sm:$0xff] 0.0
          %563 = vst [vmem:[#allocation3 + $0x3c8] sm:$0xff] 0.0
          %564 = vst [vmem:[#allocation3 + $0x3d0] sm:$0xff] 0.0
          %565 = vst [vmem:[#allocation3 + $0x3d8] sm:$0xff] 0.0
          %566 = vst [vmem:[#allocation3 + $0x3e0] sm:$0xff] 0.0
          %567 = vst [vmem:[#allocation3 + $0x3e8] sm:$0xff] 0.0
          %568 = vst [vmem:[#allocation3 + $0x3f0] sm:$0xff] 0.0
          %569 = vst [vmem:[#allocation3 + $0x3f8] sm:$0xff] 0.0
          %570 = vst [vmem:[#allocation3 + $0x400] sm:$0xff] 0.0
          %571 = vst [vmem:[#allocation3 + $0x408] sm:$0xff] 0.0
          %572 = vst [vmem:[#allocation3 + $0x410] sm:$0xff] 0.0
          %573 = vst [vmem:[#allocation3 + $0x418] sm:$0xff] 0.0
          %574 = vst [vmem:[#allocation3 + $0x420] sm:$0xff] 0.0
          %575 = vst [vmem:[#allocation3 + $0x428] sm:$0xff] 0.0
          %576 = vst [vmem:[#allocation3 + $0x430] sm:$0xff] 0.0
          %577 = vst [vmem:[#allocation3 + $0x438] sm:$0xff] 0.0
          %578 = vst [vmem:[#allocation3 + $0x440] sm:$0xff] 0.0
          %579 = vst [vmem:[#allocation3 + $0x448] sm:$0xff] 0.0
          %580 = vst [vmem:[#allocation3 + $0x450] sm:$0xff] 0.0
          %581 = vst [vmem:[#allocation3 + $0x458] sm:$0xff] 0.0
          %582 = vst [vmem:[#allocation3 + $0x460] sm:$0xff] 0.0
          %583 = vst [vmem:[#allocation3 + $0x468] sm:$0xff] 0.0
          %584 = vst [vmem:[#allocation3 + $0x470] sm:$0xff] 0.0
          %585 = vst [vmem:[#allocation3 + $0x478] sm:$0xff] 0.0
          %586 = vst [vmem:[#allocation3 + $0x480] sm:$0xff] 0.0
          %587 = vst [vmem:[#allocation3 + $0x488] sm:$0xff] 0.0
          %588 = vst [vmem:[#allocation3 + $0x490] sm:$0xff] 0.0
          %589 = vst [vmem:[#allocation3 + $0x498] sm:$0xff] 0.0
          %590 = vst [vmem:[#allocation3 + $0x4a0] sm:$0xff] 0.0
          %591 = vst [vmem:[#allocation3 + $0x4a8] sm:$0xff] 0.0
          %592 = vst [vmem:[#allocation3 + $0x4b0] sm:$0xff] 0.0
          %593 = vst [vmem:[#allocation3 + $0x4b8] sm:$0xff] 0.0
          %594 = vst [vmem:[#allocation3 + $0x4c0] sm:$0xff] 0.0
          %595 = vst [vmem:[#allocation3 + $0x4c8] sm:$0xff] 0.0
          %596 = vst [vmem:[#allocation3 + $0x4d0] sm:$0xff] 0.0
          %597 = vst [vmem:[#allocation3 + $0x4d8] sm:$0xff] 0.0
          %598 = vst [vmem:[#allocation3 + $0x4e0] sm:$0xff] 0.0
          %599 = vst [vmem:[#allocation3 + $0x4e8] sm:$0xff] 0.0
          %600 = vst [vmem:[#allocation3 + $0x4f0] sm:$0xff] 0.0
          %601 = vst [vmem:[#allocation3 + $0x4f8] sm:$0xff] 0.0
        $region48: #{tpu_custom_call.1} parent=31 // pred_fallthru
          _
        %v602 = vld [vmem:[%s239] sm:$0xff]
        %v603 = vld [vmem:[%s239 + $0x8] sm:$0xff]
        %v604 = vld [vmem:[%s239 + $0x10] sm:$0xff]
        %v605 = vld [vmem:[%s239 + $0x18] sm:$0xff]
        %v606 = vld [vmem:[%s239 + $0x20] sm:$0xff]
        %v607 = vld [vmem:[%s239 + $0x28] sm:$0xff]
        %v608 = vld [vmem:[%s239 + $0x30] sm:$0xff]
        %v609 = vld [vmem:[%s239 + $0x38] sm:$0xff]
        %v610 = vld [vmem:[%s239 + $0x40] sm:$0xff]
        %v611 = vld [vmem:[%s239 + $0x48] sm:$0xff]
        %v612 = vld [vmem:[%s239 + $0x50] sm:$0xff]
        %v613 = vld [vmem:[%s239 + $0x58] sm:$0xff]
        %v614 = vld [vmem:[%s239 + $0x60] sm:$0xff]
        %v615 = vld [vmem:[%s239 + $0x68] sm:$0xff]
        %v616 = vld [vmem:[%s239 + $0x70] sm:$0xff]
        %v617 = vld [vmem:[%s239 + $0x78] sm:$0xff]
        %v618 = vld [vmem:[%s239 + $0x80] sm:$0xff]
        %v619 = vld [vmem:[%s239 + $0x88] sm:$0xff]
        %v620 = vld [vmem:[%s239 + $0x90] sm:$0xff]
        %v621 = vld [vmem:[%s239 + $0x98] sm:$0xff]
        %v622 = vld [vmem:[%s239 + $0xa0] sm:$0xff]
        %v623 = vld [vmem:[%s239 + $0xa8] sm:$0xff]
        %v624 = vld [vmem:[%s239 + $0xb0] sm:$0xff]
        %v625 = vld [vmem:[%s239 + $0xb8] sm:$0xff]
        %v626 = vld [vmem:[%s239 + $0xc0] sm:$0xff]
        %v627 = vld [vmem:[%s239 + $0xc8] sm:$0xff]
        %v628 = vld [vmem:[%s239 + $0xd0] sm:$0xff]
        %v629 = vld [vmem:[%s239 + $0xd8] sm:$0xff]
        %v630 = vld [vmem:[%s239 + $0xe0] sm:$0xff]
        %v631 = vld [vmem:[%s239 + $0xe8] sm:$0xff]
        %v632 = vld [vmem:[%s239 + $0xf0] sm:$0xff]
        %v633 = vld [vmem:[%s239 + $0xf8] sm:$0xff]
        %v634 = vld [vmem:[%s239 + $0x100] sm:$0xff]
        %v635 = vld [vmem:[%s239 + $0x108] sm:$0xff]
        %v636 = vld [vmem:[%s239 + $0x110] sm:$0xff]
        %v637 = vld [vmem:[%s239 + $0x118] sm:$0xff]
        %v638 = vld [vmem:[%s239 + $0x120] sm:$0xff]
        %v639 = vld [vmem:[%s239 + $0x128] sm:$0xff]
        %v640 = vld [vmem:[%s239 + $0x130] sm:$0xff]
        %v641 = vld [vmem:[%s239 + $0x138] sm:$0xff]
        %v642 = vld [vmem:[%s239 + $0x140] sm:$0xff]
        %v643 = vld [vmem:[%s239 + $0x148] sm:$0xff]
        %v644 = vld [vmem:[%s239 + $0x150] sm:$0xff]
        %v645 = vld [vmem:[%s239 + $0x158] sm:$0xff]
        %v646 = vld [vmem:[%s239 + $0x160] sm:$0xff]
        %v647 = vld [vmem:[%s239 + $0x168] sm:$0xff]
        %v648 = vld [vmem:[%s239 + $0x170] sm:$0xff]
        %v649 = vld [vmem:[%s239 + $0x178] sm:$0xff]
        %v650 = vld [vmem:[%s239 + $0x180] sm:$0xff]
        %v651 = vld [vmem:[%s239 + $0x188] sm:$0xff]
        %v652 = vld [vmem:[%s239 + $0x190] sm:$0xff]
        %v653 = vld [vmem:[%s239 + $0x198] sm:$0xff]
        %v654 = vld [vmem:[%s239 + $0x1a0] sm:$0xff]
        %v655 = vld [vmem:[%s239 + $0x1a8] sm:$0xff]
        %v656 = vld [vmem:[%s239 + $0x1b0] sm:$0xff]
        %v657 = vld [vmem:[%s239 + $0x1b8] sm:$0xff]
        %v658 = vld [vmem:[%s239 + $0x1c0] sm:$0xff]
        %v659 = vld [vmem:[%s239 + $0x1c8] sm:$0xff]
        %v660 = vld [vmem:[%s239 + $0x1d0] sm:$0xff]
        %v661 = vld [vmem:[%s239 + $0x1d8] sm:$0xff]
        %v662 = vld [vmem:[%s239 + $0x1e0] sm:$0xff]
        %v663 = vld [vmem:[%s239 + $0x1e8] sm:$0xff]
        %v664 = vld [vmem:[%s239 + $0x1f0] sm:$0xff]
        %v665 = vld [vmem:[%s239 + $0x1f8] sm:$0xff]
        %v666 = vld [vmem:[%s239 + $0x200] sm:$0xff]
        %v667 = vld [vmem:[%s239 + $0x208] sm:$0xff]
        %v668 = vld [vmem:[%s239 + $0x210] sm:$0xff]
        %v669 = vld [vmem:[%s239 + $0x218] sm:$0xff]
        %v670 = vld [vmem:[%s239 + $0x220] sm:$0xff]
        %v671 = vld [vmem:[%s239 + $0x228] sm:$0xff]
        %v672 = vld [vmem:[%s239 + $0x230] sm:$0xff]
        %v673 = vld [vmem:[%s239 + $0x238] sm:$0xff]
        %v674 = vld [vmem:[%s239 + $0x240] sm:$0xff]
        %v675 = vld [vmem:[%s239 + $0x248] sm:$0xff]
        %v676 = vld [vmem:[%s239 + $0x250] sm:$0xff]
        %v677 = vld [vmem:[%s239 + $0x258] sm:$0xff]
        %v678 = vld [vmem:[%s239 + $0x260] sm:$0xff]
        %v679 = vld [vmem:[%s239 + $0x268] sm:$0xff]
        %v680 = vld [vmem:[%s239 + $0x270] sm:$0xff]
        %v681 = vld [vmem:[%s239 + $0x278] sm:$0xff]
        %v682 = vld [vmem:[#allocation2] sm:$0xff]
        %v683 = vld [vmem:[#allocation2 + $0x8] sm:$0xff]
        %v684 = vld [vmem:[#allocation2 + $0x10] sm:$0xff]
        %v685 = vld [vmem:[#allocation2 + $0x18] sm:$0xff]
        %v686 = vld [vmem:[#allocation2 + $0x20] sm:$0xff]
        %v687 = vld [vmem:[#allocation2 + $0x28] sm:$0xff]
        %v688 = vld [vmem:[#allocation2 + $0x30] sm:$0xff]
        %v689 = vld [vmem:[#allocation2 + $0x38] sm:$0xff]
        %v690 = vld [vmem:[#allocation2 + $0x40] sm:$0xff]
        %v691 = vld [vmem:[#allocation2 + $0x48] sm:$0xff]
        %v692 = vld [vmem:[#allocation2 + $0x50] sm:$0xff]
        %v693 = vld [vmem:[#allocation2 + $0x58] sm:$0xff]
        %v694 = vld [vmem:[#allocation2 + $0x60] sm:$0xff]
        %v695 = vld [vmem:[#allocation2 + $0x68] sm:$0xff]
        %v696 = vld [vmem:[#allocation2 + $0x70] sm:$0xff]
        %v697 = vld [vmem:[#allocation2 + $0x78] sm:$0xff]
        %v698 = vld [vmem:[#allocation2 + $0x80] sm:$0xff]
        %v699 = vld [vmem:[#allocation2 + $0x88] sm:$0xff]
        %v700 = vld [vmem:[#allocation2 + $0x90] sm:$0xff]
        %v701 = vld [vmem:[#allocation2 + $0x98] sm:$0xff]
        %v702 = vld [vmem:[#allocation2 + $0xa0] sm:$0xff]
        %v703 = vld [vmem:[#allocation2 + $0xa8] sm:$0xff]
        %v704 = vld [vmem:[#allocation2 + $0xb0] sm:$0xff]
        %v705 = vld [vmem:[#allocation2 + $0xb8] sm:$0xff]
        %v706 = vld [vmem:[#allocation2 + $0xc0] sm:$0xff]
        %v707 = vld [vmem:[#allocation2 + $0xc8] sm:$0xff]
        %v708 = vld [vmem:[#allocation2 + $0xd0] sm:$0xff]
        %v709 = vld [vmem:[#allocation2 + $0xd8] sm:$0xff]
        %v710 = vld [vmem:[#allocation2 + $0xe0] sm:$0xff]
        %v711 = vld [vmem:[#allocation2 + $0xe8] sm:$0xff]
        %v712 = vld [vmem:[#allocation2 + $0xf0] sm:$0xff]
        %v713 = vld [vmem:[#allocation2 + $0xf8] sm:$0xff]
        %v714 = vld [vmem:[#allocation2 + $0x100] sm:$0xff]
        %v715 = vld [vmem:[#allocation2 + $0x108] sm:$0xff]
        %v716 = vld [vmem:[#allocation2 + $0x110] sm:$0xff]
        %v717 = vld [vmem:[#allocation2 + $0x118] sm:$0xff]
        %v718 = vld [vmem:[#allocation2 + $0x120] sm:$0xff]
        %v719 = vld [vmem:[#allocation2 + $0x128] sm:$0xff]
        %v720 = vld [vmem:[#allocation2 + $0x130] sm:$0xff]
        %v721 = vld [vmem:[#allocation2 + $0x138] sm:$0xff]
        %v722 = vld [vmem:[#allocation2 + $0x140] sm:$0xff]
        %v723 = vld [vmem:[#allocation2 + $0x148] sm:$0xff]
        %v724 = vld [vmem:[#allocation2 + $0x150] sm:$0xff]
        %v725 = vld [vmem:[#allocation2 + $0x158] sm:$0xff]
        %v726 = vld [vmem:[#allocation2 + $0x160] sm:$0xff]
        %v727 = vld [vmem:[#allocation2 + $0x168] sm:$0xff]
        %v728 = vld [vmem:[#allocation2 + $0x170] sm:$0xff]
        %v729 = vld [vmem:[#allocation2 + $0x178] sm:$0xff]
        %v730 = vld [vmem:[#allocation2 + $0x180] sm:$0xff]
        %v731 = vld [vmem:[#allocation2 + $0x188] sm:$0xff]
        %v732 = vld [vmem:[#allocation2 + $0x190] sm:$0xff]
        %v733 = vld [vmem:[#allocation2 + $0x198] sm:$0xff]
        %v734 = vld [vmem:[#allocation2 + $0x1a0] sm:$0xff]
        %v735 = vld [vmem:[#allocation2 + $0x1a8] sm:$0xff]
        %v736 = vld [vmem:[#allocation2 + $0x1b0] sm:$0xff]
        %v737 = vld [vmem:[#allocation2 + $0x1b8] sm:$0xff]
        %v738 = vld [vmem:[#allocation2 + $0x1c0] sm:$0xff]
        %v739 = vld [vmem:[#allocation2 + $0x1c8] sm:$0xff]
        %v740 = vld [vmem:[#allocation2 + $0x1d0] sm:$0xff]
        %v741 = vld [vmem:[#allocation2 + $0x1d8] sm:$0xff]
        %v742 = vld [vmem:[#allocation2 + $0x1e0] sm:$0xff]
        %v743 = vld [vmem:[#allocation2 + $0x1e8] sm:$0xff]
        %v744 = vld [vmem:[#allocation2 + $0x1f0] sm:$0xff]
        %v745 = vld [vmem:[#allocation2 + $0x1f8] sm:$0xff]
        %v746 = vld [vmem:[#allocation2 + $0x200] sm:$0xff]
        %v747 = vld [vmem:[#allocation2 + $0x208] sm:$0xff]
        %v748 = vld [vmem:[#allocation2 + $0x210] sm:$0xff]
        %v749 = vld [vmem:[#allocation2 + $0x218] sm:$0xff]
        %v750 = vld [vmem:[#allocation2 + $0x220] sm:$0xff]
        %v751 = vld [vmem:[#allocation2 + $0x228] sm:$0xff]
        %v752 = vld [vmem:[#allocation2 + $0x230] sm:$0xff]
        %v753 = vld [vmem:[#allocation2 + $0x238] sm:$0xff]
        %v754 = vld [vmem:[#allocation2 + $0x240] sm:$0xff]
        %v755 = vld [vmem:[#allocation2 + $0x248] sm:$0xff]
        %v756 = vld [vmem:[#allocation2 + $0x250] sm:$0xff]
        %v757 = vld [vmem:[#allocation2 + $0x258] sm:$0xff]
        %v758 = vld [vmem:[#allocation2 + $0x260] sm:$0xff]
        %v759 = vld [vmem:[#allocation2 + $0x268] sm:$0xff]
        %v760 = vld [vmem:[#allocation2 + $0x270] sm:$0xff]
        %v761 = vld [vmem:[#allocation2 + $0x278] sm:$0xff]
        %v762 = vld [vmem:[#allocation2 + $0x280] sm:$0xff]
        %v763 = vld [vmem:[#allocation2 + $0x288] sm:$0xff]
        %v764 = vld [vmem:[#allocation2 + $0x290] sm:$0xff]
        %v765 = vld [vmem:[#allocation2 + $0x298] sm:$0xff]
        %v766 = vld [vmem:[#allocation2 + $0x2a0] sm:$0xff]
        %v767 = vld [vmem:[#allocation2 + $0x2a8] sm:$0xff]
        %v768 = vld [vmem:[#allocation2 + $0x2b0] sm:$0xff]
        %v769 = vld [vmem:[#allocation2 + $0x2b8] sm:$0xff]
        %v770 = vld [vmem:[#allocation2 + $0x2c0] sm:$0xff]
        %v771 = vld [vmem:[#allocation2 + $0x2c8] sm:$0xff]
        %v772 = vld [vmem:[#allocation2 + $0x2d0] sm:$0xff]
        %v773 = vld [vmem:[#allocation2 + $0x2d8] sm:$0xff]
        %v774 = vld [vmem:[#allocation2 + $0x2e0] sm:$0xff]
        %v775 = vld [vmem:[#allocation2 + $0x2e8] sm:$0xff]
        %v776 = vld [vmem:[#allocation2 + $0x2f0] sm:$0xff]
        %v777 = vld [vmem:[#allocation2 + $0x2f8] sm:$0xff]
        %v778 = vld [vmem:[#allocation2 + $0x300] sm:$0xff]
        %v779 = vld [vmem:[#allocation2 + $0x308] sm:$0xff]
        %v780 = vld [vmem:[#allocation2 + $0x310] sm:$0xff]
        %v781 = vld [vmem:[#allocation2 + $0x318] sm:$0xff]
        %v782 = vld [vmem:[#allocation2 + $0x320] sm:$0xff]
        %v783 = vld [vmem:[#allocation2 + $0x328] sm:$0xff]
        %v784 = vld [vmem:[#allocation2 + $0x330] sm:$0xff]
        %v785 = vld [vmem:[#allocation2 + $0x338] sm:$0xff]
        %v786 = vld [vmem:[#allocation2 + $0x340] sm:$0xff]
        %v787 = vld [vmem:[#allocation2 + $0x348] sm:$0xff]
        %v788 = vld [vmem:[#allocation2 + $0x350] sm:$0xff]
        %v789 = vld [vmem:[#allocation2 + $0x358] sm:$0xff]
        %v790 = vld [vmem:[#allocation2 + $0x360] sm:$0xff]
        %v791 = vld [vmem:[#allocation2 + $0x368] sm:$0xff]
        %v792 = vld [vmem:[#allocation2 + $0x370] sm:$0xff]
        %v793 = vld [vmem:[#allocation2 + $0x378] sm:$0xff]
        %v794 = vld [vmem:[#allocation2 + $0x380] sm:$0xff]
        %v795 = vld [vmem:[#allocation2 + $0x388] sm:$0xff]
        %v796 = vld [vmem:[#allocation2 + $0x390] sm:$0xff]
        %v797 = vld [vmem:[#allocation2 + $0x398] sm:$0xff]
        %v798 = vld [vmem:[#allocation2 + $0x3a0] sm:$0xff]
        %v799 = vld [vmem:[#allocation2 + $0x3a8] sm:$0xff]
        %v800 = vld [vmem:[#allocation2 + $0x3b0] sm:$0xff]
        %v801 = vld [vmem:[#allocation2 + $0x3b8] sm:$0xff]
        %v802 = vld [vmem:[#allocation2 + $0x3c0] sm:$0xff]
        %v803 = vld [vmem:[#allocation2 + $0x3c8] sm:$0xff]
        %v804 = vld [vmem:[#allocation2 + $0x3d0] sm:$0xff]
        %v805 = vld [vmem:[#allocation2 + $0x3d8] sm:$0xff]
        %v806 = vld [vmem:[#allocation2 + $0x3e0] sm:$0xff]
        %v807 = vld [vmem:[#allocation2 + $0x3e8] sm:$0xff]
        %v808 = vld [vmem:[#allocation2 + $0x3f0] sm:$0xff]
        %v809 = vld [vmem:[#allocation2 + $0x3f8] sm:$0xff]
        %v810 = vld [vmem:[#allocation2 + $0x400] sm:$0xff]
        %v811 = vld [vmem:[#allocation2 + $0x408] sm:$0xff]
        %v812 = vld [vmem:[#allocation2 + $0x410] sm:$0xff]
        %v813 = vld [vmem:[#allocation2 + $0x418] sm:$0xff]
        %v814 = vld [vmem:[#allocation2 + $0x420] sm:$0xff]
        %v815 = vld [vmem:[#allocation2 + $0x428] sm:$0xff]
        %v816 = vld [vmem:[#allocation2 + $0x430] sm:$0xff]
        %v817 = vld [vmem:[#allocation2 + $0x438] sm:$0xff]
        %v818 = vld [vmem:[#allocation2 + $0x440] sm:$0xff]
        %v819 = vld [vmem:[#allocation2 + $0x448] sm:$0xff]
        %v820 = vld [vmem:[#allocation2 + $0x450] sm:$0xff]
        %v821 = vld [vmem:[#allocation2 + $0x458] sm:$0xff]
        %v822 = vld [vmem:[#allocation2 + $0x460] sm:$0xff]
        %v823 = vld [vmem:[#allocation2 + $0x468] sm:$0xff]
        %v824 = vld [vmem:[#allocation2 + $0x470] sm:$0xff]
        %v825 = vld [vmem:[#allocation2 + $0x478] sm:$0xff]
        %v826 = vld [vmem:[#allocation2 + $0x480] sm:$0xff]
        %v827 = vld [vmem:[#allocation2 + $0x488] sm:$0xff]
        %v828 = vld [vmem:[#allocation2 + $0x490] sm:$0xff]
        %v829 = vld [vmem:[#allocation2 + $0x498] sm:$0xff]
        %v830 = vld [vmem:[#allocation2 + $0x4a0] sm:$0xff]
        %v831 = vld [vmem:[#allocation2 + $0x4a8] sm:$0xff]
        %v832 = vld [vmem:[#allocation2 + $0x4b0] sm:$0xff]
        %v833 = vld [vmem:[#allocation2 + $0x4b8] sm:$0xff]
        %v834 = vld [vmem:[#allocation2 + $0x4c0] sm:$0xff]
        %v835 = vld [vmem:[#allocation2 + $0x4c8] sm:$0xff]
        %v836 = vld [vmem:[#allocation2 + $0x4d0] sm:$0xff]
        %v837 = vld [vmem:[#allocation2 + $0x4d8] sm:$0xff]
        %v838 = vld [vmem:[#allocation2 + $0x4e0] sm:$0xff]
        %v839 = vld [vmem:[#allocation2 + $0x4e8] sm:$0xff]
        %v840 = vld [vmem:[#allocation2 + $0x4f0] sm:$0xff]
        %v841 = vld [vmem:[#allocation2 + $0x4f8] sm:$0xff]
        %v842 = vld [vmem:[#allocation7] sm:$0xff]
        %v843 = vld [vmem:[#allocation7 + $0x8] sm:$0xff]
        %v844 = vld [vmem:[#allocation7 + $0x10] sm:$0xff]
        %v845 = vld [vmem:[#allocation7 + $0x18] sm:$0xff]
        %v846 = vld [vmem:[#allocation7 + $0x20] sm:$0xff]
        %v847 = vld [vmem:[#allocation7 + $0x28] sm:$0xff]
        %v848 = vld [vmem:[#allocation7 + $0x30] sm:$0xff]
        %v849 = vld [vmem:[#allocation7 + $0x38] sm:$0xff]
        %v850 = vld [vmem:[#allocation7 + $0x40] sm:$0xff]
        %v851 = vld [vmem:[#allocation7 + $0x48] sm:$0xff]
        %v852 = vld [vmem:[#allocation7 + $0x50] sm:$0xff]
        %v853 = vld [vmem:[#allocation7 + $0x58] sm:$0xff]
        %v854 = vld [vmem:[#allocation7 + $0x60] sm:$0xff]
        %v855 = vld [vmem:[#allocation7 + $0x68] sm:$0xff]
        %v856 = vld [vmem:[#allocation7 + $0x70] sm:$0xff]
        %v857 = vld [vmem:[#allocation7 + $0x78] sm:$0xff]
        %v858 = vld [vmem:[#allocation7 + $0x80] sm:$0xff]
        %v859 = vld [vmem:[#allocation7 + $0x88] sm:$0xff]
        %v860 = vld [vmem:[#allocation7 + $0x90] sm:$0xff]
        %v861 = vld [vmem:[#allocation7 + $0x98] sm:$0xff]
        %v862 = vld [vmem:[#allocation7 + $0xa0] sm:$0xff]
        %v863 = vld [vmem:[#allocation7 + $0xa8] sm:$0xff]
        %v864 = vld [vmem:[#allocation7 + $0xb0] sm:$0xff]
        %v865 = vld [vmem:[#allocation7 + $0xb8] sm:$0xff]
        %v866 = vld [vmem:[#allocation7 + $0xc0] sm:$0xff]
        %v867 = vld [vmem:[#allocation7 + $0xc8] sm:$0xff]
        %v868 = vld [vmem:[#allocation7 + $0xd0] sm:$0xff]
        %v869 = vld [vmem:[#allocation7 + $0xd8] sm:$0xff]
        %v870 = vld [vmem:[#allocation7 + $0xe0] sm:$0xff]
        %v871 = vld [vmem:[#allocation7 + $0xe8] sm:$0xff]
        %v872 = vld [vmem:[#allocation7 + $0xf0] sm:$0xff]
        %v873 = vld [vmem:[#allocation7 + $0xf8] sm:$0xff]
        %v874 = vld [vmem:[#allocation7 + $0x100] sm:$0xff]
        %v875 = vld [vmem:[#allocation7 + $0x108] sm:$0xff]
        %v876 = vld [vmem:[#allocation7 + $0x110] sm:$0xff]
        %v877 = vld [vmem:[#allocation7 + $0x118] sm:$0xff]
        %v878 = vld [vmem:[#allocation7 + $0x120] sm:$0xff]
        %v879 = vld [vmem:[#allocation7 + $0x128] sm:$0xff]
        %v880 = vld [vmem:[#allocation7 + $0x130] sm:$0xff]
        %v881 = vld [vmem:[#allocation7 + $0x138] sm:$0xff]
        %v882 = vld [vmem:[#allocation7 + $0x140] sm:$0xff]
        %v883 = vld [vmem:[#allocation7 + $0x148] sm:$0xff]
        %v884 = vld [vmem:[#allocation7 + $0x150] sm:$0xff]
        %v885 = vld [vmem:[#allocation7 + $0x158] sm:$0xff]
        %v886 = vld [vmem:[#allocation7 + $0x160] sm:$0xff]
        %v887 = vld [vmem:[#allocation7 + $0x168] sm:$0xff]
        %v888 = vld [vmem:[#allocation7 + $0x170] sm:$0xff]
        %v889 = vld [vmem:[#allocation7 + $0x178] sm:$0xff]
        %v890 = vld [vmem:[#allocation7 + $0x180] sm:$0xff]
        %v891 = vld [vmem:[#allocation7 + $0x188] sm:$0xff]
        %v892 = vld [vmem:[#allocation7 + $0x190] sm:$0xff]
        %v893 = vld [vmem:[#allocation7 + $0x198] sm:$0xff]
        %v894 = vld [vmem:[#allocation7 + $0x1a0] sm:$0xff]
        %v895 = vld [vmem:[#allocation7 + $0x1a8] sm:$0xff]
        %v896 = vld [vmem:[#allocation7 + $0x1b0] sm:$0xff]
        %v897 = vld [vmem:[#allocation7 + $0x1b8] sm:$0xff]
        %v898 = vld [vmem:[#allocation7 + $0x1c0] sm:$0xff]
        %v899 = vld [vmem:[#allocation7 + $0x1c8] sm:$0xff]
        %v900 = vld [vmem:[#allocation7 + $0x1d0] sm:$0xff]
        %v901 = vld [vmem:[#allocation7 + $0x1d8] sm:$0xff]
        %v902 = vld [vmem:[#allocation7 + $0x1e0] sm:$0xff]
        %v903 = vld [vmem:[#allocation7 + $0x1e8] sm:$0xff]
        %v904 = vld [vmem:[#allocation7 + $0x1f0] sm:$0xff]
        %v905 = vld [vmem:[#allocation7 + $0x1f8] sm:$0xff]
        %v906 = vld [vmem:[#allocation7 + $0x200] sm:$0xff]
        %v907 = vld [vmem:[#allocation7 + $0x208] sm:$0xff]
        %v908 = vld [vmem:[#allocation7 + $0x210] sm:$0xff]
        %v909 = vld [vmem:[#allocation7 + $0x218] sm:$0xff]
        %v910 = vld [vmem:[#allocation7 + $0x220] sm:$0xff]
        %v911 = vld [vmem:[#allocation7 + $0x228] sm:$0xff]
        %v912 = vld [vmem:[#allocation7 + $0x230] sm:$0xff]
        %v913 = vld [vmem:[#allocation7 + $0x238] sm:$0xff]
        %v914 = vld [vmem:[#allocation7 + $0x240] sm:$0xff]
        %v915 = vld [vmem:[#allocation7 + $0x248] sm:$0xff]
        %v916 = vld [vmem:[#allocation7 + $0x250] sm:$0xff]
        %v917 = vld [vmem:[#allocation7 + $0x258] sm:$0xff]
        %v918 = vld [vmem:[#allocation7 + $0x260] sm:$0xff]
        %v919 = vld [vmem:[#allocation7 + $0x268] sm:$0xff]
        %v920 = vld [vmem:[#allocation7 + $0x270] sm:$0xff]
        %v921 = vld [vmem:[#allocation7 + $0x278] sm:$0xff]
        %v922 = vld [vmem:[#allocation7 + $0x280] sm:$0xff]
        %v923 = vld [vmem:[#allocation7 + $0x288] sm:$0xff]
        %v924 = vld [vmem:[#allocation7 + $0x290] sm:$0xff]
        %v925 = vld [vmem:[#allocation7 + $0x298] sm:$0xff]
        %v926 = vld [vmem:[#allocation7 + $0x2a0] sm:$0xff]
        %v927 = vld [vmem:[#allocation7 + $0x2a8] sm:$0xff]
        %v928 = vld [vmem:[#allocation7 + $0x2b0] sm:$0xff]
        %v929 = vld [vmem:[#allocation7 + $0x2b8] sm:$0xff]
        %v930 = vld [vmem:[#allocation7 + $0x2c0] sm:$0xff]
        %v931 = vld [vmem:[#allocation7 + $0x2c8] sm:$0xff]
        %v932 = vld [vmem:[#allocation7 + $0x2d0] sm:$0xff]
        %v933 = vld [vmem:[#allocation7 + $0x2d8] sm:$0xff]
        %v934 = vld [vmem:[#allocation7 + $0x2e0] sm:$0xff]
        %v935 = vld [vmem:[#allocation7 + $0x2e8] sm:$0xff]
        %v936 = vld [vmem:[#allocation7 + $0x2f0] sm:$0xff]
        %v937 = vld [vmem:[#allocation7 + $0x2f8] sm:$0xff]
        %v938 = vld [vmem:[#allocation7 + $0x300] sm:$0xff]
        %v939 = vld [vmem:[#allocation7 + $0x308] sm:$0xff]
        %v940 = vld [vmem:[#allocation7 + $0x310] sm:$0xff]
        %v941 = vld [vmem:[#allocation7 + $0x318] sm:$0xff]
        %v942 = vld [vmem:[#allocation7 + $0x320] sm:$0xff]
        %v943 = vld [vmem:[#allocation7 + $0x328] sm:$0xff]
        %v944 = vld [vmem:[#allocation7 + $0x330] sm:$0xff]
        %v945 = vld [vmem:[#allocation7 + $0x338] sm:$0xff]
        %v946 = vld [vmem:[#allocation7 + $0x340] sm:$0xff]
        %v947 = vld [vmem:[#allocation7 + $0x348] sm:$0xff]
        %v948 = vld [vmem:[#allocation7 + $0x350] sm:$0xff]
        %v949 = vld [vmem:[#allocation7 + $0x358] sm:$0xff]
        %v950 = vld [vmem:[#allocation7 + $0x360] sm:$0xff]
        %v951 = vld [vmem:[#allocation7 + $0x368] sm:$0xff]
        %v952 = vld [vmem:[#allocation7 + $0x370] sm:$0xff]
        %v953 = vld [vmem:[#allocation7 + $0x378] sm:$0xff]
        %v954 = vld [vmem:[#allocation7 + $0x380] sm:$0xff]
        %v955 = vld [vmem:[#allocation7 + $0x388] sm:$0xff]
        %v956 = vld [vmem:[#allocation7 + $0x390] sm:$0xff]
        %v957 = vld [vmem:[#allocation7 + $0x398] sm:$0xff]
        %v958 = vld [vmem:[#allocation7 + $0x3a0] sm:$0xff]
        %v959 = vld [vmem:[#allocation7 + $0x3a8] sm:$0xff]
        %v960 = vld [vmem:[#allocation7 + $0x3b0] sm:$0xff]
        %v961 = vld [vmem:[#allocation7 + $0x3b8] sm:$0xff]
        %v962 = vld [vmem:[#allocation7 + $0x3c0] sm:$0xff]
        %v963 = vld [vmem:[#allocation7 + $0x3c8] sm:$0xff]
        %v964 = vld [vmem:[#allocation7 + $0x3d0] sm:$0xff]
        %v965 = vld [vmem:[#allocation7 + $0x3d8] sm:$0xff]
        %v966 = vld [vmem:[#allocation7 + $0x3e0] sm:$0xff]
        %v967 = vld [vmem:[#allocation7 + $0x3e8] sm:$0xff]
        %v968 = vld [vmem:[#allocation7 + $0x3f0] sm:$0xff]
        %v969 = vld [vmem:[#allocation7 + $0x3f8] sm:$0xff]
        %970 = vmatprep.subr.mxu0 %v903
        %971 = vmatpush1.msra.mxu0 %v902
        %972 = vmatprep.subr.mxu0 %v899
        %973 = vmatpush1.msra.mxu0 %v898
        %974 = vmatprep.subr.mxu0 %v895
        %975 = vmatpush1.msra.mxu0 %v894
        %976 = vmatprep.subr.mxu0 %v891
        %977 = vmatpush1.msra.mxu0 %v890
        %978 = vmatprep.subr.mxu0 %v887
        %979 = vmatpush1.msra.mxu0 %v886
        %980 = vmatprep.subr.mxu0 %v883
        %981 = vmatpush1.msra.mxu0 %v882
        %982 = vmatprep.subr.mxu0 %v879
        %983 = vmatpush1.msra.mxu0 %v878
        %984 = vmatprep.subr.mxu0 %v875
        %985 = vmatpush1.msra.mxu0 %v874
        %986 = vmatprep.subr.mxu0 %v871
        %987 = vmatpush1.msra.mxu0 %v870
        %988 = vmatprep.subr.mxu0 %v867
        %989 = vmatpush1.msra.mxu0 %v866
        %990 = vmatprep.subr.mxu0 %v863
        %991 = vmatpush1.msra.mxu0 %v862
        %992 = vmatprep.subr.mxu0 %v859
        %993 = vmatpush1.msra.mxu0 %v858
        %994 = vmatprep.subr.mxu0 %v855
        %995 = vmatpush1.msra.mxu0 %v854
        %996 = vmatprep.subr.mxu0 %v851
        %997 = vmatpush1.msra.mxu0 %v850
        %998 = vmatprep.subr.mxu0 %v847
        %999 = vmatpush1.msra.mxu0 %v846
        %1000 = vmatprep.subr.mxu0 %v843
        %1001 = vmatpush1.msra.mxu0 %v842
        %1002 = vmatprep.subr.mxu0 %v967
        %1003 = vmatpush2.msra.mxu0 %v966
        %1004 = vmatprep.subr.mxu0 %v963
        %1005 = vmatpush2.msra.mxu0 %v962
        %1006 = vmatprep.subr.mxu0 %v959
        %1007 = vmatpush2.msra.mxu0 %v958
        %1008 = vmatprep.subr.mxu0 %v955
        %1009 = vmatpush2.msra.mxu0 %v954
        %1010 = vmatprep.subr.mxu0 %v951
        %1011 = vmatpush2.msra.mxu0 %v950
        %1012 = vmatprep.subr.mxu0 %v947
        %1013 = vmatpush2.msra.mxu0 %v946
        %1014 = vmatprep.subr.mxu0 %v943
        %1015 = vmatpush2.msra.mxu0 %v942
        %1016 = vmatprep.subr.mxu0 %v939
        %1017 = vmatpush2.msra.mxu0 %v938
        %1018 = vmatprep.subr.mxu0 %v935
        %1019 = vmatpush2.msra.mxu0 %v934
        %1020 = vmatprep.subr.mxu0 %v931
        %1021 = vmatpush2.msra.mxu0 %v930
        %1022 = vmatprep.subr.mxu0 %v927
        %1023 = vmatpush2.msra.mxu0 %v926
        %1024 = vmatprep.subr.mxu0 %v923
        %1025 = vmatpush2.msra.mxu0 %v922
        %1026 = vmatprep.subr.mxu0 %v919
        %1027 = vmatpush2.msra.mxu0 %v918
        %1028 = vmatprep.subr.mxu0 %v915
        %1029 = vmatpush2.msra.mxu0 %v914
        %1030 = vmatprep.subr.mxu0 %v911
        %1031 = vmatpush2.msra.mxu0 %v910
        %1032 = vmatprep.subr.mxu0 %v907
        %1033 = vmatpush2.msra.mxu0 %v906
        %1034 = vmatprep.mubr.f32.mxu0 %v603
        %1035 = vmatmul.mubr.f32.gmra.mxu0 %v602
        %v1036 = vpop.f32.mrf.mxu0
        %v1037 = vadd.f32 0.0, %v1036
        %v1038 = vpop.f32.mrf.mxu0
        %v1039 = vadd.f32 0.0, %v1038
        %1040 = vmatprep.mubr.f32.mxu0 %v605
        %1041 = vmatmul.mubr.f32.gmra.mxu0 %v604
        %v1042 = vpop.f32.mrf.mxu0
        %v1043 = vadd.f32 0.0, %v1042
        %v1044 = vpop.f32.mrf.mxu0
        %v1045 = vadd.f32 0.0, %v1044
        %1046 = vmatprep.mubr.f32.mxu0 %v607
        %1047 = vmatmul.mubr.f32.gmra.mxu0 %v606
        %v1048 = vpop.f32.mrf.mxu0
        %v1049 = vadd.f32 0.0, %v1048
        %v1050 = vpop.f32.mrf.mxu0
        %v1051 = vadd.f32 0.0, %v1050
        %1052 = vmatprep.mubr.f32.mxu0 %v609
        %1053 = vmatmul.mubr.f32.gmra.mxu0 %v608
        %v1054 = vpop.f32.mrf.mxu0
        %v1055 = vadd.f32 0.0, %v1054
        %v1056 = vpop.f32.mrf.mxu0
        %v1057 = vadd.f32 0.0, %v1056
        %1058 = vmatprep.mubr.f32.mxu0 %v611
        %1059 = vmatmul.mubr.f32.gmra.mxu0 %v610
        %v1060 = vpop.f32.mrf.mxu0
        %v1061 = vadd.f32 0.0, %v1060
        %v1062 = vpop.f32.mrf.mxu0
        %v1063 = vadd.f32 0.0, %v1062
        %1064 = vmatprep.mubr.f32.mxu0 %v613
        %1065 = vmatmul.mubr.f32.gmra.mxu0 %v612
        %v1066 = vpop.f32.mrf.mxu0
        %v1067 = vadd.f32 0.0, %v1066
        %v1068 = vpop.f32.mrf.mxu0
        %v1069 = vadd.f32 0.0, %v1068
        %1070 = vmatprep.mubr.f32.mxu0 %v615
        %1071 = vmatmul.mubr.f32.gmra.mxu0 %v614
        %v1072 = vpop.f32.mrf.mxu0
        %v1073 = vadd.f32 0.0, %v1072
        %v1074 = vpop.f32.mrf.mxu0
        %v1075 = vadd.f32 0.0, %v1074
        %1076 = vmatprep.mubr.f32.mxu0 %v617
        %1077 = vmatmul.mubr.f32.gmra.mxu0 %v616
        %v1078 = vpop.f32.mrf.mxu0
        %v1079 = vadd.f32 0.0, %v1078
        %v1080 = vpop.f32.mrf.mxu0
        %v1081 = vadd.f32 0.0, %v1080
        %1082 = vmatprep.mubr.f32.mxu0 %v619
        %1083 = vmatmul.mubr.f32.gmra.mxu0 %v618
        %v1084 = vpop.f32.mrf.mxu0
        %v1085 = vadd.f32 0.0, %v1084
        %v1086 = vpop.f32.mrf.mxu0
        %v1087 = vadd.f32 0.0, %v1086
        %1088 = vmatprep.mubr.f32.mxu0 %v621
        %1089 = vmatmul.mubr.f32.gmra.mxu0 %v620
        %v1090 = vpop.f32.mrf.mxu0
        %v1091 = vadd.f32 0.0, %v1090
        %v1092 = vpop.f32.mrf.mxu0
        %v1093 = vadd.f32 0.0, %v1092
        %1094 = vmatprep.mubr.f32.mxu0 %v623
        %1095 = vmatmul.mubr.f32.gmra.mxu0 %v622
        %v1096 = vpop.f32.mrf.mxu0
        %v1097 = vadd.f32 0.0, %v1096
        %v1098 = vpop.f32.mrf.mxu0
        %v1099 = vadd.f32 0.0, %v1098
        %1100 = vmatprep.mubr.f32.mxu0 %v625
        %1101 = vmatmul.mubr.f32.gmra.mxu0 %v624
        %v1102 = vpop.f32.mrf.mxu0
        %v1103 = vadd.f32 0.0, %v1102
        %v1104 = vpop.f32.mrf.mxu0
        %v1105 = vadd.f32 0.0, %v1104
        %1106 = vmatprep.mubr.f32.mxu0 %v627
        %1107 = vmatmul.mubr.f32.gmra.mxu0 %v626
        %v1108 = vpop.f32.mrf.mxu0
        %v1109 = vadd.f32 0.0, %v1108
        %v1110 = vpop.f32.mrf.mxu0
        %v1111 = vadd.f32 0.0, %v1110
        %1112 = vmatprep.mubr.f32.mxu0 %v629
        %1113 = vmatmul.mubr.f32.gmra.mxu0 %v628
        %v1114 = vpop.f32.mrf.mxu0
        %v1115 = vadd.f32 0.0, %v1114
        %v1116 = vpop.f32.mrf.mxu0
        %v1117 = vadd.f32 0.0, %v1116
        %1118 = vmatprep.mubr.f32.mxu0 %v631
        %1119 = vmatmul.mubr.f32.gmra.mxu0 %v630
        %v1120 = vpop.f32.mrf.mxu0
        %v1121 = vadd.f32 0.0, %v1120
        %v1122 = vpop.f32.mrf.mxu0
        %v1123 = vadd.f32 0.0, %v1122
        %1124 = vmatprep.mubr.f32.mxu0 %v633
        %1125 = vmatmul.mubr.f32.gmra.mxu0 %v632
        %v1126 = vpop.f32.mrf.mxu0
        %v1127 = vadd.f32 0.0, %v1126
        %v1128 = vpop.f32.mrf.mxu0
        %v1129 = vadd.f32 0.0, %v1128
        %1130 = vmatprep.mubr.f32.mxu0 %v635
        %1131 = vmatmul.mubr.f32.gmra.mxu0 %v634
        %v1132 = vpop.f32.mrf.mxu0
        %v1133 = vadd.f32 0.0, %v1132
        %v1134 = vpop.f32.mrf.mxu0
        %v1135 = vadd.f32 0.0, %v1134
        %1136 = vmatprep.mubr.f32.mxu0 %v637
        %1137 = vmatmul.mubr.f32.gmra.mxu0 %v636
        %v1138 = vpop.f32.mrf.mxu0
        %v1139 = vadd.f32 0.0, %v1138
        %v1140 = vpop.f32.mrf.mxu0
        %v1141 = vadd.f32 0.0, %v1140
        %1142 = vmatprep.mubr.f32.mxu0 %v639
        %1143 = vmatmul.mubr.f32.gmra.mxu0 %v638
        %v1144 = vpop.f32.mrf.mxu0
        %v1145 = vadd.f32 0.0, %v1144
        %v1146 = vpop.f32.mrf.mxu0
        %v1147 = vadd.f32 0.0, %v1146
        %1148 = vmatprep.mubr.f32.mxu0 %v641
        %1149 = vmatmul.mubr.f32.gmra.mxu0 %v640
        %v1150 = vpop.f32.mrf.mxu0
        %v1151 = vadd.f32 0.0, %v1150
        %v1152 = vpop.f32.mrf.mxu0
        %v1153 = vadd.f32 0.0, %v1152
        %1154 = vmatprep.mubr.f32.mxu0 %v643
        %1155 = vmatmul.mubr.f32.gmra.mxu0 %v642
        %v1156 = vpop.f32.mrf.mxu0
        %v1157 = vadd.f32 0.0, %v1156
        %v1158 = vpop.f32.mrf.mxu0
        %v1159 = vadd.f32 0.0, %v1158
        %1160 = vmatprep.mubr.f32.mxu0 %v645
        %1161 = vmatmul.mubr.f32.gmra.mxu0 %v644
        %v1162 = vpop.f32.mrf.mxu0
        %v1163 = vadd.f32 0.0, %v1162
        %v1164 = vpop.f32.mrf.mxu0
        %v1165 = vadd.f32 0.0, %v1164
        %1166 = vmatprep.mubr.f32.mxu0 %v647
        %1167 = vmatmul.mubr.f32.gmra.mxu0 %v646
        %v1168 = vpop.f32.mrf.mxu0
        %v1169 = vadd.f32 0.0, %v1168
        %v1170 = vpop.f32.mrf.mxu0
        %v1171 = vadd.f32 0.0, %v1170
        %1172 = vmatprep.mubr.f32.mxu0 %v649
        %1173 = vmatmul.mubr.f32.gmra.mxu0 %v648
        %v1174 = vpop.f32.mrf.mxu0
        %v1175 = vadd.f32 0.0, %v1174
        %v1176 = vpop.f32.mrf.mxu0
        %v1177 = vadd.f32 0.0, %v1176
        %1178 = vmatprep.mubr.f32.mxu0 %v651
        %1179 = vmatmul.mubr.f32.gmra.mxu0 %v650
        %v1180 = vpop.f32.mrf.mxu0
        %v1181 = vadd.f32 0.0, %v1180
        %v1182 = vpop.f32.mrf.mxu0
        %v1183 = vadd.f32 0.0, %v1182
        %1184 = vmatprep.mubr.f32.mxu0 %v653
        %1185 = vmatmul.mubr.f32.gmra.mxu0 %v652
        %v1186 = vpop.f32.mrf.mxu0
        %v1187 = vadd.f32 0.0, %v1186
        %v1188 = vpop.f32.mrf.mxu0
        %v1189 = vadd.f32 0.0, %v1188
        %1190 = vmatprep.mubr.f32.mxu0 %v655
        %1191 = vmatmul.mubr.f32.gmra.mxu0 %v654
        %v1192 = vpop.f32.mrf.mxu0
        %v1193 = vadd.f32 0.0, %v1192
        %v1194 = vpop.f32.mrf.mxu0
        %v1195 = vadd.f32 0.0, %v1194
        %1196 = vmatprep.mubr.f32.mxu0 %v657
        %1197 = vmatmul.mubr.f32.gmra.mxu0 %v656
        %v1198 = vpop.f32.mrf.mxu0
        %v1199 = vadd.f32 0.0, %v1198
        %v1200 = vpop.f32.mrf.mxu0
        %v1201 = vadd.f32 0.0, %v1200
        %1202 = vmatprep.mubr.f32.mxu0 %v659
        %1203 = vmatmul.mubr.f32.gmra.mxu0 %v658
        %v1204 = vpop.f32.mrf.mxu0
        %v1205 = vadd.f32 0.0, %v1204
        %v1206 = vpop.f32.mrf.mxu0
        %v1207 = vadd.f32 0.0, %v1206
        %1208 = vmatprep.mubr.f32.mxu0 %v661
        %1209 = vmatmul.mubr.f32.gmra.mxu0 %v660
        %v1210 = vpop.f32.mrf.mxu0
        %v1211 = vadd.f32 0.0, %v1210
        %v1212 = vpop.f32.mrf.mxu0
        %v1213 = vadd.f32 0.0, %v1212
        %1214 = vmatprep.mubr.f32.mxu0 %v663
        %1215 = vmatmul.mubr.f32.gmra.mxu0 %v662
        %v1216 = vpop.f32.mrf.mxu0
        %v1217 = vadd.f32 0.0, %v1216
        %v1218 = vpop.f32.mrf.mxu0
        %v1219 = vadd.f32 0.0, %v1218
        %1220 = vmatprep.mubr.f32.mxu0 %v665
        %1221 = vmatmul.mubr.f32.gmra.mxu0 %v664
        %v1222 = vpop.f32.mrf.mxu0
        %v1223 = vadd.f32 0.0, %v1222
        %v1224 = vpop.f32.mrf.mxu0
        %v1225 = vadd.f32 0.0, %v1224
        %1226 = vmatprep.mubr.f32.mxu0 %v667
        %1227 = vmatmul.mubr.f32.gmra.mxu0 %v666
        %v1228 = vpop.f32.mrf.mxu0
        %v1229 = vadd.f32 0.0, %v1228
        %v1230 = vpop.f32.mrf.mxu0
        %v1231 = vadd.f32 0.0, %v1230
        %1232 = vmatprep.mubr.f32.mxu0 %v669
        %1233 = vmatmul.mubr.f32.gmra.mxu0 %v668
        %v1234 = vpop.f32.mrf.mxu0
        %v1235 = vadd.f32 0.0, %v1234
        %v1236 = vpop.f32.mrf.mxu0
        %v1237 = vadd.f32 0.0, %v1236
        %1238 = vmatprep.mubr.f32.mxu0 %v671
        %1239 = vmatmul.mubr.f32.gmra.mxu0 %v670
        %v1240 = vpop.f32.mrf.mxu0
        %v1241 = vadd.f32 0.0, %v1240
        %v1242 = vpop.f32.mrf.mxu0
        %v1243 = vadd.f32 0.0, %v1242
        %1244 = vmatprep.mubr.f32.mxu0 %v673
        %1245 = vmatmul.mubr.f32.gmra.mxu0 %v672
        %v1246 = vpop.f32.mrf.mxu0
        %v1247 = vadd.f32 0.0, %v1246
        %v1248 = vpop.f32.mrf.mxu0
        %v1249 = vadd.f32 0.0, %v1248
        %1250 = vmatprep.mubr.f32.mxu0 %v675
        %1251 = vmatmul.mubr.f32.gmra.mxu0 %v674
        %v1252 = vpop.f32.mrf.mxu0
        %v1253 = vadd.f32 0.0, %v1252
        %v1254 = vpop.f32.mrf.mxu0
        %v1255 = vadd.f32 0.0, %v1254
        %1256 = vmatprep.mubr.f32.mxu0 %v677
        %1257 = vmatmul.mubr.f32.gmra.mxu0 %v676
        %v1258 = vpop.f32.mrf.mxu0
        %v1259 = vadd.f32 0.0, %v1258
        %v1260 = vpop.f32.mrf.mxu0
        %v1261 = vadd.f32 0.0, %v1260
        %1262 = vmatprep.mubr.f32.mxu0 %v679
        %1263 = vmatmul.mubr.f32.gmra.mxu0 %v678
        %v1264 = vpop.f32.mrf.mxu0
        %v1265 = vadd.f32 0.0, %v1264
        %v1266 = vpop.f32.mrf.mxu0
        %v1267 = vadd.f32 0.0, %v1266
        %1268 = vmatprep.mubr.f32.mxu0 %v681
        %1269 = vmatmul.mubr.f32.gmra.mxu0 %v680
        %v1270 = vpop.f32.mrf.mxu0
        %v1271 = vadd.f32 0.0, %v1270
        %v1272 = vpop.f32.mrf.mxu0
        %v1273 = vadd.f32 0.0, %v1272
        %1274 = vdwg.mxu0
        %1275 = vmatprep.subr.mxu0 %v905
        %1276 = vmatpush1.msra.mxu0 %v904
        %1277 = vmatprep.subr.mxu0 %v901
        %1278 = vmatpush1.msra.mxu0 %v900
        %1279 = vmatprep.subr.mxu0 %v897
        %1280 = vmatpush1.msra.mxu0 %v896
        %1281 = vmatprep.subr.mxu0 %v893
        %1282 = vmatpush1.msra.mxu0 %v892
        %1283 = vmatprep.subr.mxu0 %v889
        %1284 = vmatpush1.msra.mxu0 %v888
        %1285 = vmatprep.subr.mxu0 %v885
        %1286 = vmatpush1.msra.mxu0 %v884
        %1287 = vmatprep.subr.mxu0 %v881
        %1288 = vmatpush1.msra.mxu0 %v880
        %1289 = vmatprep.subr.mxu0 %v877
        %1290 = vmatpush1.msra.mxu0 %v876
        %1291 = vmatprep.subr.mxu0 %v873
        %1292 = vmatpush1.msra.mxu0 %v872
        %1293 = vmatprep.subr.mxu0 %v869
        %1294 = vmatpush1.msra.mxu0 %v868
        %1295 = vmatprep.subr.mxu0 %v865
        %1296 = vmatpush1.msra.mxu0 %v864
        %1297 = vmatprep.subr.mxu0 %v861
        %1298 = vmatpush1.msra.mxu0 %v860
        %1299 = vmatprep.subr.mxu0 %v857
        %1300 = vmatpush1.msra.mxu0 %v856
        %1301 = vmatprep.subr.mxu0 %v853
        %1302 = vmatpush1.msra.mxu0 %v852
        %1303 = vmatprep.subr.mxu0 %v849
        %1304 = vmatpush1.msra.mxu0 %v848
        %1305 = vmatprep.subr.mxu0 %v845
        %1306 = vmatpush1.msra.mxu0 %v844
        %1307 = vmatprep.subr.mxu0 %v969
        %1308 = vmatpush2.msra.mxu0 %v968
        %1309 = vmatprep.subr.mxu0 %v965
        %1310 = vmatpush2.msra.mxu0 %v964
        %1311 = vmatprep.subr.mxu0 %v961
        %1312 = vmatpush2.msra.mxu0 %v960
        %1313 = vmatprep.subr.mxu0 %v957
        %1314 = vmatpush2.msra.mxu0 %v956
        %1315 = vmatprep.subr.mxu0 %v953
        %1316 = vmatpush2.msra.mxu0 %v952
        %1317 = vmatprep.subr.mxu0 %v949
        %1318 = vmatpush2.msra.mxu0 %v948
        %1319 = vmatprep.subr.mxu0 %v945
        %1320 = vmatpush2.msra.mxu0 %v944
        %1321 = vmatprep.subr.mxu0 %v941
        %1322 = vmatpush2.msra.mxu0 %v940
        %1323 = vmatprep.subr.mxu0 %v937
        %1324 = vmatpush2.msra.mxu0 %v936
        %1325 = vmatprep.subr.mxu0 %v933
        %1326 = vmatpush2.msra.mxu0 %v932
        %1327 = vmatprep.subr.mxu0 %v929
        %1328 = vmatpush2.msra.mxu0 %v928
        %1329 = vmatprep.subr.mxu0 %v925
        %1330 = vmatpush2.msra.mxu0 %v924
        %1331 = vmatprep.subr.mxu0 %v921
        %1332 = vmatpush2.msra.mxu0 %v920
        %1333 = vmatprep.subr.mxu0 %v917
        %1334 = vmatpush2.msra.mxu0 %v916
        %1335 = vmatprep.subr.mxu0 %v913
        %1336 = vmatpush2.msra.mxu0 %v912
        %1337 = vmatprep.subr.mxu0 %v909
        %1338 = vmatpush2.msra.mxu0 %v908
        %1339 = vmatprep.mubr.f32.mxu0 %v603
        %1340 = vmatmul.mubr.f32.gmra.mxu0 %v602
        %v1341 = vpop.f32.mrf.mxu0
        %v1342 = vadd.f32 0.0, %v1341
        %v1343 = vpop.f32.mrf.mxu0
        %v1344 = vadd.f32 0.0, %v1343
        %1345 = vmatprep.mubr.f32.mxu0 %v605
        %1346 = vmatmul.mubr.f32.gmra.mxu0 %v604
        %v1347 = vpop.f32.mrf.mxu0
        %v1348 = vadd.f32 0.0, %v1347
        %v1349 = vpop.f32.mrf.mxu0
        %v1350 = vadd.f32 0.0, %v1349
        %1351 = vmatprep.mubr.f32.mxu0 %v607
        %1352 = vmatmul.mubr.f32.gmra.mxu0 %v606
        %v1353 = vpop.f32.mrf.mxu0
        %v1354 = vadd.f32 0.0, %v1353
        %v1355 = vpop.f32.mrf.mxu0
        %v1356 = vadd.f32 0.0, %v1355
        %1357 = vmatprep.mubr.f32.mxu0 %v609
        %1358 = vmatmul.mubr.f32.gmra.mxu0 %v608
        %v1359 = vpop.f32.mrf.mxu0
        %v1360 = vadd.f32 0.0, %v1359
        %v1361 = vpop.f32.mrf.mxu0
        %v1362 = vadd.f32 0.0, %v1361
        %1363 = vmatprep.mubr.f32.mxu0 %v611
        %1364 = vmatmul.mubr.f32.gmra.mxu0 %v610
        %v1365 = vpop.f32.mrf.mxu0
        %v1366 = vadd.f32 0.0, %v1365
        %v1367 = vpop.f32.mrf.mxu0
        %v1368 = vadd.f32 0.0, %v1367
        %1369 = vmatprep.mubr.f32.mxu0 %v613
        %1370 = vmatmul.mubr.f32.gmra.mxu0 %v612
        %v1371 = vpop.f32.mrf.mxu0
        %v1372 = vadd.f32 0.0, %v1371
        %v1373 = vpop.f32.mrf.mxu0
        %v1374 = vadd.f32 0.0, %v1373
        %1375 = vmatprep.mubr.f32.mxu0 %v615
        %1376 = vmatmul.mubr.f32.gmra.mxu0 %v614
        %v1377 = vpop.f32.mrf.mxu0
        %v1378 = vadd.f32 0.0, %v1377
        %v1379 = vpop.f32.mrf.mxu0
        %v1380 = vadd.f32 0.0, %v1379
        %1381 = vmatprep.mubr.f32.mxu0 %v617
        %1382 = vmatmul.mubr.f32.gmra.mxu0 %v616
        %v1383 = vpop.f32.mrf.mxu0
        %v1384 = vadd.f32 0.0, %v1383
        %v1385 = vpop.f32.mrf.mxu0
        %v1386 = vadd.f32 0.0, %v1385
        %1387 = vmatprep.mubr.f32.mxu0 %v619
        %1388 = vmatmul.mubr.f32.gmra.mxu0 %v618
        %v1389 = vpop.f32.mrf.mxu0
        %v1390 = vadd.f32 0.0, %v1389
        %v1391 = vpop.f32.mrf.mxu0
        %v1392 = vadd.f32 0.0, %v1391
        %1393 = vmatprep.mubr.f32.mxu0 %v621
        %1394 = vmatmul.mubr.f32.gmra.mxu0 %v620
        %v1395 = vpop.f32.mrf.mxu0
        %v1396 = vadd.f32 0.0, %v1395
        %v1397 = vpop.f32.mrf.mxu0
        %v1398 = vadd.f32 0.0, %v1397
        %1399 = vmatprep.mubr.f32.mxu0 %v623
        %1400 = vmatmul.mubr.f32.gmra.mxu0 %v622
        %v1401 = vpop.f32.mrf.mxu0
        %v1402 = vadd.f32 0.0, %v1401
        %v1403 = vpop.f32.mrf.mxu0
        %v1404 = vadd.f32 0.0, %v1403
        %1405 = vmatprep.mubr.f32.mxu0 %v625
        %1406 = vmatmul.mubr.f32.gmra.mxu0 %v624
        %v1407 = vpop.f32.mrf.mxu0
        %v1408 = vadd.f32 0.0, %v1407
        %v1409 = vpop.f32.mrf.mxu0
        %v1410 = vadd.f32 0.0, %v1409
        %1411 = vmatprep.mubr.f32.mxu0 %v627
        %1412 = vmatmul.mubr.f32.gmra.mxu0 %v626
        %v1413 = vpop.f32.mrf.mxu0
        %v1414 = vadd.f32 0.0, %v1413
        %v1415 = vpop.f32.mrf.mxu0
        %v1416 = vadd.f32 0.0, %v1415
        %1417 = vmatprep.mubr.f32.mxu0 %v629
        %1418 = vmatmul.mubr.f32.gmra.mxu0 %v628
        %v1419 = vpop.f32.mrf.mxu0
        %v1420 = vadd.f32 0.0, %v1419
        %v1421 = vpop.f32.mrf.mxu0
        %v1422 = vadd.f32 0.0, %v1421
        %1423 = vmatprep.mubr.f32.mxu0 %v631
        %1424 = vmatmul.mubr.f32.gmra.mxu0 %v630
        %v1425 = vpop.f32.mrf.mxu0
        %v1426 = vadd.f32 0.0, %v1425
        %v1427 = vpop.f32.mrf.mxu0
        %v1428 = vadd.f32 0.0, %v1427
        %1429 = vmatprep.mubr.f32.mxu0 %v633
        %1430 = vmatmul.mubr.f32.gmra.mxu0 %v632
        %v1431 = vpop.f32.mrf.mxu0
        %v1432 = vadd.f32 0.0, %v1431
        %v1433 = vpop.f32.mrf.mxu0
        %v1434 = vadd.f32 0.0, %v1433
        %1435 = vmatprep.mubr.f32.mxu0 %v635
        %1436 = vmatmul.mubr.f32.gmra.mxu0 %v634
        %v1437 = vpop.f32.mrf.mxu0
        %v1438 = vadd.f32 0.0, %v1437
        %v1439 = vpop.f32.mrf.mxu0
        %v1440 = vadd.f32 0.0, %v1439
        %1441 = vmatprep.mubr.f32.mxu0 %v637
        %1442 = vmatmul.mubr.f32.gmra.mxu0 %v636
        %v1443 = vpop.f32.mrf.mxu0
        %v1444 = vadd.f32 0.0, %v1443
        %v1445 = vpop.f32.mrf.mxu0
        %v1446 = vadd.f32 0.0, %v1445
        %1447 = vmatprep.mubr.f32.mxu0 %v639
        %1448 = vmatmul.mubr.f32.gmra.mxu0 %v638
        %v1449 = vpop.f32.mrf.mxu0
        %v1450 = vadd.f32 0.0, %v1449
        %v1451 = vpop.f32.mrf.mxu0
        %v1452 = vadd.f32 0.0, %v1451
        %1453 = vmatprep.mubr.f32.mxu0 %v641
        %1454 = vmatmul.mubr.f32.gmra.mxu0 %v640
        %v1455 = vpop.f32.mrf.mxu0
        %v1456 = vadd.f32 0.0, %v1455
        %v1457 = vpop.f32.mrf.mxu0
        %v1458 = vadd.f32 0.0, %v1457
        %1459 = vmatprep.mubr.f32.mxu0 %v643
        %1460 = vmatmul.mubr.f32.gmra.mxu0 %v642
        %v1461 = vpop.f32.mrf.mxu0
        %v1462 = vadd.f32 0.0, %v1461
        %v1463 = vpop.f32.mrf.mxu0
        %v1464 = vadd.f32 0.0, %v1463
        %1465 = vmatprep.mubr.f32.mxu0 %v645
        %1466 = vmatmul.mubr.f32.gmra.mxu0 %v644
        %v1467 = vpop.f32.mrf.mxu0
        %v1468 = vadd.f32 0.0, %v1467
        %v1469 = vpop.f32.mrf.mxu0
        %v1470 = vadd.f32 0.0, %v1469
        %1471 = vmatprep.mubr.f32.mxu0 %v647
        %1472 = vmatmul.mubr.f32.gmra.mxu0 %v646
        %v1473 = vpop.f32.mrf.mxu0
        %v1474 = vadd.f32 0.0, %v1473
        %v1475 = vpop.f32.mrf.mxu0
        %v1476 = vadd.f32 0.0, %v1475
        %1477 = vmatprep.mubr.f32.mxu0 %v649
        %1478 = vmatmul.mubr.f32.gmra.mxu0 %v648
        %v1479 = vpop.f32.mrf.mxu0
        %v1480 = vadd.f32 0.0, %v1479
        %v1481 = vpop.f32.mrf.mxu0
        %v1482 = vadd.f32 0.0, %v1481
        %1483 = vmatprep.mubr.f32.mxu0 %v651
        %1484 = vmatmul.mubr.f32.gmra.mxu0 %v650
        %v1485 = vpop.f32.mrf.mxu0
        %v1486 = vadd.f32 0.0, %v1485
        %v1487 = vpop.f32.mrf.mxu0
        %v1488 = vadd.f32 0.0, %v1487
        %1489 = vmatprep.mubr.f32.mxu0 %v653
        %1490 = vmatmul.mubr.f32.gmra.mxu0 %v652
        %v1491 = vpop.f32.mrf.mxu0
        %v1492 = vadd.f32 0.0, %v1491
        %v1493 = vpop.f32.mrf.mxu0
        %v1494 = vadd.f32 0.0, %v1493
        %1495 = vmatprep.mubr.f32.mxu0 %v655
        %1496 = vmatmul.mubr.f32.gmra.mxu0 %v654
        %v1497 = vpop.f32.mrf.mxu0
        %v1498 = vadd.f32 0.0, %v1497
        %v1499 = vpop.f32.mrf.mxu0
        %v1500 = vadd.f32 0.0, %v1499
        %1501 = vmatprep.mubr.f32.mxu0 %v657
        %1502 = vmatmul.mubr.f32.gmra.mxu0 %v656
        %v1503 = vpop.f32.mrf.mxu0
        %v1504 = vadd.f32 0.0, %v1503
        %v1505 = vpop.f32.mrf.mxu0
        %v1506 = vadd.f32 0.0, %v1505
        %1507 = vmatprep.mubr.f32.mxu0 %v659
        %1508 = vmatmul.mubr.f32.gmra.mxu0 %v658
        %v1509 = vpop.f32.mrf.mxu0
        %v1510 = vadd.f32 0.0, %v1509
        %v1511 = vpop.f32.mrf.mxu0
        %v1512 = vadd.f32 0.0, %v1511
        %1513 = vmatprep.mubr.f32.mxu0 %v661
        %1514 = vmatmul.mubr.f32.gmra.mxu0 %v660
        %v1515 = vpop.f32.mrf.mxu0
        %v1516 = vadd.f32 0.0, %v1515
        %v1517 = vpop.f32.mrf.mxu0
        %v1518 = vadd.f32 0.0, %v1517
        %1519 = vmatprep.mubr.f32.mxu0 %v663
        %1520 = vmatmul.mubr.f32.gmra.mxu0 %v662
        %v1521 = vpop.f32.mrf.mxu0
        %v1522 = vadd.f32 0.0, %v1521
        %v1523 = vpop.f32.mrf.mxu0
        %v1524 = vadd.f32 0.0, %v1523
        %1525 = vmatprep.mubr.f32.mxu0 %v665
        %1526 = vmatmul.mubr.f32.gmra.mxu0 %v664
        %v1527 = vpop.f32.mrf.mxu0
        %v1528 = vadd.f32 0.0, %v1527
        %v1529 = vpop.f32.mrf.mxu0
        %v1530 = vadd.f32 0.0, %v1529
        %1531 = vmatprep.mubr.f32.mxu0 %v667
        %1532 = vmatmul.mubr.f32.gmra.mxu0 %v666
        %v1533 = vpop.f32.mrf.mxu0
        %v1534 = vadd.f32 0.0, %v1533
        %v1535 = vpop.f32.mrf.mxu0
        %v1536 = vadd.f32 0.0, %v1535
        %1537 = vmatprep.mubr.f32.mxu0 %v669
        %1538 = vmatmul.mubr.f32.gmra.mxu0 %v668
        %v1539 = vpop.f32.mrf.mxu0
        %v1540 = vadd.f32 0.0, %v1539
        %v1541 = vpop.f32.mrf.mxu0
        %v1542 = vadd.f32 0.0, %v1541
        %1543 = vmatprep.mubr.f32.mxu0 %v671
        %1544 = vmatmul.mubr.f32.gmra.mxu0 %v670
        %v1545 = vpop.f32.mrf.mxu0
        %v1546 = vadd.f32 0.0, %v1545
        %v1547 = vpop.f32.mrf.mxu0
        %v1548 = vadd.f32 0.0, %v1547
        %1549 = vmatprep.mubr.f32.mxu0 %v673
        %1550 = vmatmul.mubr.f32.gmra.mxu0 %v672
        %v1551 = vpop.f32.mrf.mxu0
        %v1552 = vadd.f32 0.0, %v1551
        %v1553 = vpop.f32.mrf.mxu0
        %v1554 = vadd.f32 0.0, %v1553
        %1555 = vmatprep.mubr.f32.mxu0 %v675
        %1556 = vmatmul.mubr.f32.gmra.mxu0 %v674
        %v1557 = vpop.f32.mrf.mxu0
        %v1558 = vadd.f32 0.0, %v1557
        %v1559 = vpop.f32.mrf.mxu0
        %v1560 = vadd.f32 0.0, %v1559
        %1561 = vmatprep.mubr.f32.mxu0 %v677
        %1562 = vmatmul.mubr.f32.gmra.mxu0 %v676
        %v1563 = vpop.f32.mrf.mxu0
        %v1564 = vadd.f32 0.0, %v1563
        %v1565 = vpop.f32.mrf.mxu0
        %v1566 = vadd.f32 0.0, %v1565
        %1567 = vmatprep.mubr.f32.mxu0 %v679
        %1568 = vmatmul.mubr.f32.gmra.mxu0 %v678
        %v1569 = vpop.f32.mrf.mxu0
        %v1570 = vadd.f32 0.0, %v1569
        %v1571 = vpop.f32.mrf.mxu0
        %v1572 = vadd.f32 0.0, %v1571
        %1573 = vmatprep.mubr.f32.mxu0 %v681
        %1574 = vmatmul.mubr.f32.gmra.mxu0 %v680
        %v1575 = vpop.f32.mrf.mxu0
        %v1576 = vadd.f32 0.0, %v1575
        %v1577 = vpop.f32.mrf.mxu0
        %v1578 = vadd.f32 0.0, %v1577
        %1579 = vdwg.mxu0
        %v1580 = vadd.f32 %v682, %v1037
        %v1581 = vadd.f32 %v683, %v1039
        %v1582 = vadd.f32 %v684, %v1342
        %v1583 = vadd.f32 %v685, %v1344
        %v1584 = vadd.f32 %v686, %v1043
        %v1585 = vadd.f32 %v687, %v1045
        %v1586 = vadd.f32 %v688, %v1348
        %v1587 = vadd.f32 %v689, %v1350
        %v1588 = vadd.f32 %v690, %v1049
        %v1589 = vadd.f32 %v691, %v1051
        %v1590 = vadd.f32 %v692, %v1354
        %v1591 = vadd.f32 %v693, %v1356
        %v1592 = vadd.f32 %v694, %v1055
        %v1593 = vadd.f32 %v695, %v1057
        %v1594 = vadd.f32 %v696, %v1360
        %v1595 = vadd.f32 %v697, %v1362
        %v1596 = vadd.f32 %v698, %v1061
        %v1597 = vadd.f32 %v699, %v1063
        %v1598 = vadd.f32 %v700, %v1366
        %v1599 = vadd.f32 %v701, %v1368
        %v1600 = vadd.f32 %v702, %v1067
        %v1601 = vadd.f32 %v703, %v1069
        %v1602 = vadd.f32 %v704, %v1372
        %v1603 = vadd.f32 %v705, %v1374
        %v1604 = vadd.f32 %v706, %v1073
        %v1605 = vadd.f32 %v707, %v1075
        %v1606 = vadd.f32 %v708, %v1378
        %v1607 = vadd.f32 %v709, %v1380
        %v1608 = vadd.f32 %v710, %v1079
        %v1609 = vadd.f32 %v711, %v1081
        %v1610 = vadd.f32 %v712, %v1384
        %v1611 = vadd.f32 %v713, %v1386
        %v1612 = vadd.f32 %v714, %v1085
        %v1613 = vadd.f32 %v715, %v1087
        %v1614 = vadd.f32 %v716, %v1390
        %v1615 = vadd.f32 %v717, %v1392
        %v1616 = vadd.f32 %v718, %v1091
        %v1617 = vadd.f32 %v719, %v1093
        %v1618 = vadd.f32 %v720, %v1396
        %v1619 = vadd.f32 %v721, %v1398
        %v1620 = vadd.f32 %v722, %v1097
        %v1621 = vadd.f32 %v723, %v1099
        %v1622 = vadd.f32 %v724, %v1402
        %v1623 = vadd.f32 %v725, %v1404
        %v1624 = vadd.f32 %v726, %v1103
        %v1625 = vadd.f32 %v727, %v1105
        %v1626 = vadd.f32 %v728, %v1408
        %v1627 = vadd.f32 %v729, %v1410
        %v1628 = vadd.f32 %v730, %v1109
        %v1629 = vadd.f32 %v731, %v1111
        %v1630 = vadd.f32 %v732, %v1414
        %v1631 = vadd.f32 %v733, %v1416
        %v1632 = vadd.f32 %v734, %v1115
        %v1633 = vadd.f32 %v735, %v1117
        %v1634 = vadd.f32 %v736, %v1420
        %v1635 = vadd.f32 %v737, %v1422
        %v1636 = vadd.f32 %v738, %v1121
        %v1637 = vadd.f32 %v739, %v1123
        %v1638 = vadd.f32 %v740, %v1426
        %v1639 = vadd.f32 %v741, %v1428
        %v1640 = vadd.f32 %v742, %v1127
        %v1641 = vadd.f32 %v743, %v1129
        %v1642 = vadd.f32 %v744, %v1432
        %v1643 = vadd.f32 %v745, %v1434
        %v1644 = vadd.f32 %v746, %v1133
        %v1645 = vadd.f32 %v747, %v1135
        %v1646 = vadd.f32 %v748, %v1438
        %v1647 = vadd.f32 %v749, %v1440
        %v1648 = vadd.f32 %v750, %v1139
        %v1649 = vadd.f32 %v751, %v1141
        %v1650 = vadd.f32 %v752, %v1444
        %v1651 = vadd.f32 %v753, %v1446
        %v1652 = vadd.f32 %v754, %v1145
        %v1653 = vadd.f32 %v755, %v1147
        %v1654 = vadd.f32 %v756, %v1450
        %v1655 = vadd.f32 %v757, %v1452
        %v1656 = vadd.f32 %v758, %v1151
        %v1657 = vadd.f32 %v759, %v1153
        %v1658 = vadd.f32 %v760, %v1456
        %v1659 = vadd.f32 %v761, %v1458
        %v1660 = vadd.f32 %v762, %v1157
        %v1661 = vadd.f32 %v763, %v1159
        %v1662 = vadd.f32 %v764, %v1462
        %v1663 = vadd.f32 %v765, %v1464
        %v1664 = vadd.f32 %v766, %v1163
        %v1665 = vadd.f32 %v767, %v1165
        %v1666 = vadd.f32 %v768, %v1468
        %v1667 = vadd.f32 %v769, %v1470
        %v1668 = vadd.f32 %v770, %v1169
        %v1669 = vadd.f32 %v771, %v1171
        %v1670 = vadd.f32 %v772, %v1474
        %v1671 = vadd.f32 %v773, %v1476
        %v1672 = vadd.f32 %v774, %v1175
        %v1673 = vadd.f32 %v775, %v1177
        %v1674 = vadd.f32 %v776, %v1480
        %v1675 = vadd.f32 %v777, %v1482
        %v1676 = vadd.f32 %v778, %v1181
        %v1677 = vadd.f32 %v779, %v1183
        %v1678 = vadd.f32 %v780, %v1486
        %v1679 = vadd.f32 %v781, %v1488
        %v1680 = vadd.f32 %v782, %v1187
        %v1681 = vadd.f32 %v783, %v1189
        %v1682 = vadd.f32 %v784, %v1492
        %v1683 = vadd.f32 %v785, %v1494
        %v1684 = vadd.f32 %v786, %v1193
        %v1685 = vadd.f32 %v787, %v1195
        %v1686 = vadd.f32 %v788, %v1498
        %v1687 = vadd.f32 %v789, %v1500
        %v1688 = vadd.f32 %v790, %v1199
        %v1689 = vadd.f32 %v791, %v1201
        %v1690 = vadd.f32 %v792, %v1504
        %v1691 = vadd.f32 %v793, %v1506
        %v1692 = vadd.f32 %v794, %v1205
        %v1693 = vadd.f32 %v795, %v1207
        %v1694 = vadd.f32 %v796, %v1510
        %v1695 = vadd.f32 %v797, %v1512
        %v1696 = vadd.f32 %v798, %v1211
        %v1697 = vadd.f32 %v799, %v1213
        %v1698 = vadd.f32 %v800, %v1516
        %v1699 = vadd.f32 %v801, %v1518
        %v1700 = vadd.f32 %v802, %v1217
        %v1701 = vadd.f32 %v803, %v1219
        %v1702 = vadd.f32 %v804, %v1522
        %v1703 = vadd.f32 %v805, %v1524
        %v1704 = vadd.f32 %v806, %v1223
        %v1705 = vadd.f32 %v807, %v1225
        %v1706 = vadd.f32 %v808, %v1528
        %v1707 = vadd.f32 %v809, %v1530
        %v1708 = vadd.f32 %v810, %v1229
        %v1709 = vadd.f32 %v811, %v1231
        %v1710 = vadd.f32 %v812, %v1534
        %v1711 = vadd.f32 %v813, %v1536
        %v1712 = vadd.f32 %v814, %v1235
        %v1713 = vadd.f32 %v815, %v1237
        %v1714 = vadd.f32 %v816, %v1540
        %v1715 = vadd.f32 %v817, %v1542
        %v1716 = vadd.f32 %v818, %v1241
        %v1717 = vadd.f32 %v819, %v1243
        %v1718 = vadd.f32 %v820, %v1546
        %v1719 = vadd.f32 %v821, %v1548
        %v1720 = vadd.f32 %v822, %v1247
        %v1721 = vadd.f32 %v823, %v1249
        %v1722 = vadd.f32 %v824, %v1552
        %v1723 = vadd.f32 %v825, %v1554
        %v1724 = vadd.f32 %v826, %v1253
        %v1725 = vadd.f32 %v827, %v1255
        %v1726 = vadd.f32 %v828, %v1558
        %v1727 = vadd.f32 %v829, %v1560
        %v1728 = vadd.f32 %v830, %v1259
        %v1729 = vadd.f32 %v831, %v1261
        %v1730 = vadd.f32 %v832, %v1564
        %v1731 = vadd.f32 %v833, %v1566
        %v1732 = vadd.f32 %v834, %v1265
        %v1733 = vadd.f32 %v835, %v1267
        %v1734 = vadd.f32 %v836, %v1570
        %v1735 = vadd.f32 %v837, %v1572
        %v1736 = vadd.f32 %v838, %v1271
        %v1737 = vadd.f32 %v839, %v1273
        %v1738 = vadd.f32 %v840, %v1576
        %v1739 = vadd.f32 %v841, %v1578
        %1740 = vst [vmem:[#allocation2] sm:$0xff] %v1580
        %1741 = vst [vmem:[#allocation2 + $0x8] sm:$0xff] %v1581
        %1742 = vst [vmem:[#allocation2 + $0x10] sm:$0xff] %v1582
        %1743 = vst [vmem:[#allocation2 + $0x18] sm:$0xff] %v1583
        %1744 = vst [vmem:[#allocation2 + $0x20] sm:$0xff] %v1584
        %1745 = vst [vmem:[#allocation2 + $0x28] sm:$0xff] %v1585
        %1746 = vst [vmem:[#allocation2 + $0x30] sm:$0xff] %v1586
        %1747 = vst [vmem:[#allocation2 + $0x38] sm:$0xff] %v1587
        %1748 = vst [vmem:[#allocation2 + $0x40] sm:$0xff] %v1588
        %1749 = vst [vmem:[#allocation2 + $0x48] sm:$0xff] %v1589
        %1750 = vst [vmem:[#allocation2 + $0x50] sm:$0xff] %v1590
        %1751 = vst [vmem:[#allocation2 + $0x58] sm:$0xff] %v1591
        %1752 = vst [vmem:[#allocation2 + $0x60] sm:$0xff] %v1592
        %1753 = vst [vmem:[#allocation2 + $0x68] sm:$0xff] %v1593
        %1754 = vst [vmem:[#allocation2 + $0x70] sm:$0xff] %v1594
        %1755 = vst [vmem:[#allocation2 + $0x78] sm:$0xff] %v1595
        %1756 = vst [vmem:[#allocation2 + $0x80] sm:$0xff] %v1596
        %1757 = vst [vmem:[#allocation2 + $0x88] sm:$0xff] %v1597
        %1758 = vst [vmem:[#allocation2 + $0x90] sm:$0xff] %v1598
        %1759 = vst [vmem:[#allocation2 + $0x98] sm:$0xff] %v1599
        %1760 = vst [vmem:[#allocation2 + $0xa0] sm:$0xff] %v1600
        %1761 = vst [vmem:[#allocation2 + $0xa8] sm:$0xff] %v1601
        %1762 = vst [vmem:[#allocation2 + $0xb0] sm:$0xff] %v1602
        %1763 = vst [vmem:[#allocation2 + $0xb8] sm:$0xff] %v1603
        %1764 = vst [vmem:[#allocation2 + $0xc0] sm:$0xff] %v1604
        %1765 = vst [vmem:[#allocation2 + $0xc8] sm:$0xff] %v1605
        %1766 = vst [vmem:[#allocation2 + $0xd0] sm:$0xff] %v1606
        %1767 = vst [vmem:[#allocation2 + $0xd8] sm:$0xff] %v1607
        %1768 = vst [vmem:[#allocation2 + $0xe0] sm:$0xff] %v1608
        %1769 = vst [vmem:[#allocation2 + $0xe8] sm:$0xff] %v1609
        %1770 = vst [vmem:[#allocation2 + $0xf0] sm:$0xff] %v1610
        %1771 = vst [vmem:[#allocation2 + $0xf8] sm:$0xff] %v1611
        %1772 = vst [vmem:[#allocation2 + $0x100] sm:$0xff] %v1612
        %1773 = vst [vmem:[#allocation2 + $0x108] sm:$0xff] %v1613
        %1774 = vst [vmem:[#allocation2 + $0x110] sm:$0xff] %v1614
        %1775 = vst [vmem:[#allocation2 + $0x118] sm:$0xff] %v1615
        %1776 = vst [vmem:[#allocation2 + $0x120] sm:$0xff] %v1616
        %1777 = vst [vmem:[#allocation2 + $0x128] sm:$0xff] %v1617
        %1778 = vst [vmem:[#allocation2 + $0x130] sm:$0xff] %v1618
        %1779 = vst [vmem:[#allocation2 + $0x138] sm:$0xff] %v1619
        %1780 = vst [vmem:[#allocation2 + $0x140] sm:$0xff] %v1620
        %1781 = vst [vmem:[#allocation2 + $0x148] sm:$0xff] %v1621
        %1782 = vst [vmem:[#allocation2 + $0x150] sm:$0xff] %v1622
        %1783 = vst [vmem:[#allocation2 + $0x158] sm:$0xff] %v1623
        %1784 = vst [vmem:[#allocation2 + $0x160] sm:$0xff] %v1624
        %1785 = vst [vmem:[#allocation2 + $0x168] sm:$0xff] %v1625
        %1786 = vst [vmem:[#allocation2 + $0x170] sm:$0xff] %v1626
        %1787 = vst [vmem:[#allocation2 + $0x178] sm:$0xff] %v1627
        %1788 = vst [vmem:[#allocation2 + $0x180] sm:$0xff] %v1628
        %1789 = vst [vmem:[#allocation2 + $0x188] sm:$0xff] %v1629
        %1790 = vst [vmem:[#allocation2 + $0x190] sm:$0xff] %v1630
        %1791 = vst [vmem:[#allocation2 + $0x198] sm:$0xff] %v1631
        %1792 = vst [vmem:[#allocation2 + $0x1a0] sm:$0xff] %v1632
        %1793 = vst [vmem:[#allocation2 + $0x1a8] sm:$0xff] %v1633
        %1794 = vst [vmem:[#allocation2 + $0x1b0] sm:$0xff] %v1634
        %1795 = vst [vmem:[#allocation2 + $0x1b8] sm:$0xff] %v1635
        %1796 = vst [vmem:[#allocation2 + $0x1c0] sm:$0xff] %v1636
        %1797 = vst [vmem:[#allocation2 + $0x1c8] sm:$0xff] %v1637
        %1798 = vst [vmem:[#allocation2 + $0x1d0] sm:$0xff] %v1638
        %1799 = vst [vmem:[#allocation2 + $0x1d8] sm:$0xff] %v1639
        %1800 = vst [vmem:[#allocation2 + $0x1e0] sm:$0xff] %v1640
        %1801 = vst [vmem:[#allocation2 + $0x1e8] sm:$0xff] %v1641
        %1802 = vst [vmem:[#allocation2 + $0x1f0] sm:$0xff] %v1642
        %1803 = vst [vmem:[#allocation2 + $0x1f8] sm:$0xff] %v1643
        %1804 = vst [vmem:[#allocation2 + $0x200] sm:$0xff] %v1644
        %1805 = vst [vmem:[#allocation2 + $0x208] sm:$0xff] %v1645
        %1806 = vst [vmem:[#allocation2 + $0x210] sm:$0xff] %v1646
        %1807 = vst [vmem:[#allocation2 + $0x218] sm:$0xff] %v1647
        %1808 = vst [vmem:[#allocation2 + $0x220] sm:$0xff] %v1648
        %1809 = vst [vmem:[#allocation2 + $0x228] sm:$0xff] %v1649
        %1810 = vst [vmem:[#allocation2 + $0x230] sm:$0xff] %v1650
        %1811 = vst [vmem:[#allocation2 + $0x238] sm:$0xff] %v1651
        %1812 = vst [vmem:[#allocation2 + $0x240] sm:$0xff] %v1652
        %1813 = vst [vmem:[#allocation2 + $0x248] sm:$0xff] %v1653
        %1814 = vst [vmem:[#allocation2 + $0x250] sm:$0xff] %v1654
        %1815 = vst [vmem:[#allocation2 + $0x258] sm:$0xff] %v1655
        %1816 = vst [vmem:[#allocation2 + $0x260] sm:$0xff] %v1656
        %1817 = vst [vmem:[#allocation2 + $0x268] sm:$0xff] %v1657
        %1818 = vst [vmem:[#allocation2 + $0x270] sm:$0xff] %v1658
        %1819 = vst [vmem:[#allocation2 + $0x278] sm:$0xff] %v1659
        %1820 = vst [vmem:[#allocation2 + $0x280] sm:$0xff] %v1660
        %1821 = vst [vmem:[#allocation2 + $0x288] sm:$0xff] %v1661
        %1822 = vst [vmem:[#allocation2 + $0x290] sm:$0xff] %v1662
        %1823 = vst [vmem:[#allocation2 + $0x298] sm:$0xff] %v1663
        %1824 = vst [vmem:[#allocation2 + $0x2a0] sm:$0xff] %v1664
        %1825 = vst [vmem:[#allocation2 + $0x2a8] sm:$0xff] %v1665
        %1826 = vst [vmem:[#allocation2 + $0x2b0] sm:$0xff] %v1666
        %1827 = vst [vmem:[#allocation2 + $0x2b8] sm:$0xff] %v1667
        %1828 = vst [vmem:[#allocation2 + $0x2c0] sm:$0xff] %v1668
        %1829 = vst [vmem:[#allocation2 + $0x2c8] sm:$0xff] %v1669
        %1830 = vst [vmem:[#allocation2 + $0x2d0] sm:$0xff] %v1670
        %1831 = vst [vmem:[#allocation2 + $0x2d8] sm:$0xff] %v1671
        %1832 = vst [vmem:[#allocation2 + $0x2e0] sm:$0xff] %v1672
        %1833 = vst [vmem:[#allocation2 + $0x2e8] sm:$0xff] %v1673
        %1834 = vst [vmem:[#allocation2 + $0x2f0] sm:$0xff] %v1674
        %1835 = vst [vmem:[#allocation2 + $0x2f8] sm:$0xff] %v1675
        %1836 = vst [vmem:[#allocation2 + $0x300] sm:$0xff] %v1676
        %1837 = vst [vmem:[#allocation2 + $0x308] sm:$0xff] %v1677
        %1838 = vst [vmem:[#allocation2 + $0x310] sm:$0xff] %v1678
        %1839 = vst [vmem:[#allocation2 + $0x318] sm:$0xff] %v1679
        %1840 = vst [vmem:[#allocation2 + $0x320] sm:$0xff] %v1680
        %1841 = vst [vmem:[#allocation2 + $0x328] sm:$0xff] %v1681
        %1842 = vst [vmem:[#allocation2 + $0x330] sm:$0xff] %v1682
        %1843 = vst [vmem:[#allocation2 + $0x338] sm:$0xff] %v1683
        %1844 = vst [vmem:[#allocation2 + $0x340] sm:$0xff] %v1684
        %1845 = vst [vmem:[#allocation2 + $0x348] sm:$0xff] %v1685
        %1846 = vst [vmem:[#allocation2 + $0x350] sm:$0xff] %v1686
        %1847 = vst [vmem:[#allocation2 + $0x358] sm:$0xff] %v1687
        %1848 = vst [vmem:[#allocation2 + $0x360] sm:$0xff] %v1688
        %1849 = vst [vmem:[#allocation2 + $0x368] sm:$0xff] %v1689
        %1850 = vst [vmem:[#allocation2 + $0x370] sm:$0xff] %v1690
        %1851 = vst [vmem:[#allocation2 + $0x378] sm:$0xff] %v1691
        %1852 = vst [vmem:[#allocation2 + $0x380] sm:$0xff] %v1692
        %1853 = vst [vmem:[#allocation2 + $0x388] sm:$0xff] %v1693
        %1854 = vst [vmem:[#allocation2 + $0x390] sm:$0xff] %v1694
        %1855 = vst [vmem:[#allocation2 + $0x398] sm:$0xff] %v1695
        %1856 = vst [vmem:[#allocation2 + $0x3a0] sm:$0xff] %v1696
        %1857 = vst [vmem:[#allocation2 + $0x3a8] sm:$0xff] %v1697
        %1858 = vst [vmem:[#allocation2 + $0x3b0] sm:$0xff] %v1698
        %1859 = vst [vmem:[#allocation2 + $0x3b8] sm:$0xff] %v1699
        %1860 = vst [vmem:[#allocation2 + $0x3c0] sm:$0xff] %v1700
        %1861 = vst [vmem:[#allocation2 + $0x3c8] sm:$0xff] %v1701
        %1862 = vst [vmem:[#allocation2 + $0x3d0] sm:$0xff] %v1702
        %1863 = vst [vmem:[#allocation2 + $0x3d8] sm:$0xff] %v1703
        %1864 = vst [vmem:[#allocation2 + $0x3e0] sm:$0xff] %v1704
        %1865 = vst [vmem:[#allocation2 + $0x3e8] sm:$0xff] %v1705
        %1866 = vst [vmem:[#allocation2 + $0x3f0] sm:$0xff] %v1706
        %1867 = vst [vmem:[#allocation2 + $0x3f8] sm:$0xff] %v1707
        %1868 = vst [vmem:[#allocation2 + $0x400] sm:$0xff] %v1708
        %1869 = vst [vmem:[#allocation2 + $0x408] sm:$0xff] %v1709
        %1870 = vst [vmem:[#allocation2 + $0x410] sm:$0xff] %v1710
        %1871 = vst [vmem:[#allocation2 + $0x418] sm:$0xff] %v1711
        %1872 = vst [vmem:[#allocation2 + $0x420] sm:$0xff] %v1712
        %1873 = vst [vmem:[#allocation2 + $0x428] sm:$0xff] %v1713
        %1874 = vst [vmem:[#allocation2 + $0x430] sm:$0xff] %v1714
        %1875 = vst [vmem:[#allocation2 + $0x438] sm:$0xff] %v1715
        %1876 = vst [vmem:[#allocation2 + $0x440] sm:$0xff] %v1716
        %1877 = vst [vmem:[#allocation2 + $0x448] sm:$0xff] %v1717
        %1878 = vst [vmem:[#allocation2 + $0x450] sm:$0xff] %v1718
        %1879 = vst [vmem:[#allocation2 + $0x458] sm:$0xff] %v1719
        %1880 = vst [vmem:[#allocation2 + $0x460] sm:$0xff] %v1720
        %1881 = vst [vmem:[#allocation2 + $0x468] sm:$0xff] %v1721
        %1882 = vst [vmem:[#allocation2 + $0x470] sm:$0xff] %v1722
        %1883 = vst [vmem:[#allocation2 + $0x478] sm:$0xff] %v1723
        %1884 = vst [vmem:[#allocation2 + $0x480] sm:$0xff] %v1724
        %1885 = vst [vmem:[#allocation2 + $0x488] sm:$0xff] %v1725
        %1886 = vst [vmem:[#allocation2 + $0x490] sm:$0xff] %v1726
        %1887 = vst [vmem:[#allocation2 + $0x498] sm:$0xff] %v1727
        %1888 = vst [vmem:[#allocation2 + $0x4a0] sm:$0xff] %v1728
        %1889 = vst [vmem:[#allocation2 + $0x4a8] sm:$0xff] %v1729
        %1890 = vst [vmem:[#allocation2 + $0x4b0] sm:$0xff] %v1730
        %1891 = vst [vmem:[#allocation2 + $0x4b8] sm:$0xff] %v1731
        %1892 = vst [vmem:[#allocation2 + $0x4c0] sm:$0xff] %v1732
        %1893 = vst [vmem:[#allocation2 + $0x4c8] sm:$0xff] %v1733
        %1894 = vst [vmem:[#allocation2 + $0x4d0] sm:$0xff] %v1734
        %1895 = vst [vmem:[#allocation2 + $0x4d8] sm:$0xff] %v1735
        %1896 = vst [vmem:[#allocation2 + $0x4e0] sm:$0xff] %v1736
        %1897 = vst [vmem:[#allocation2 + $0x4e8] sm:$0xff] %v1737
        %1898 = vst [vmem:[#allocation2 + $0x4f0] sm:$0xff] %v1738
        %1899 = vst [vmem:[#allocation2 + $0x4f8] sm:$0xff] %v1739
        %v1900 = vld [vmem:[#allocation3] sm:$0xff]
        %v1901 = vld [vmem:[#allocation3 + $0x8] sm:$0xff]
        %v1902 = vld [vmem:[#allocation3 + $0x10] sm:$0xff]
        %v1903 = vld [vmem:[#allocation3 + $0x18] sm:$0xff]
        %v1904 = vld [vmem:[#allocation3 + $0x20] sm:$0xff]
        %v1905 = vld [vmem:[#allocation3 + $0x28] sm:$0xff]
        %v1906 = vld [vmem:[#allocation3 + $0x30] sm:$0xff]
        %v1907 = vld [vmem:[#allocation3 + $0x38] sm:$0xff]
        %v1908 = vld [vmem:[#allocation3 + $0x40] sm:$0xff]
        %v1909 = vld [vmem:[#allocation3 + $0x48] sm:$0xff]
        %v1910 = vld [vmem:[#allocation3 + $0x50] sm:$0xff]
        %v1911 = vld [vmem:[#allocation3 + $0x58] sm:$0xff]
        %v1912 = vld [vmem:[#allocation3 + $0x60] sm:$0xff]
        %v1913 = vld [vmem:[#allocation3 + $0x68] sm:$0xff]
        %v1914 = vld [vmem:[#allocation3 + $0x70] sm:$0xff]
        %v1915 = vld [vmem:[#allocation3 + $0x78] sm:$0xff]
        %v1916 = vld [vmem:[#allocation3 + $0x80] sm:$0xff]
        %v1917 = vld [vmem:[#allocation3 + $0x88] sm:$0xff]
        %v1918 = vld [vmem:[#allocation3 + $0x90] sm:$0xff]
        %v1919 = vld [vmem:[#allocation3 + $0x98] sm:$0xff]
        %v1920 = vld [vmem:[#allocation3 + $0xa0] sm:$0xff]
        %v1921 = vld [vmem:[#allocation3 + $0xa8] sm:$0xff]
        %v1922 = vld [vmem:[#allocation3 + $0xb0] sm:$0xff]
        %v1923 = vld [vmem:[#allocation3 + $0xb8] sm:$0xff]
        %v1924 = vld [vmem:[#allocation3 + $0xc0] sm:$0xff]
        %v1925 = vld [vmem:[#allocation3 + $0xc8] sm:$0xff]
        %v1926 = vld [vmem:[#allocation3 + $0xd0] sm:$0xff]
        %v1927 = vld [vmem:[#allocation3 + $0xd8] sm:$0xff]
        %v1928 = vld [vmem:[#allocation3 + $0xe0] sm:$0xff]
        %v1929 = vld [vmem:[#allocation3 + $0xe8] sm:$0xff]
        %v1930 = vld [vmem:[#allocation3 + $0xf0] sm:$0xff]
        %v1931 = vld [vmem:[#allocation3 + $0xf8] sm:$0xff]
        %v1932 = vld [vmem:[#allocation3 + $0x100] sm:$0xff]
        %v1933 = vld [vmem:[#allocation3 + $0x108] sm:$0xff]
        %v1934 = vld [vmem:[#allocation3 + $0x110] sm:$0xff]
        %v1935 = vld [vmem:[#allocation3 + $0x118] sm:$0xff]
        %v1936 = vld [vmem:[#allocation3 + $0x120] sm:$0xff]
        %v1937 = vld [vmem:[#allocation3 + $0x128] sm:$0xff]
        %v1938 = vld [vmem:[#allocation3 + $0x130] sm:$0xff]
        %v1939 = vld [vmem:[#allocation3 + $0x138] sm:$0xff]
        %v1940 = vld [vmem:[#allocation3 + $0x140] sm:$0xff]
        %v1941 = vld [vmem:[#allocation3 + $0x148] sm:$0xff]
        %v1942 = vld [vmem:[#allocation3 + $0x150] sm:$0xff]
        %v1943 = vld [vmem:[#allocation3 + $0x158] sm:$0xff]
        %v1944 = vld [vmem:[#allocation3 + $0x160] sm:$0xff]
        %v1945 = vld [vmem:[#allocation3 + $0x168] sm:$0xff]
        %v1946 = vld [vmem:[#allocation3 + $0x170] sm:$0xff]
        %v1947 = vld [vmem:[#allocation3 + $0x178] sm:$0xff]
        %v1948 = vld [vmem:[#allocation3 + $0x180] sm:$0xff]
        %v1949 = vld [vmem:[#allocation3 + $0x188] sm:$0xff]
        %v1950 = vld [vmem:[#allocation3 + $0x190] sm:$0xff]
        %v1951 = vld [vmem:[#allocation3 + $0x198] sm:$0xff]
        %v1952 = vld [vmem:[#allocation3 + $0x1a0] sm:$0xff]
        %v1953 = vld [vmem:[#allocation3 + $0x1a8] sm:$0xff]
        %v1954 = vld [vmem:[#allocation3 + $0x1b0] sm:$0xff]
        %v1955 = vld [vmem:[#allocation3 + $0x1b8] sm:$0xff]
        %v1956 = vld [vmem:[#allocation3 + $0x1c0] sm:$0xff]
        %v1957 = vld [vmem:[#allocation3 + $0x1c8] sm:$0xff]
        %v1958 = vld [vmem:[#allocation3 + $0x1d0] sm:$0xff]
        %v1959 = vld [vmem:[#allocation3 + $0x1d8] sm:$0xff]
        %v1960 = vld [vmem:[#allocation3 + $0x1e0] sm:$0xff]
        %v1961 = vld [vmem:[#allocation3 + $0x1e8] sm:$0xff]
        %v1962 = vld [vmem:[#allocation3 + $0x1f0] sm:$0xff]
        %v1963 = vld [vmem:[#allocation3 + $0x1f8] sm:$0xff]
        %v1964 = vld [vmem:[#allocation3 + $0x200] sm:$0xff]
        %v1965 = vld [vmem:[#allocation3 + $0x208] sm:$0xff]
        %v1966 = vld [vmem:[#allocation3 + $0x210] sm:$0xff]
        %v1967 = vld [vmem:[#allocation3 + $0x218] sm:$0xff]
        %v1968 = vld [vmem:[#allocation3 + $0x220] sm:$0xff]
        %v1969 = vld [vmem:[#allocation3 + $0x228] sm:$0xff]
        %v1970 = vld [vmem:[#allocation3 + $0x230] sm:$0xff]
        %v1971 = vld [vmem:[#allocation3 + $0x238] sm:$0xff]
        %v1972 = vld [vmem:[#allocation3 + $0x240] sm:$0xff]
        %v1973 = vld [vmem:[#allocation3 + $0x248] sm:$0xff]
        %v1974 = vld [vmem:[#allocation3 + $0x250] sm:$0xff]
        %v1975 = vld [vmem:[#allocation3 + $0x258] sm:$0xff]
        %v1976 = vld [vmem:[#allocation3 + $0x260] sm:$0xff]
        %v1977 = vld [vmem:[#allocation3 + $0x268] sm:$0xff]
        %v1978 = vld [vmem:[#allocation3 + $0x270] sm:$0xff]
        %v1979 = vld [vmem:[#allocation3 + $0x278] sm:$0xff]
        %v1980 = vld [vmem:[#allocation3 + $0x280] sm:$0xff]
        %v1981 = vld [vmem:[#allocation3 + $0x288] sm:$0xff]
        %v1982 = vld [vmem:[#allocation3 + $0x290] sm:$0xff]
        %v1983 = vld [vmem:[#allocation3 + $0x298] sm:$0xff]
        %v1984 = vld [vmem:[#allocation3 + $0x2a0] sm:$0xff]
        %v1985 = vld [vmem:[#allocation3 + $0x2a8] sm:$0xff]
        %v1986 = vld [vmem:[#allocation3 + $0x2b0] sm:$0xff]
        %v1987 = vld [vmem:[#allocation3 + $0x2b8] sm:$0xff]
        %v1988 = vld [vmem:[#allocation3 + $0x2c0] sm:$0xff]
        %v1989 = vld [vmem:[#allocation3 + $0x2c8] sm:$0xff]
        %v1990 = vld [vmem:[#allocation3 + $0x2d0] sm:$0xff]
        %v1991 = vld [vmem:[#allocation3 + $0x2d8] sm:$0xff]
        %v1992 = vld [vmem:[#allocation3 + $0x2e0] sm:$0xff]
        %v1993 = vld [vmem:[#allocation3 + $0x2e8] sm:$0xff]
        %v1994 = vld [vmem:[#allocation3 + $0x2f0] sm:$0xff]
        %v1995 = vld [vmem:[#allocation3 + $0x2f8] sm:$0xff]
        %v1996 = vld [vmem:[#allocation3 + $0x300] sm:$0xff]
        %v1997 = vld [vmem:[#allocation3 + $0x308] sm:$0xff]
        %v1998 = vld [vmem:[#allocation3 + $0x310] sm:$0xff]
        %v1999 = vld [vmem:[#allocation3 + $0x318] sm:$0xff]
        %v2000 = vld [vmem:[#allocation3 + $0x320] sm:$0xff]
        %v2001 = vld [vmem:[#allocation3 + $0x328] sm:$0xff]
        %v2002 = vld [vmem:[#allocation3 + $0x330] sm:$0xff]
        %v2003 = vld [vmem:[#allocation3 + $0x338] sm:$0xff]
        %v2004 = vld [vmem:[#allocation3 + $0x340] sm:$0xff]
        %v2005 = vld [vmem:[#allocation3 + $0x348] sm:$0xff]
        %v2006 = vld [vmem:[#allocation3 + $0x350] sm:$0xff]
        %v2007 = vld [vmem:[#allocation3 + $0x358] sm:$0xff]
        %v2008 = vld [vmem:[#allocation3 + $0x360] sm:$0xff]
        %v2009 = vld [vmem:[#allocation3 + $0x368] sm:$0xff]
        %v2010 = vld [vmem:[#allocation3 + $0x370] sm:$0xff]
        %v2011 = vld [vmem:[#allocation3 + $0x378] sm:$0xff]
        %v2012 = vld [vmem:[#allocation3 + $0x380] sm:$0xff]
        %v2013 = vld [vmem:[#allocation3 + $0x388] sm:$0xff]
        %v2014 = vld [vmem:[#allocation3 + $0x390] sm:$0xff]
        %v2015 = vld [vmem:[#allocation3 + $0x398] sm:$0xff]
        %v2016 = vld [vmem:[#allocation3 + $0x3a0] sm:$0xff]
        %v2017 = vld [vmem:[#allocation3 + $0x3a8] sm:$0xff]
        %v2018 = vld [vmem:[#allocation3 + $0x3b0] sm:$0xff]
        %v2019 = vld [vmem:[#allocation3 + $0x3b8] sm:$0xff]
        %v2020 = vld [vmem:[#allocation3 + $0x3c0] sm:$0xff]
        %v2021 = vld [vmem:[#allocation3 + $0x3c8] sm:$0xff]
        %v2022 = vld [vmem:[#allocation3 + $0x3d0] sm:$0xff]
        %v2023 = vld [vmem:[#allocation3 + $0x3d8] sm:$0xff]
        %v2024 = vld [vmem:[#allocation3 + $0x3e0] sm:$0xff]
        %v2025 = vld [vmem:[#allocation3 + $0x3e8] sm:$0xff]
        %v2026 = vld [vmem:[#allocation3 + $0x3f0] sm:$0xff]
        %v2027 = vld [vmem:[#allocation3 + $0x3f8] sm:$0xff]
        %v2028 = vld [vmem:[#allocation3 + $0x400] sm:$0xff]
        %v2029 = vld [vmem:[#allocation3 + $0x408] sm:$0xff]
        %v2030 = vld [vmem:[#allocation3 + $0x410] sm:$0xff]
        %v2031 = vld [vmem:[#allocation3 + $0x418] sm:$0xff]
        %v2032 = vld [vmem:[#allocation3 + $0x420] sm:$0xff]
        %v2033 = vld [vmem:[#allocation3 + $0x428] sm:$0xff]
        %v2034 = vld [vmem:[#allocation3 + $0x430] sm:$0xff]
        %v2035 = vld [vmem:[#allocation3 + $0x438] sm:$0xff]
        %v2036 = vld [vmem:[#allocation3 + $0x440] sm:$0xff]
        %v2037 = vld [vmem:[#allocation3 + $0x448] sm:$0xff]
        %v2038 = vld [vmem:[#allocation3 + $0x450] sm:$0xff]
        %v2039 = vld [vmem:[#allocation3 + $0x458] sm:$0xff]
        %v2040 = vld [vmem:[#allocation3 + $0x460] sm:$0xff]
        %v2041 = vld [vmem:[#allocation3 + $0x468] sm:$0xff]
        %v2042 = vld [vmem:[#allocation3 + $0x470] sm:$0xff]
        %v2043 = vld [vmem:[#allocation3 + $0x478] sm:$0xff]
        %v2044 = vld [vmem:[#allocation3 + $0x480] sm:$0xff]
        %v2045 = vld [vmem:[#allocation3 + $0x488] sm:$0xff]
        %v2046 = vld [vmem:[#allocation3 + $0x490] sm:$0xff]
        %v2047 = vld [vmem:[#allocation3 + $0x498] sm:$0xff]
        %v2048 = vld [vmem:[#allocation3 + $0x4a0] sm:$0xff]
        %v2049 = vld [vmem:[#allocation3 + $0x4a8] sm:$0xff]
        %v2050 = vld [vmem:[#allocation3 + $0x4b0] sm:$0xff]
        %v2051 = vld [vmem:[#allocation3 + $0x4b8] sm:$0xff]
        %v2052 = vld [vmem:[#allocation3 + $0x4c0] sm:$0xff]
        %v2053 = vld [vmem:[#allocation3 + $0x4c8] sm:$0xff]
        %v2054 = vld [vmem:[#allocation3 + $0x4d0] sm:$0xff]
        %v2055 = vld [vmem:[#allocation3 + $0x4d8] sm:$0xff]
        %v2056 = vld [vmem:[#allocation3 + $0x4e0] sm:$0xff]
        %v2057 = vld [vmem:[#allocation3 + $0x4e8] sm:$0xff]
        %v2058 = vld [vmem:[#allocation3 + $0x4f0] sm:$0xff]
        %v2059 = vld [vmem:[#allocation3 + $0x4f8] sm:$0xff]
        %v2060 = vld [vmem:[#allocation9] sm:$0xff]
        %v2061 = vld [vmem:[#allocation9 + $0x8] sm:$0xff]
        %v2062 = vld [vmem:[#allocation9 + $0x10] sm:$0xff]
        %v2063 = vld [vmem:[#allocation9 + $0x18] sm:$0xff]
        %v2064 = vld [vmem:[#allocation9 + $0x20] sm:$0xff]
        %v2065 = vld [vmem:[#allocation9 + $0x28] sm:$0xff]
        %v2066 = vld [vmem:[#allocation9 + $0x30] sm:$0xff]
        %v2067 = vld [vmem:[#allocation9 + $0x38] sm:$0xff]
        %v2068 = vld [vmem:[#allocation9 + $0x40] sm:$0xff]
        %v2069 = vld [vmem:[#allocation9 + $0x48] sm:$0xff]
        %v2070 = vld [vmem:[#allocation9 + $0x50] sm:$0xff]
        %v2071 = vld [vmem:[#allocation9 + $0x58] sm:$0xff]
        %v2072 = vld [vmem:[#allocation9 + $0x60] sm:$0xff]
        %v2073 = vld [vmem:[#allocation9 + $0x68] sm:$0xff]
        %v2074 = vld [vmem:[#allocation9 + $0x70] sm:$0xff]
        %v2075 = vld [vmem:[#allocation9 + $0x78] sm:$0xff]
        %v2076 = vld [vmem:[#allocation9 + $0x80] sm:$0xff]
        %v2077 = vld [vmem:[#allocation9 + $0x88] sm:$0xff]
        %v2078 = vld [vmem:[#allocation9 + $0x90] sm:$0xff]
        %v2079 = vld [vmem:[#allocation9 + $0x98] sm:$0xff]
        %v2080 = vld [vmem:[#allocation9 + $0xa0] sm:$0xff]
        %v2081 = vld [vmem:[#allocation9 + $0xa8] sm:$0xff]
        %v2082 = vld [vmem:[#allocation9 + $0xb0] sm:$0xff]
        %v2083 = vld [vmem:[#allocation9 + $0xb8] sm:$0xff]
        %v2084 = vld [vmem:[#allocation9 + $0xc0] sm:$0xff]
        %v2085 = vld [vmem:[#allocation9 + $0xc8] sm:$0xff]
        %v2086 = vld [vmem:[#allocation9 + $0xd0] sm:$0xff]
        %v2087 = vld [vmem:[#allocation9 + $0xd8] sm:$0xff]
        %v2088 = vld [vmem:[#allocation9 + $0xe0] sm:$0xff]
        %v2089 = vld [vmem:[#allocation9 + $0xe8] sm:$0xff]
        %v2090 = vld [vmem:[#allocation9 + $0xf0] sm:$0xff]
        %v2091 = vld [vmem:[#allocation9 + $0xf8] sm:$0xff]
        %v2092 = vld [vmem:[#allocation9 + $0x100] sm:$0xff]
        %v2093 = vld [vmem:[#allocation9 + $0x108] sm:$0xff]
        %v2094 = vld [vmem:[#allocation9 + $0x110] sm:$0xff]
        %v2095 = vld [vmem:[#allocation9 + $0x118] sm:$0xff]
        %v2096 = vld [vmem:[#allocation9 + $0x120] sm:$0xff]
        %v2097 = vld [vmem:[#allocation9 + $0x128] sm:$0xff]
        %v2098 = vld [vmem:[#allocation9 + $0x130] sm:$0xff]
        %v2099 = vld [vmem:[#allocation9 + $0x138] sm:$0xff]
        %v2100 = vld [vmem:[#allocation9 + $0x140] sm:$0xff]
        %v2101 = vld [vmem:[#allocation9 + $0x148] sm:$0xff]
        %v2102 = vld [vmem:[#allocation9 + $0x150] sm:$0xff]
        %v2103 = vld [vmem:[#allocation9 + $0x158] sm:$0xff]
        %v2104 = vld [vmem:[#allocation9 + $0x160] sm:$0xff]
        %v2105 = vld [vmem:[#allocation9 + $0x168] sm:$0xff]
        %v2106 = vld [vmem:[#allocation9 + $0x170] sm:$0xff]
        %v2107 = vld [vmem:[#allocation9 + $0x178] sm:$0xff]
        %v2108 = vld [vmem:[#allocation9 + $0x180] sm:$0xff]
        %v2109 = vld [vmem:[#allocation9 + $0x188] sm:$0xff]
        %v2110 = vld [vmem:[#allocation9 + $0x190] sm:$0xff]
        %v2111 = vld [vmem:[#allocation9 + $0x198] sm:$0xff]
        %v2112 = vld [vmem:[#allocation9 + $0x1a0] sm:$0xff]
        %v2113 = vld [vmem:[#allocation9 + $0x1a8] sm:$0xff]
        %v2114 = vld [vmem:[#allocation9 + $0x1b0] sm:$0xff]
        %v2115 = vld [vmem:[#allocation9 + $0x1b8] sm:$0xff]
        %v2116 = vld [vmem:[#allocation9 + $0x1c0] sm:$0xff]
        %v2117 = vld [vmem:[#allocation9 + $0x1c8] sm:$0xff]
        %v2118 = vld [vmem:[#allocation9 + $0x1d0] sm:$0xff]
        %v2119 = vld [vmem:[#allocation9 + $0x1d8] sm:$0xff]
        %v2120 = vld [vmem:[#allocation9 + $0x1e0] sm:$0xff]
        %v2121 = vld [vmem:[#allocation9 + $0x1e8] sm:$0xff]
        %v2122 = vld [vmem:[#allocation9 + $0x1f0] sm:$0xff]
        %v2123 = vld [vmem:[#allocation9 + $0x1f8] sm:$0xff]
        %v2124 = vld [vmem:[#allocation9 + $0x200] sm:$0xff]
        %v2125 = vld [vmem:[#allocation9 + $0x208] sm:$0xff]
        %v2126 = vld [vmem:[#allocation9 + $0x210] sm:$0xff]
        %v2127 = vld [vmem:[#allocation9 + $0x218] sm:$0xff]
        %v2128 = vld [vmem:[#allocation9 + $0x220] sm:$0xff]
        %v2129 = vld [vmem:[#allocation9 + $0x228] sm:$0xff]
        %v2130 = vld [vmem:[#allocation9 + $0x230] sm:$0xff]
        %v2131 = vld [vmem:[#allocation9 + $0x238] sm:$0xff]
        %v2132 = vld [vmem:[#allocation9 + $0x240] sm:$0xff]
        %v2133 = vld [vmem:[#allocation9 + $0x248] sm:$0xff]
        %v2134 = vld [vmem:[#allocation9 + $0x250] sm:$0xff]
        %v2135 = vld [vmem:[#allocation9 + $0x258] sm:$0xff]
        %v2136 = vld [vmem:[#allocation9 + $0x260] sm:$0xff]
        %v2137 = vld [vmem:[#allocation9 + $0x268] sm:$0xff]
        %v2138 = vld [vmem:[#allocation9 + $0x270] sm:$0xff]
        %v2139 = vld [vmem:[#allocation9 + $0x278] sm:$0xff]
        %v2140 = vld [vmem:[#allocation9 + $0x280] sm:$0xff]
        %v2141 = vld [vmem:[#allocation9 + $0x288] sm:$0xff]
        %v2142 = vld [vmem:[#allocation9 + $0x290] sm:$0xff]
        %v2143 = vld [vmem:[#allocation9 + $0x298] sm:$0xff]
        %v2144 = vld [vmem:[#allocation9 + $0x2a0] sm:$0xff]
        %v2145 = vld [vmem:[#allocation9 + $0x2a8] sm:$0xff]
        %v2146 = vld [vmem:[#allocation9 + $0x2b0] sm:$0xff]
        %v2147 = vld [vmem:[#allocation9 + $0x2b8] sm:$0xff]
        %v2148 = vld [vmem:[#allocation9 + $0x2c0] sm:$0xff]
        %v2149 = vld [vmem:[#allocation9 + $0x2c8] sm:$0xff]
        %v2150 = vld [vmem:[#allocation9 + $0x2d0] sm:$0xff]
        %v2151 = vld [vmem:[#allocation9 + $0x2d8] sm:$0xff]
        %v2152 = vld [vmem:[#allocation9 + $0x2e0] sm:$0xff]
        %v2153 = vld [vmem:[#allocation9 + $0x2e8] sm:$0xff]
        %v2154 = vld [vmem:[#allocation9 + $0x2f0] sm:$0xff]
        %v2155 = vld [vmem:[#allocation9 + $0x2f8] sm:$0xff]
        %v2156 = vld [vmem:[#allocation9 + $0x300] sm:$0xff]
        %v2157 = vld [vmem:[#allocation9 + $0x308] sm:$0xff]
        %v2158 = vld [vmem:[#allocation9 + $0x310] sm:$0xff]
        %v2159 = vld [vmem:[#allocation9 + $0x318] sm:$0xff]
        %v2160 = vld [vmem:[#allocation9 + $0x320] sm:$0xff]
        %v2161 = vld [vmem:[#allocation9 + $0x328] sm:$0xff]
        %v2162 = vld [vmem:[#allocation9 + $0x330] sm:$0xff]
        %v2163 = vld [vmem:[#allocation9 + $0x338] sm:$0xff]
        %v2164 = vld [vmem:[#allocation9 + $0x340] sm:$0xff]
        %v2165 = vld [vmem:[#allocation9 + $0x348] sm:$0xff]
        %v2166 = vld [vmem:[#allocation9 + $0x350] sm:$0xff]
        %v2167 = vld [vmem:[#allocation9 + $0x358] sm:$0xff]
        %v2168 = vld [vmem:[#allocation9 + $0x360] sm:$0xff]
        %v2169 = vld [vmem:[#allocation9 + $0x368] sm:$0xff]
        %v2170 = vld [vmem:[#allocation9 + $0x370] sm:$0xff]
        %v2171 = vld [vmem:[#allocation9 + $0x378] sm:$0xff]
        %v2172 = vld [vmem:[#allocation9 + $0x380] sm:$0xff]
        %v2173 = vld [vmem:[#allocation9 + $0x388] sm:$0xff]
        %v2174 = vld [vmem:[#allocation9 + $0x390] sm:$0xff]
        %v2175 = vld [vmem:[#allocation9 + $0x398] sm:$0xff]
        %v2176 = vld [vmem:[#allocation9 + $0x3a0] sm:$0xff]
        %v2177 = vld [vmem:[#allocation9 + $0x3a8] sm:$0xff]
        %v2178 = vld [vmem:[#allocation9 + $0x3b0] sm:$0xff]
        %v2179 = vld [vmem:[#allocation9 + $0x3b8] sm:$0xff]
        %v2180 = vld [vmem:[#allocation9 + $0x3c0] sm:$0xff]
        %v2181 = vld [vmem:[#allocation9 + $0x3c8] sm:$0xff]
        %v2182 = vld [vmem:[#allocation9 + $0x3d0] sm:$0xff]
        %v2183 = vld [vmem:[#allocation9 + $0x3d8] sm:$0xff]
        %v2184 = vld [vmem:[#allocation9 + $0x3e0] sm:$0xff]
        %v2185 = vld [vmem:[#allocation9 + $0x3e8] sm:$0xff]
        %v2186 = vld [vmem:[#allocation9 + $0x3f0] sm:$0xff]
        %v2187 = vld [vmem:[#allocation9 + $0x3f8] sm:$0xff]
        %2188 = vmatprep.subr.mxu0 %v2121
        %2189 = vmatpush1.msra.mxu0 %v2120
        %2190 = vmatprep.subr.mxu0 %v2117
        %2191 = vmatpush1.msra.mxu0 %v2116
        %2192 = vmatprep.subr.mxu0 %v2113
        %2193 = vmatpush1.msra.mxu0 %v2112
        %2194 = vmatprep.subr.mxu0 %v2109
        %2195 = vmatpush1.msra.mxu0 %v2108
        %2196 = vmatprep.subr.mxu0 %v2105
        %2197 = vmatpush1.msra.mxu0 %v2104
        %2198 = vmatprep.subr.mxu0 %v2101
        %2199 = vmatpush1.msra.mxu0 %v2100
        %2200 = vmatprep.subr.mxu0 %v2097
        %2201 = vmatpush1.msra.mxu0 %v2096
        %2202 = vmatprep.subr.mxu0 %v2093
        %2203 = vmatpush1.msra.mxu0 %v2092
        %2204 = vmatprep.subr.mxu0 %v2089
        %2205 = vmatpush1.msra.mxu0 %v2088
        %2206 = vmatprep.subr.mxu0 %v2085
        %2207 = vmatpush1.msra.mxu0 %v2084
        %2208 = vmatprep.subr.mxu0 %v2081
        %2209 = vmatpush1.msra.mxu0 %v2080
        %2210 = vmatprep.subr.mxu0 %v2077
        %2211 = vmatpush1.msra.mxu0 %v2076
        %2212 = vmatprep.subr.mxu0 %v2073
        %2213 = vmatpush1.msra.mxu0 %v2072
        %2214 = vmatprep.subr.mxu0 %v2069
        %2215 = vmatpush1.msra.mxu0 %v2068
        %2216 = vmatprep.subr.mxu0 %v2065
        %2217 = vmatpush1.msra.mxu0 %v2064
        %2218 = vmatprep.subr.mxu0 %v2061
        %2219 = vmatpush1.msra.mxu0 %v2060
        %2220 = vmatprep.subr.mxu0 %v2185
        %2221 = vmatpush2.msra.mxu0 %v2184
        %2222 = vmatprep.subr.mxu0 %v2181
        %2223 = vmatpush2.msra.mxu0 %v2180
        %2224 = vmatprep.subr.mxu0 %v2177
        %2225 = vmatpush2.msra.mxu0 %v2176
        %2226 = vmatprep.subr.mxu0 %v2173
        %2227 = vmatpush2.msra.mxu0 %v2172
        %2228 = vmatprep.subr.mxu0 %v2169
        %2229 = vmatpush2.msra.mxu0 %v2168
        %2230 = vmatprep.subr.mxu0 %v2165
        %2231 = vmatpush2.msra.mxu0 %v2164
        %2232 = vmatprep.subr.mxu0 %v2161
        %2233 = vmatpush2.msra.mxu0 %v2160
        %2234 = vmatprep.subr.mxu0 %v2157
        %2235 = vmatpush2.msra.mxu0 %v2156
        %2236 = vmatprep.subr.mxu0 %v2153
        %2237 = vmatpush2.msra.mxu0 %v2152
        %2238 = vmatprep.subr.mxu0 %v2149
        %2239 = vmatpush2.msra.mxu0 %v2148
        %2240 = vmatprep.subr.mxu0 %v2145
        %2241 = vmatpush2.msra.mxu0 %v2144
        %2242 = vmatprep.subr.mxu0 %v2141
        %2243 = vmatpush2.msra.mxu0 %v2140
        %2244 = vmatprep.subr.mxu0 %v2137
        %2245 = vmatpush2.msra.mxu0 %v2136
        %2246 = vmatprep.subr.mxu0 %v2133
        %2247 = vmatpush2.msra.mxu0 %v2132
        %2248 = vmatprep.subr.mxu0 %v2129
        %2249 = vmatpush2.msra.mxu0 %v2128
        %2250 = vmatprep.subr.mxu0 %v2125
        %2251 = vmatpush2.msra.mxu0 %v2124
        %2252 = vmatprep.mubr.f32.mxu0 %v603
        %2253 = vmatmul.mubr.f32.gmra.mxu0 %v602
        %v2254 = vpop.f32.mrf.mxu0
        %v2255 = vadd.f32 0.0, %v2254
        %v2256 = vpop.f32.mrf.mxu0
        %v2257 = vadd.f32 0.0, %v2256
        %2258 = vmatprep.mubr.f32.mxu0 %v605
        %2259 = vmatmul.mubr.f32.gmra.mxu0 %v604
        %v2260 = vpop.f32.mrf.mxu0
        %v2261 = vadd.f32 0.0, %v2260
        %v2262 = vpop.f32.mrf.mxu0
        %v2263 = vadd.f32 0.0, %v2262
        %2264 = vmatprep.mubr.f32.mxu0 %v607
        %2265 = vmatmul.mubr.f32.gmra.mxu0 %v606
        %v2266 = vpop.f32.mrf.mxu0
        %v2267 = vadd.f32 0.0, %v2266
        %v2268 = vpop.f32.mrf.mxu0
        %v2269 = vadd.f32 0.0, %v2268
        %2270 = vmatprep.mubr.f32.mxu0 %v609
        %2271 = vmatmul.mubr.f32.gmra.mxu0 %v608
        %v2272 = vpop.f32.mrf.mxu0
        %v2273 = vadd.f32 0.0, %v2272
        %v2274 = vpop.f32.mrf.mxu0
        %v2275 = vadd.f32 0.0, %v2274
        %2276 = vmatprep.mubr.f32.mxu0 %v611
        %2277 = vmatmul.mubr.f32.gmra.mxu0 %v610
        %v2278 = vpop.f32.mrf.mxu0
        %v2279 = vadd.f32 0.0, %v2278
        %v2280 = vpop.f32.mrf.mxu0
        %v2281 = vadd.f32 0.0, %v2280
        %2282 = vmatprep.mubr.f32.mxu0 %v613
        %2283 = vmatmul.mubr.f32.gmra.mxu0 %v612
        %v2284 = vpop.f32.mrf.mxu0
        %v2285 = vadd.f32 0.0, %v2284
        %v2286 = vpop.f32.mrf.mxu0
        %v2287 = vadd.f32 0.0, %v2286
        %2288 = vmatprep.mubr.f32.mxu0 %v615
        %2289 = vmatmul.mubr.f32.gmra.mxu0 %v614
        %v2290 = vpop.f32.mrf.mxu0
        %v2291 = vadd.f32 0.0, %v2290
        %v2292 = vpop.f32.mrf.mxu0
        %v2293 = vadd.f32 0.0, %v2292
        %2294 = vmatprep.mubr.f32.mxu0 %v617
        %2295 = vmatmul.mubr.f32.gmra.mxu0 %v616
        %v2296 = vpop.f32.mrf.mxu0
        %v2297 = vadd.f32 0.0, %v2296
        %v2298 = vpop.f32.mrf.mxu0
        %v2299 = vadd.f32 0.0, %v2298
        %2300 = vmatprep.mubr.f32.mxu0 %v619
        %2301 = vmatmul.mubr.f32.gmra.mxu0 %v618
        %v2302 = vpop.f32.mrf.mxu0
        %v2303 = vadd.f32 0.0, %v2302
        %v2304 = vpop.f32.mrf.mxu0
        %v2305 = vadd.f32 0.0, %v2304
        %2306 = vmatprep.mubr.f32.mxu0 %v621
        %2307 = vmatmul.mubr.f32.gmra.mxu0 %v620
        %v2308 = vpop.f32.mrf.mxu0
        %v2309 = vadd.f32 0.0, %v2308
        %v2310 = vpop.f32.mrf.mxu0
        %v2311 = vadd.f32 0.0, %v2310
        %2312 = vmatprep.mubr.f32.mxu0 %v623
        %2313 = vmatmul.mubr.f32.gmra.mxu0 %v622
        %v2314 = vpop.f32.mrf.mxu0
        %v2315 = vadd.f32 0.0, %v2314
        %v2316 = vpop.f32.mrf.mxu0
        %v2317 = vadd.f32 0.0, %v2316
        %2318 = vmatprep.mubr.f32.mxu0 %v625
        %2319 = vmatmul.mubr.f32.gmra.mxu0 %v624
        %v2320 = vpop.f32.mrf.mxu0
        %v2321 = vadd.f32 0.0, %v2320
        %v2322 = vpop.f32.mrf.mxu0
        %v2323 = vadd.f32 0.0, %v2322
        %2324 = vmatprep.mubr.f32.mxu0 %v627
        %2325 = vmatmul.mubr.f32.gmra.mxu0 %v626
        %v2326 = vpop.f32.mrf.mxu0
        %v2327 = vadd.f32 0.0, %v2326
        %v2328 = vpop.f32.mrf.mxu0
        %v2329 = vadd.f32 0.0, %v2328
        %2330 = vmatprep.mubr.f32.mxu0 %v629
        %2331 = vmatmul.mubr.f32.gmra.mxu0 %v628
        %v2332 = vpop.f32.mrf.mxu0
        %v2333 = vadd.f32 0.0, %v2332
        %v2334 = vpop.f32.mrf.mxu0
        %v2335 = vadd.f32 0.0, %v2334
        %2336 = vmatprep.mubr.f32.mxu0 %v631
        %2337 = vmatmul.mubr.f32.gmra.mxu0 %v630
        %v2338 = vpop.f32.mrf.mxu0
        %v2339 = vadd.f32 0.0, %v2338
        %v2340 = vpop.f32.mrf.mxu0
        %v2341 = vadd.f32 0.0, %v2340
        %2342 = vmatprep.mubr.f32.mxu0 %v633
        %2343 = vmatmul.mubr.f32.gmra.mxu0 %v632
        %v2344 = vpop.f32.mrf.mxu0
        %v2345 = vadd.f32 0.0, %v2344
        %v2346 = vpop.f32.mrf.mxu0
        %v2347 = vadd.f32 0.0, %v2346
        %2348 = vmatprep.mubr.f32.mxu0 %v635
        %2349 = vmatmul.mubr.f32.gmra.mxu0 %v634
        %v2350 = vpop.f32.mrf.mxu0
        %v2351 = vadd.f32 0.0, %v2350
        %v2352 = vpop.f32.mrf.mxu0
        %v2353 = vadd.f32 0.0, %v2352
        %2354 = vmatprep.mubr.f32.mxu0 %v637
        %2355 = vmatmul.mubr.f32.gmra.mxu0 %v636
        %v2356 = vpop.f32.mrf.mxu0
        %v2357 = vadd.f32 0.0, %v2356
        %v2358 = vpop.f32.mrf.mxu0
        %v2359 = vadd.f32 0.0, %v2358
        %2360 = vmatprep.mubr.f32.mxu0 %v639
        %2361 = vmatmul.mubr.f32.gmra.mxu0 %v638
        %v2362 = vpop.f32.mrf.mxu0
        %v2363 = vadd.f32 0.0, %v2362
        %v2364 = vpop.f32.mrf.mxu0
        %v2365 = vadd.f32 0.0, %v2364
        %2366 = vmatprep.mubr.f32.mxu0 %v641
        %2367 = vmatmul.mubr.f32.gmra.mxu0 %v640
        %v2368 = vpop.f32.mrf.mxu0
        %v2369 = vadd.f32 0.0, %v2368
        %v2370 = vpop.f32.mrf.mxu0
        %v2371 = vadd.f32 0.0, %v2370
        %2372 = vmatprep.mubr.f32.mxu0 %v643
        %2373 = vmatmul.mubr.f32.gmra.mxu0 %v642
        %v2374 = vpop.f32.mrf.mxu0
        %v2375 = vadd.f32 0.0, %v2374
        %v2376 = vpop.f32.mrf.mxu0
        %v2377 = vadd.f32 0.0, %v2376
        %2378 = vmatprep.mubr.f32.mxu0 %v645
        %2379 = vmatmul.mubr.f32.gmra.mxu0 %v644
        %v2380 = vpop.f32.mrf.mxu0
        %v2381 = vadd.f32 0.0, %v2380
        %v2382 = vpop.f32.mrf.mxu0
        %v2383 = vadd.f32 0.0, %v2382
        %2384 = vmatprep.mubr.f32.mxu0 %v647
        %2385 = vmatmul.mubr.f32.gmra.mxu0 %v646
        %v2386 = vpop.f32.mrf.mxu0
        %v2387 = vadd.f32 0.0, %v2386
        %v2388 = vpop.f32.mrf.mxu0
        %v2389 = vadd.f32 0.0, %v2388
        %2390 = vmatprep.mubr.f32.mxu0 %v649
        %2391 = vmatmul.mubr.f32.gmra.mxu0 %v648
        %v2392 = vpop.f32.mrf.mxu0
        %v2393 = vadd.f32 0.0, %v2392
        %v2394 = vpop.f32.mrf.mxu0
        %v2395 = vadd.f32 0.0, %v2394
        %2396 = vmatprep.mubr.f32.mxu0 %v651
        %2397 = vmatmul.mubr.f32.gmra.mxu0 %v650
        %v2398 = vpop.f32.mrf.mxu0
        %v2399 = vadd.f32 0.0, %v2398
        %v2400 = vpop.f32.mrf.mxu0
        %v2401 = vadd.f32 0.0, %v2400
        %2402 = vmatprep.mubr.f32.mxu0 %v653
        %2403 = vmatmul.mubr.f32.gmra.mxu0 %v652
        %v2404 = vpop.f32.mrf.mxu0
        %v2405 = vadd.f32 0.0, %v2404
        %v2406 = vpop.f32.mrf.mxu0
        %v2407 = vadd.f32 0.0, %v2406
        %2408 = vmatprep.mubr.f32.mxu0 %v655
        %2409 = vmatmul.mubr.f32.gmra.mxu0 %v654
        %v2410 = vpop.f32.mrf.mxu0
        %v2411 = vadd.f32 0.0, %v2410
        %v2412 = vpop.f32.mrf.mxu0
        %v2413 = vadd.f32 0.0, %v2412
        %2414 = vmatprep.mubr.f32.mxu0 %v657
        %2415 = vmatmul.mubr.f32.gmra.mxu0 %v656
        %v2416 = vpop.f32.mrf.mxu0
        %v2417 = vadd.f32 0.0, %v2416
        %v2418 = vpop.f32.mrf.mxu0
        %v2419 = vadd.f32 0.0, %v2418
        %2420 = vmatprep.mubr.f32.mxu0 %v659
        %2421 = vmatmul.mubr.f32.gmra.mxu0 %v658
        %v2422 = vpop.f32.mrf.mxu0
        %v2423 = vadd.f32 0.0, %v2422
        %v2424 = vpop.f32.mrf.mxu0
        %v2425 = vadd.f32 0.0, %v2424
        %2426 = vmatprep.mubr.f32.mxu0 %v661
        %2427 = vmatmul.mubr.f32.gmra.mxu0 %v660
        %v2428 = vpop.f32.mrf.mxu0
        %v2429 = vadd.f32 0.0, %v2428
        %v2430 = vpop.f32.mrf.mxu0
        %v2431 = vadd.f32 0.0, %v2430
        %2432 = vmatprep.mubr.f32.mxu0 %v663
        %2433 = vmatmul.mubr.f32.gmra.mxu0 %v662
        %v2434 = vpop.f32.mrf.mxu0
        %v2435 = vadd.f32 0.0, %v2434
        %v2436 = vpop.f32.mrf.mxu0
        %v2437 = vadd.f32 0.0, %v2436
        %2438 = vmatprep.mubr.f32.mxu0 %v665
        %2439 = vmatmul.mubr.f32.gmra.mxu0 %v664
        %v2440 = vpop.f32.mrf.mxu0
        %v2441 = vadd.f32 0.0, %v2440
        %v2442 = vpop.f32.mrf.mxu0
        %v2443 = vadd.f32 0.0, %v2442
        %2444 = vmatprep.mubr.f32.mxu0 %v667
        %2445 = vmatmul.mubr.f32.gmra.mxu0 %v666
        %v2446 = vpop.f32.mrf.mxu0
        %v2447 = vadd.f32 0.0, %v2446
        %v2448 = vpop.f32.mrf.mxu0
        %v2449 = vadd.f32 0.0, %v2448
        %2450 = vmatprep.mubr.f32.mxu0 %v669
        %2451 = vmatmul.mubr.f32.gmra.mxu0 %v668
        %v2452 = vpop.f32.mrf.mxu0
        %v2453 = vadd.f32 0.0, %v2452
        %v2454 = vpop.f32.mrf.mxu0
        %v2455 = vadd.f32 0.0, %v2454
        %2456 = vmatprep.mubr.f32.mxu0 %v671
        %2457 = vmatmul.mubr.f32.gmra.mxu0 %v670
        %v2458 = vpop.f32.mrf.mxu0
        %v2459 = vadd.f32 0.0, %v2458
        %v2460 = vpop.f32.mrf.mxu0
        %v2461 = vadd.f32 0.0, %v2460
        %2462 = vmatprep.mubr.f32.mxu0 %v673
        %2463 = vmatmul.mubr.f32.gmra.mxu0 %v672
        %v2464 = vpop.f32.mrf.mxu0
        %v2465 = vadd.f32 0.0, %v2464
        %v2466 = vpop.f32.mrf.mxu0
        %v2467 = vadd.f32 0.0, %v2466
        %2468 = vmatprep.mubr.f32.mxu0 %v675
        %2469 = vmatmul.mubr.f32.gmra.mxu0 %v674
        %v2470 = vpop.f32.mrf.mxu0
        %v2471 = vadd.f32 0.0, %v2470
        %v2472 = vpop.f32.mrf.mxu0
        %v2473 = vadd.f32 0.0, %v2472
        %2474 = vmatprep.mubr.f32.mxu0 %v677
        %2475 = vmatmul.mubr.f32.gmra.mxu0 %v676
        %v2476 = vpop.f32.mrf.mxu0
        %v2477 = vadd.f32 0.0, %v2476
        %v2478 = vpop.f32.mrf.mxu0
        %v2479 = vadd.f32 0.0, %v2478
        %2480 = vmatprep.mubr.f32.mxu0 %v679
        %2481 = vmatmul.mubr.f32.gmra.mxu0 %v678
        %v2482 = vpop.f32.mrf.mxu0
        %v2483 = vadd.f32 0.0, %v2482
        %v2484 = vpop.f32.mrf.mxu0
        %v2485 = vadd.f32 0.0, %v2484
        %2486 = vmatprep.mubr.f32.mxu0 %v681
        %2487 = vmatmul.mubr.f32.gmra.mxu0 %v680
        %v2488 = vpop.f32.mrf.mxu0
        %v2489 = vadd.f32 0.0, %v2488
        %v2490 = vpop.f32.mrf.mxu0
        %v2491 = vadd.f32 0.0, %v2490
        %2492 = vdwg.mxu0
        %2493 = vmatprep.subr.mxu0 %v2123
        %2494 = vmatpush1.msra.mxu0 %v2122
        %2495 = vmatprep.subr.mxu0 %v2119
        %2496 = vmatpush1.msra.mxu0 %v2118
        %2497 = vmatprep.subr.mxu0 %v2115
        %2498 = vmatpush1.msra.mxu0 %v2114
        %2499 = vmatprep.subr.mxu0 %v2111
        %2500 = vmatpush1.msra.mxu0 %v2110
        %2501 = vmatprep.subr.mxu0 %v2107
        %2502 = vmatpush1.msra.mxu0 %v2106
        %2503 = vmatprep.subr.mxu0 %v2103
        %2504 = vmatpush1.msra.mxu0 %v2102
        %2505 = vmatprep.subr.mxu0 %v2099
        %2506 = vmatpush1.msra.mxu0 %v2098
        %2507 = vmatprep.subr.mxu0 %v2095
        %2508 = vmatpush1.msra.mxu0 %v2094
        %2509 = vmatprep.subr.mxu0 %v2091
        %2510 = vmatpush1.msra.mxu0 %v2090
        %2511 = vmatprep.subr.mxu0 %v2087
        %2512 = vmatpush1.msra.mxu0 %v2086
        %2513 = vmatprep.subr.mxu0 %v2083
        %2514 = vmatpush1.msra.mxu0 %v2082
        %2515 = vmatprep.subr.mxu0 %v2079
        %2516 = vmatpush1.msra.mxu0 %v2078
        %2517 = vmatprep.subr.mxu0 %v2075
        %2518 = vmatpush1.msra.mxu0 %v2074
        %2519 = vmatprep.subr.mxu0 %v2071
        %2520 = vmatpush1.msra.mxu0 %v2070
        %2521 = vmatprep.subr.mxu0 %v2067
        %2522 = vmatpush1.msra.mxu0 %v2066
        %2523 = vmatprep.subr.mxu0 %v2063
        %2524 = vmatpush1.msra.mxu0 %v2062
        %2525 = vmatprep.subr.mxu0 %v2187
        %2526 = vmatpush2.msra.mxu0 %v2186
        %2527 = vmatprep.subr.mxu0 %v2183
        %2528 = vmatpush2.msra.mxu0 %v2182
        %2529 = vmatprep.subr.mxu0 %v2179
        %2530 = vmatpush2.msra.mxu0 %v2178
        %2531 = vmatprep.subr.mxu0 %v2175
        %2532 = vmatpush2.msra.mxu0 %v2174
        %2533 = vmatprep.subr.mxu0 %v2171
        %2534 = vmatpush2.msra.mxu0 %v2170
        %2535 = vmatprep.subr.mxu0 %v2167
        %2536 = vmatpush2.msra.mxu0 %v2166
        %2537 = vmatprep.subr.mxu0 %v2163
        %2538 = vmatpush2.msra.mxu0 %v2162
        %2539 = vmatprep.subr.mxu0 %v2159
        %2540 = vmatpush2.msra.mxu0 %v2158
        %2541 = vmatprep.subr.mxu0 %v2155
        %2542 = vmatpush2.msra.mxu0 %v2154
        %2543 = vmatprep.subr.mxu0 %v2151
        %2544 = vmatpush2.msra.mxu0 %v2150
        %2545 = vmatprep.subr.mxu0 %v2147
        %2546 = vmatpush2.msra.mxu0 %v2146
        %2547 = vmatprep.subr.mxu0 %v2143
        %2548 = vmatpush2.msra.mxu0 %v2142
        %2549 = vmatprep.subr.mxu0 %v2139
        %2550 = vmatpush2.msra.mxu0 %v2138
        %2551 = vmatprep.subr.mxu0 %v2135
        %2552 = vmatpush2.msra.mxu0 %v2134
        %2553 = vmatprep.subr.mxu0 %v2131
        %2554 = vmatpush2.msra.mxu0 %v2130
        %2555 = vmatprep.subr.mxu0 %v2127
        %2556 = vmatpush2.msra.mxu0 %v2126
        %2557 = vmatprep.mubr.f32.mxu0 %v603
        %2558 = vmatmul.mubr.f32.gmra.mxu0 %v602
        %v2559 = vpop.f32.mrf.mxu0
        %v2560 = vadd.f32 0.0, %v2559
        %v2561 = vpop.f32.mrf.mxu0
        %v2562 = vadd.f32 0.0, %v2561
        %2563 = vmatprep.mubr.f32.mxu0 %v605
        %2564 = vmatmul.mubr.f32.gmra.mxu0 %v604
        %v2565 = vpop.f32.mrf.mxu0
        %v2566 = vadd.f32 0.0, %v2565
        %v2567 = vpop.f32.mrf.mxu0
        %v2568 = vadd.f32 0.0, %v2567
        %2569 = vmatprep.mubr.f32.mxu0 %v607
        %2570 = vmatmul.mubr.f32.gmra.mxu0 %v606
        %v2571 = vpop.f32.mrf.mxu0
        %v2572 = vadd.f32 0.0, %v2571
        %v2573 = vpop.f32.mrf.mxu0
        %v2574 = vadd.f32 0.0, %v2573
        %2575 = vmatprep.mubr.f32.mxu0 %v609
        %2576 = vmatmul.mubr.f32.gmra.mxu0 %v608
        %v2577 = vpop.f32.mrf.mxu0
        %v2578 = vadd.f32 0.0, %v2577
        %v2579 = vpop.f32.mrf.mxu0
        %v2580 = vadd.f32 0.0, %v2579
        %2581 = vmatprep.mubr.f32.mxu0 %v611
        %2582 = vmatmul.mubr.f32.gmra.mxu0 %v610
        %v2583 = vpop.f32.mrf.mxu0
        %v2584 = vadd.f32 0.0, %v2583
        %v2585 = vpop.f32.mrf.mxu0
        %v2586 = vadd.f32 0.0, %v2585
        %2587 = vmatprep.mubr.f32.mxu0 %v613
        %2588 = vmatmul.mubr.f32.gmra.mxu0 %v612
        %v2589 = vpop.f32.mrf.mxu0
        %v2590 = vadd.f32 0.0, %v2589
        %v2591 = vpop.f32.mrf.mxu0
        %v2592 = vadd.f32 0.0, %v2591
        %2593 = vmatprep.mubr.f32.mxu0 %v615
        %2594 = vmatmul.mubr.f32.gmra.mxu0 %v614
        %v2595 = vpop.f32.mrf.mxu0
        %v2596 = vadd.f32 0.0, %v2595
        %v2597 = vpop.f32.mrf.mxu0
        %v2598 = vadd.f32 0.0, %v2597
        %2599 = vmatprep.mubr.f32.mxu0 %v617
        %2600 = vmatmul.mubr.f32.gmra.mxu0 %v616
        %v2601 = vpop.f32.mrf.mxu0
        %v2602 = vadd.f32 0.0, %v2601
        %v2603 = vpop.f32.mrf.mxu0
        %v2604 = vadd.f32 0.0, %v2603
        %2605 = vmatprep.mubr.f32.mxu0 %v619
        %2606 = vmatmul.mubr.f32.gmra.mxu0 %v618
        %v2607 = vpop.f32.mrf.mxu0
        %v2608 = vadd.f32 0.0, %v2607
        %v2609 = vpop.f32.mrf.mxu0
        %v2610 = vadd.f32 0.0, %v2609
        %2611 = vmatprep.mubr.f32.mxu0 %v621
        %2612 = vmatmul.mubr.f32.gmra.mxu0 %v620
        %v2613 = vpop.f32.mrf.mxu0
        %v2614 = vadd.f32 0.0, %v2613
        %v2615 = vpop.f32.mrf.mxu0
        %v2616 = vadd.f32 0.0, %v2615
        %2617 = vmatprep.mubr.f32.mxu0 %v623
        %2618 = vmatmul.mubr.f32.gmra.mxu0 %v622
        %v2619 = vpop.f32.mrf.mxu0
        %v2620 = vadd.f32 0.0, %v2619
        %v2621 = vpop.f32.mrf.mxu0
        %v2622 = vadd.f32 0.0, %v2621
        %2623 = vmatprep.mubr.f32.mxu0 %v625
        %2624 = vmatmul.mubr.f32.gmra.mxu0 %v624
        %v2625 = vpop.f32.mrf.mxu0
        %v2626 = vadd.f32 0.0, %v2625
        %v2627 = vpop.f32.mrf.mxu0
        %v2628 = vadd.f32 0.0, %v2627
        %2629 = vmatprep.mubr.f32.mxu0 %v627
        %2630 = vmatmul.mubr.f32.gmra.mxu0 %v626
        %v2631 = vpop.f32.mrf.mxu0
        %v2632 = vadd.f32 0.0, %v2631
        %v2633 = vpop.f32.mrf.mxu0
        %v2634 = vadd.f32 0.0, %v2633
        %2635 = vmatprep.mubr.f32.mxu0 %v629
        %2636 = vmatmul.mubr.f32.gmra.mxu0 %v628
        %v2637 = vpop.f32.mrf.mxu0
        %v2638 = vadd.f32 0.0, %v2637
        %v2639 = vpop.f32.mrf.mxu0
        %v2640 = vadd.f32 0.0, %v2639
        %2641 = vmatprep.mubr.f32.mxu0 %v631
        %2642 = vmatmul.mubr.f32.gmra.mxu0 %v630
        %v2643 = vpop.f32.mrf.mxu0
        %v2644 = vadd.f32 0.0, %v2643
        %v2645 = vpop.f32.mrf.mxu0
        %v2646 = vadd.f32 0.0, %v2645
        %2647 = vmatprep.mubr.f32.mxu0 %v633
        %2648 = vmatmul.mubr.f32.gmra.mxu0 %v632
        %v2649 = vpop.f32.mrf.mxu0
        %v2650 = vadd.f32 0.0, %v2649
        %v2651 = vpop.f32.mrf.mxu0
        %v2652 = vadd.f32 0.0, %v2651
        %2653 = vmatprep.mubr.f32.mxu0 %v635
        %2654 = vmatmul.mubr.f32.gmra.mxu0 %v634
        %v2655 = vpop.f32.mrf.mxu0
        %v2656 = vadd.f32 0.0, %v2655
        %v2657 = vpop.f32.mrf.mxu0
        %v2658 = vadd.f32 0.0, %v2657
        %2659 = vmatprep.mubr.f32.mxu0 %v637
        %2660 = vmatmul.mubr.f32.gmra.mxu0 %v636
        %v2661 = vpop.f32.mrf.mxu0
        %v2662 = vadd.f32 0.0, %v2661
        %v2663 = vpop.f32.mrf.mxu0
        %v2664 = vadd.f32 0.0, %v2663
        %2665 = vmatprep.mubr.f32.mxu0 %v639
        %2666 = vmatmul.mubr.f32.gmra.mxu0 %v638
        %v2667 = vpop.f32.mrf.mxu0
        %v2668 = vadd.f32 0.0, %v2667
        %v2669 = vpop.f32.mrf.mxu0
        %v2670 = vadd.f32 0.0, %v2669
        %2671 = vmatprep.mubr.f32.mxu0 %v641
        %2672 = vmatmul.mubr.f32.gmra.mxu0 %v640
        %v2673 = vpop.f32.mrf.mxu0
        %v2674 = vadd.f32 0.0, %v2673
        %v2675 = vpop.f32.mrf.mxu0
        %v2676 = vadd.f32 0.0, %v2675
        %2677 = vmatprep.mubr.f32.mxu0 %v643
        %2678 = vmatmul.mubr.f32.gmra.mxu0 %v642
        %v2679 = vpop.f32.mrf.mxu0
        %v2680 = vadd.f32 0.0, %v2679
        %v2681 = vpop.f32.mrf.mxu0
        %v2682 = vadd.f32 0.0, %v2681
        %2683 = vmatprep.mubr.f32.mxu0 %v645
        %2684 = vmatmul.mubr.f32.gmra.mxu0 %v644
        %v2685 = vpop.f32.mrf.mxu0
        %v2686 = vadd.f32 0.0, %v2685
        %v2687 = vpop.f32.mrf.mxu0
        %v2688 = vadd.f32 0.0, %v2687
        %2689 = vmatprep.mubr.f32.mxu0 %v647
        %2690 = vmatmul.mubr.f32.gmra.mxu0 %v646
        %v2691 = vpop.f32.mrf.mxu0
        %v2692 = vadd.f32 0.0, %v2691
        %v2693 = vpop.f32.mrf.mxu0
        %v2694 = vadd.f32 0.0, %v2693
        %2695 = vmatprep.mubr.f32.mxu0 %v649
        %2696 = vmatmul.mubr.f32.gmra.mxu0 %v648
        %v2697 = vpop.f32.mrf.mxu0
        %v2698 = vadd.f32 0.0, %v2697
        %v2699 = vpop.f32.mrf.mxu0
        %v2700 = vadd.f32 0.0, %v2699
        %2701 = vmatprep.mubr.f32.mxu0 %v651
        %2702 = vmatmul.mubr.f32.gmra.mxu0 %v650
        %v2703 = vpop.f32.mrf.mxu0
        %v2704 = vadd.f32 0.0, %v2703
        %v2705 = vpop.f32.mrf.mxu0
        %v2706 = vadd.f32 0.0, %v2705
        %2707 = vmatprep.mubr.f32.mxu0 %v653
        %2708 = vmatmul.mubr.f32.gmra.mxu0 %v652
        %v2709 = vpop.f32.mrf.mxu0
        %v2710 = vadd.f32 0.0, %v2709
        %v2711 = vpop.f32.mrf.mxu0
        %v2712 = vadd.f32 0.0, %v2711
        %2713 = vmatprep.mubr.f32.mxu0 %v655
        %2714 = vmatmul.mubr.f32.gmra.mxu0 %v654
        %v2715 = vpop.f32.mrf.mxu0
        %v2716 = vadd.f32 0.0, %v2715
        %v2717 = vpop.f32.mrf.mxu0
        %v2718 = vadd.f32 0.0, %v2717
        %2719 = vmatprep.mubr.f32.mxu0 %v657
        %2720 = vmatmul.mubr.f32.gmra.mxu0 %v656
        %v2721 = vpop.f32.mrf.mxu0
        %v2722 = vadd.f32 0.0, %v2721
        %v2723 = vpop.f32.mrf.mxu0
        %v2724 = vadd.f32 0.0, %v2723
        %2725 = vmatprep.mubr.f32.mxu0 %v659
        %2726 = vmatmul.mubr.f32.gmra.mxu0 %v658
        %v2727 = vpop.f32.mrf.mxu0
        %v2728 = vadd.f32 0.0, %v2727
        %v2729 = vpop.f32.mrf.mxu0
        %v2730 = vadd.f32 0.0, %v2729
        %2731 = vmatprep.mubr.f32.mxu0 %v661
        %2732 = vmatmul.mubr.f32.gmra.mxu0 %v660
        %v2733 = vpop.f32.mrf.mxu0
        %v2734 = vadd.f32 0.0, %v2733
        %v2735 = vpop.f32.mrf.mxu0
        %v2736 = vadd.f32 0.0, %v2735
        %2737 = vmatprep.mubr.f32.mxu0 %v663
        %2738 = vmatmul.mubr.f32.gmra.mxu0 %v662
        %v2739 = vpop.f32.mrf.mxu0
        %v2740 = vadd.f32 0.0, %v2739
        %v2741 = vpop.f32.mrf.mxu0
        %v2742 = vadd.f32 0.0, %v2741
        %2743 = vmatprep.mubr.f32.mxu0 %v665
        %2744 = vmatmul.mubr.f32.gmra.mxu0 %v664
        %v2745 = vpop.f32.mrf.mxu0
        %v2746 = vadd.f32 0.0, %v2745
        %v2747 = vpop.f32.mrf.mxu0
        %v2748 = vadd.f32 0.0, %v2747
        %2749 = vmatprep.mubr.f32.mxu0 %v667
        %2750 = vmatmul.mubr.f32.gmra.mxu0 %v666
        %v2751 = vpop.f32.mrf.mxu0
        %v2752 = vadd.f32 0.0, %v2751
        %v2753 = vpop.f32.mrf.mxu0
        %v2754 = vadd.f32 0.0, %v2753
        %2755 = vmatprep.mubr.f32.mxu0 %v669
        %2756 = vmatmul.mubr.f32.gmra.mxu0 %v668
        %v2757 = vpop.f32.mrf.mxu0
        %v2758 = vadd.f32 0.0, %v2757
        %v2759 = vpop.f32.mrf.mxu0
        %v2760 = vadd.f32 0.0, %v2759
        %2761 = vmatprep.mubr.f32.mxu0 %v671
        %2762 = vmatmul.mubr.f32.gmra.mxu0 %v670
        %v2763 = vpop.f32.mrf.mxu0
        %v2764 = vadd.f32 0.0, %v2763
        %v2765 = vpop.f32.mrf.mxu0
        %v2766 = vadd.f32 0.0, %v2765
        %2767 = vmatprep.mubr.f32.mxu0 %v673
        %2768 = vmatmul.mubr.f32.gmra.mxu0 %v672
        %v2769 = vpop.f32.mrf.mxu0
        %v2770 = vadd.f32 0.0, %v2769
        %v2771 = vpop.f32.mrf.mxu0
        %v2772 = vadd.f32 0.0, %v2771
        %2773 = vmatprep.mubr.f32.mxu0 %v675
        %2774 = vmatmul.mubr.f32.gmra.mxu0 %v674
        %v2775 = vpop.f32.mrf.mxu0
        %v2776 = vadd.f32 0.0, %v2775
        %v2777 = vpop.f32.mrf.mxu0
        %v2778 = vadd.f32 0.0, %v2777
        %2779 = vmatprep.mubr.f32.mxu0 %v677
        %2780 = vmatmul.mubr.f32.gmra.mxu0 %v676
        %v2781 = vpop.f32.mrf.mxu0
        %v2782 = vadd.f32 0.0, %v2781
        %v2783 = vpop.f32.mrf.mxu0
        %v2784 = vadd.f32 0.0, %v2783
        %2785 = vmatprep.mubr.f32.mxu0 %v679
        %2786 = vmatmul.mubr.f32.gmra.mxu0 %v678
        %v2787 = vpop.f32.mrf.mxu0
        %v2788 = vadd.f32 0.0, %v2787
        %v2789 = vpop.f32.mrf.mxu0
        %v2790 = vadd.f32 0.0, %v2789
        %2791 = vmatprep.mubr.f32.mxu0 %v681
        %2792 = vmatmul.mubr.f32.gmra.mxu0 %v680
        %v2793 = vpop.f32.mrf.mxu0
        %v2794 = vadd.f32 0.0, %v2793
        %v2795 = vpop.f32.mrf.mxu0
        %v2796 = vadd.f32 0.0, %v2795
        %2797 = vdwg.mxu0
        %v2798 = vadd.f32 %v1900, %v2255
        %v2799 = vadd.f32 %v1901, %v2257
        %v2800 = vadd.f32 %v1902, %v2560
        %v2801 = vadd.f32 %v1903, %v2562
        %v2802 = vadd.f32 %v1904, %v2261
        %v2803 = vadd.f32 %v1905, %v2263
        %v2804 = vadd.f32 %v1906, %v2566
        %v2805 = vadd.f32 %v1907, %v2568
        %v2806 = vadd.f32 %v1908, %v2267
        %v2807 = vadd.f32 %v1909, %v2269
        %v2808 = vadd.f32 %v1910, %v2572
        %v2809 = vadd.f32 %v1911, %v2574
        %v2810 = vadd.f32 %v1912, %v2273
        %v2811 = vadd.f32 %v1913, %v2275
        %v2812 = vadd.f32 %v1914, %v2578
        %v2813 = vadd.f32 %v1915, %v2580
        %v2814 = vadd.f32 %v1916, %v2279
        %v2815 = vadd.f32 %v1917, %v2281
        %v2816 = vadd.f32 %v1918, %v2584
        %v2817 = vadd.f32 %v1919, %v2586
        %v2818 = vadd.f32 %v1920, %v2285
        %v2819 = vadd.f32 %v1921, %v2287
        %v2820 = vadd.f32 %v1922, %v2590
        %v2821 = vadd.f32 %v1923, %v2592
        %v2822 = vadd.f32 %v1924, %v2291
        %v2823 = vadd.f32 %v1925, %v2293
        %v2824 = vadd.f32 %v1926, %v2596
        %v2825 = vadd.f32 %v1927, %v2598
        %v2826 = vadd.f32 %v1928, %v2297
        %v2827 = vadd.f32 %v1929, %v2299
        %v2828 = vadd.f32 %v1930, %v2602
        %v2829 = vadd.f32 %v1931, %v2604
        %v2830 = vadd.f32 %v1932, %v2303
        %v2831 = vadd.f32 %v1933, %v2305
        %v2832 = vadd.f32 %v1934, %v2608
        %v2833 = vadd.f32 %v1935, %v2610
        %v2834 = vadd.f32 %v1936, %v2309
        %v2835 = vadd.f32 %v1937, %v2311
        %v2836 = vadd.f32 %v1938, %v2614
        %v2837 = vadd.f32 %v1939, %v2616
        %v2838 = vadd.f32 %v1940, %v2315
        %v2839 = vadd.f32 %v1941, %v2317
        %v2840 = vadd.f32 %v1942, %v2620
        %v2841 = vadd.f32 %v1943, %v2622
        %v2842 = vadd.f32 %v1944, %v2321
        %v2843 = vadd.f32 %v1945, %v2323
        %v2844 = vadd.f32 %v1946, %v2626
        %v2845 = vadd.f32 %v1947, %v2628
        %v2846 = vadd.f32 %v1948, %v2327
        %v2847 = vadd.f32 %v1949, %v2329
        %v2848 = vadd.f32 %v1950, %v2632
        %v2849 = vadd.f32 %v1951, %v2634
        %v2850 = vadd.f32 %v1952, %v2333
        %v2851 = vadd.f32 %v1953, %v2335
        %v2852 = vadd.f32 %v1954, %v2638
        %v2853 = vadd.f32 %v1955, %v2640
        %v2854 = vadd.f32 %v1956, %v2339
        %v2855 = vadd.f32 %v1957, %v2341
        %v2856 = vadd.f32 %v1958, %v2644
        %v2857 = vadd.f32 %v1959, %v2646
        %v2858 = vadd.f32 %v1960, %v2345
        %v2859 = vadd.f32 %v1961, %v2347
        %v2860 = vadd.f32 %v1962, %v2650
        %v2861 = vadd.f32 %v1963, %v2652
        %v2862 = vadd.f32 %v1964, %v2351
        %v2863 = vadd.f32 %v1965, %v2353
        %v2864 = vadd.f32 %v1966, %v2656
        %v2865 = vadd.f32 %v1967, %v2658
        %v2866 = vadd.f32 %v1968, %v2357
        %v2867 = vadd.f32 %v1969, %v2359
        %v2868 = vadd.f32 %v1970, %v2662
        %v2869 = vadd.f32 %v1971, %v2664
        %v2870 = vadd.f32 %v1972, %v2363
        %v2871 = vadd.f32 %v1973, %v2365
        %v2872 = vadd.f32 %v1974, %v2668
        %v2873 = vadd.f32 %v1975, %v2670
        %v2874 = vadd.f32 %v1976, %v2369
        %v2875 = vadd.f32 %v1977, %v2371
        %v2876 = vadd.f32 %v1978, %v2674
        %v2877 = vadd.f32 %v1979, %v2676
        %v2878 = vadd.f32 %v1980, %v2375
        %v2879 = vadd.f32 %v1981, %v2377
        %v2880 = vadd.f32 %v1982, %v2680
        %v2881 = vadd.f32 %v1983, %v2682
        %v2882 = vadd.f32 %v1984, %v2381
        %v2883 = vadd.f32 %v1985, %v2383
        %v2884 = vadd.f32 %v1986, %v2686
        %v2885 = vadd.f32 %v1987, %v2688
        %v2886 = vadd.f32 %v1988, %v2387
        %v2887 = vadd.f32 %v1989, %v2389
        %v2888 = vadd.f32 %v1990, %v2692
        %v2889 = vadd.f32 %v1991, %v2694
        %v2890 = vadd.f32 %v1992, %v2393
        %v2891 = vadd.f32 %v1993, %v2395
        %v2892 = vadd.f32 %v1994, %v2698
        %v2893 = vadd.f32 %v1995, %v2700
        %v2894 = vadd.f32 %v1996, %v2399
        %v2895 = vadd.f32 %v1997, %v2401
        %v2896 = vadd.f32 %v1998, %v2704
        %v2897 = vadd.f32 %v1999, %v2706
        %v2898 = vadd.f32 %v2000, %v2405
        %v2899 = vadd.f32 %v2001, %v2407
        %v2900 = vadd.f32 %v2002, %v2710
        %v2901 = vadd.f32 %v2003, %v2712
        %v2902 = vadd.f32 %v2004, %v2411
        %v2903 = vadd.f32 %v2005, %v2413
        %v2904 = vadd.f32 %v2006, %v2716
        %v2905 = vadd.f32 %v2007, %v2718
        %v2906 = vadd.f32 %v2008, %v2417
        %v2907 = vadd.f32 %v2009, %v2419
        %v2908 = vadd.f32 %v2010, %v2722
        %v2909 = vadd.f32 %v2011, %v2724
        %v2910 = vadd.f32 %v2012, %v2423
        %v2911 = vadd.f32 %v2013, %v2425
        %v2912 = vadd.f32 %v2014, %v2728
        %v2913 = vadd.f32 %v2015, %v2730
        %v2914 = vadd.f32 %v2016, %v2429
        %v2915 = vadd.f32 %v2017, %v2431
        %v2916 = vadd.f32 %v2018, %v2734
        %v2917 = vadd.f32 %v2019, %v2736
        %v2918 = vadd.f32 %v2020, %v2435
        %v2919 = vadd.f32 %v2021, %v2437
        %v2920 = vadd.f32 %v2022, %v2740
        %v2921 = vadd.f32 %v2023, %v2742
        %v2922 = vadd.f32 %v2024, %v2441
        %v2923 = vadd.f32 %v2025, %v2443
        %v2924 = vadd.f32 %v2026, %v2746
        %v2925 = vadd.f32 %v2027, %v2748
        %v2926 = vadd.f32 %v2028, %v2447
        %v2927 = vadd.f32 %v2029, %v2449
        %v2928 = vadd.f32 %v2030, %v2752
        %v2929 = vadd.f32 %v2031, %v2754
        %v2930 = vadd.f32 %v2032, %v2453
        %v2931 = vadd.f32 %v2033, %v2455
        %v2932 = vadd.f32 %v2034, %v2758
        %v2933 = vadd.f32 %v2035, %v2760
        %v2934 = vadd.f32 %v2036, %v2459
        %v2935 = vadd.f32 %v2037, %v2461
        %v2936 = vadd.f32 %v2038, %v2764
        %v2937 = vadd.f32 %v2039, %v2766
        %v2938 = vadd.f32 %v2040, %v2465
        %v2939 = vadd.f32 %v2041, %v2467
        %v2940 = vadd.f32 %v2042, %v2770
        %v2941 = vadd.f32 %v2043, %v2772
        %v2942 = vadd.f32 %v2044, %v2471
        %v2943 = vadd.f32 %v2045, %v2473
        %v2944 = vadd.f32 %v2046, %v2776
        %v2945 = vadd.f32 %v2047, %v2778
        %v2946 = vadd.f32 %v2048, %v2477
        %v2947 = vadd.f32 %v2049, %v2479
        %v2948 = vadd.f32 %v2050, %v2782
        %v2949 = vadd.f32 %v2051, %v2784
        %v2950 = vadd.f32 %v2052, %v2483
        %v2951 = vadd.f32 %v2053, %v2485
        %v2952 = vadd.f32 %v2054, %v2788
        %v2953 = vadd.f32 %v2055, %v2790
        %v2954 = vadd.f32 %v2056, %v2489
        %v2955 = vadd.f32 %v2057, %v2491
        %v2956 = vadd.f32 %v2058, %v2794
        %v2957 = vadd.f32 %v2059, %v2796
        %2958 = vst [vmem:[#allocation3] sm:$0xff] %v2798
        %2959 = vst [vmem:[#allocation3 + $0x8] sm:$0xff] %v2799
        %2960 = vst [vmem:[#allocation3 + $0x10] sm:$0xff] %v2800
        %2961 = vst [vmem:[#allocation3 + $0x18] sm:$0xff] %v2801
        %2962 = vst [vmem:[#allocation3 + $0x20] sm:$0xff] %v2802
        %2963 = vst [vmem:[#allocation3 + $0x28] sm:$0xff] %v2803
        %2964 = vst [vmem:[#allocation3 + $0x30] sm:$0xff] %v2804
        %2965 = vst [vmem:[#allocation3 + $0x38] sm:$0xff] %v2805
        %2966 = vst [vmem:[#allocation3 + $0x40] sm:$0xff] %v2806
        %2967 = vst [vmem:[#allocation3 + $0x48] sm:$0xff] %v2807
        %2968 = vst [vmem:[#allocation3 + $0x50] sm:$0xff] %v2808
        %2969 = vst [vmem:[#allocation3 + $0x58] sm:$0xff] %v2809
        %2970 = vst [vmem:[#allocation3 + $0x60] sm:$0xff] %v2810
        %2971 = vst [vmem:[#allocation3 + $0x68] sm:$0xff] %v2811
        %2972 = vst [vmem:[#allocation3 + $0x70] sm:$0xff] %v2812
        %2973 = vst [vmem:[#allocation3 + $0x78] sm:$0xff] %v2813
        %2974 = vst [vmem:[#allocation3 + $0x80] sm:$0xff] %v2814
        %2975 = vst [vmem:[#allocation3 + $0x88] sm:$0xff] %v2815
        %2976 = vst [vmem:[#allocation3 + $0x90] sm:$0xff] %v2816
        %2977 = vst [vmem:[#allocation3 + $0x98] sm:$0xff] %v2817
        %2978 = vst [vmem:[#allocation3 + $0xa0] sm:$0xff] %v2818
        %2979 = vst [vmem:[#allocation3 + $0xa8] sm:$0xff] %v2819
        %2980 = vst [vmem:[#allocation3 + $0xb0] sm:$0xff] %v2820
        %2981 = vst [vmem:[#allocation3 + $0xb8] sm:$0xff] %v2821
        %2982 = vst [vmem:[#allocation3 + $0xc0] sm:$0xff] %v2822
        %2983 = vst [vmem:[#allocation3 + $0xc8] sm:$0xff] %v2823
        %2984 = vst [vmem:[#allocation3 + $0xd0] sm:$0xff] %v2824
        %2985 = vst [vmem:[#allocation3 + $0xd8] sm:$0xff] %v2825
        %2986 = vst [vmem:[#allocation3 + $0xe0] sm:$0xff] %v2826
        %2987 = vst [vmem:[#allocation3 + $0xe8] sm:$0xff] %v2827
        %2988 = vst [vmem:[#allocation3 + $0xf0] sm:$0xff] %v2828
        %2989 = vst [vmem:[#allocation3 + $0xf8] sm:$0xff] %v2829
        %2990 = vst [vmem:[#allocation3 + $0x100] sm:$0xff] %v2830
        %2991 = vst [vmem:[#allocation3 + $0x108] sm:$0xff] %v2831
        %2992 = vst [vmem:[#allocation3 + $0x110] sm:$0xff] %v2832
        %2993 = vst [vmem:[#allocation3 + $0x118] sm:$0xff] %v2833
        %2994 = vst [vmem:[#allocation3 + $0x120] sm:$0xff] %v2834
        %2995 = vst [vmem:[#allocation3 + $0x128] sm:$0xff] %v2835
        %2996 = vst [vmem:[#allocation3 + $0x130] sm:$0xff] %v2836
        %2997 = vst [vmem:[#allocation3 + $0x138] sm:$0xff] %v2837
        %2998 = vst [vmem:[#allocation3 + $0x140] sm:$0xff] %v2838
        %2999 = vst [vmem:[#allocation3 + $0x148] sm:$0xff] %v2839
        %3000 = vst [vmem:[#allocation3 + $0x150] sm:$0xff] %v2840
        %3001 = vst [vmem:[#allocation3 + $0x158] sm:$0xff] %v2841
        %3002 = vst [vmem:[#allocation3 + $0x160] sm:$0xff] %v2842
        %3003 = vst [vmem:[#allocation3 + $0x168] sm:$0xff] %v2843
        %3004 = vst [vmem:[#allocation3 + $0x170] sm:$0xff] %v2844
        %3005 = vst [vmem:[#allocation3 + $0x178] sm:$0xff] %v2845
        %3006 = vst [vmem:[#allocation3 + $0x180] sm:$0xff] %v2846
        %3007 = vst [vmem:[#allocation3 + $0x188] sm:$0xff] %v2847
        %3008 = vst [vmem:[#allocation3 + $0x190] sm:$0xff] %v2848
        %3009 = vst [vmem:[#allocation3 + $0x198] sm:$0xff] %v2849
        %3010 = vst [vmem:[#allocation3 + $0x1a0] sm:$0xff] %v2850
        %3011 = vst [vmem:[#allocation3 + $0x1a8] sm:$0xff] %v2851
        %3012 = vst [vmem:[#allocation3 + $0x1b0] sm:$0xff] %v2852
        %3013 = vst [vmem:[#allocation3 + $0x1b8] sm:$0xff] %v2853
        %3014 = vst [vmem:[#allocation3 + $0x1c0] sm:$0xff] %v2854
        %3015 = vst [vmem:[#allocation3 + $0x1c8] sm:$0xff] %v2855
        %3016 = vst [vmem:[#allocation3 + $0x1d0] sm:$0xff] %v2856
        %3017 = vst [vmem:[#allocation3 + $0x1d8] sm:$0xff] %v2857
        %3018 = vst [vmem:[#allocation3 + $0x1e0] sm:$0xff] %v2858
        %3019 = vst [vmem:[#allocation3 + $0x1e8] sm:$0xff] %v2859
        %3020 = vst [vmem:[#allocation3 + $0x1f0] sm:$0xff] %v2860
        %3021 = vst [vmem:[#allocation3 + $0x1f8] sm:$0xff] %v2861
        %3022 = vst [vmem:[#allocation3 + $0x200] sm:$0xff] %v2862
        %3023 = vst [vmem:[#allocation3 + $0x208] sm:$0xff] %v2863
        %3024 = vst [vmem:[#allocation3 + $0x210] sm:$0xff] %v2864
        %3025 = vst [vmem:[#allocation3 + $0x218] sm:$0xff] %v2865
        %3026 = vst [vmem:[#allocation3 + $0x220] sm:$0xff] %v2866
        %3027 = vst [vmem:[#allocation3 + $0x228] sm:$0xff] %v2867
        %3028 = vst [vmem:[#allocation3 + $0x230] sm:$0xff] %v2868
        %3029 = vst [vmem:[#allocation3 + $0x238] sm:$0xff] %v2869
        %3030 = vst [vmem:[#allocation3 + $0x240] sm:$0xff] %v2870
        %3031 = vst [vmem:[#allocation3 + $0x248] sm:$0xff] %v2871
        %3032 = vst [vmem:[#allocation3 + $0x250] sm:$0xff] %v2872
        %3033 = vst [vmem:[#allocation3 + $0x258] sm:$0xff] %v2873
        %3034 = vst [vmem:[#allocation3 + $0x260] sm:$0xff] %v2874
        %3035 = vst [vmem:[#allocation3 + $0x268] sm:$0xff] %v2875
        %3036 = vst [vmem:[#allocation3 + $0x270] sm:$0xff] %v2876
        %3037 = vst [vmem:[#allocation3 + $0x278] sm:$0xff] %v2877
        %3038 = vst [vmem:[#allocation3 + $0x280] sm:$0xff] %v2878
        %3039 = vst [vmem:[#allocation3 + $0x288] sm:$0xff] %v2879
        %3040 = vst [vmem:[#allocation3 + $0x290] sm:$0xff] %v2880
        %3041 = vst [vmem:[#allocation3 + $0x298] sm:$0xff] %v2881
        %3042 = vst [vmem:[#allocation3 + $0x2a0] sm:$0xff] %v2882
        %3043 = vst [vmem:[#allocation3 + $0x2a8] sm:$0xff] %v2883
        %3044 = vst [vmem:[#allocation3 + $0x2b0] sm:$0xff] %v2884
        %3045 = vst [vmem:[#allocation3 + $0x2b8] sm:$0xff] %v2885
        %3046 = vst [vmem:[#allocation3 + $0x2c0] sm:$0xff] %v2886
        %3047 = vst [vmem:[#allocation3 + $0x2c8] sm:$0xff] %v2887
        %3048 = vst [vmem:[#allocation3 + $0x2d0] sm:$0xff] %v2888
        %3049 = vst [vmem:[#allocation3 + $0x2d8] sm:$0xff] %v2889
        %3050 = vst [vmem:[#allocation3 + $0x2e0] sm:$0xff] %v2890
        %3051 = vst [vmem:[#allocation3 + $0x2e8] sm:$0xff] %v2891
        %3052 = vst [vmem:[#allocation3 + $0x2f0] sm:$0xff] %v2892
        %3053 = vst [vmem:[#allocation3 + $0x2f8] sm:$0xff] %v2893
        %3054 = vst [vmem:[#allocation3 + $0x300] sm:$0xff] %v2894
        %3055 = vst [vmem:[#allocation3 + $0x308] sm:$0xff] %v2895
        %3056 = vst [vmem:[#allocation3 + $0x310] sm:$0xff] %v2896
        %3057 = vst [vmem:[#allocation3 + $0x318] sm:$0xff] %v2897
        %3058 = vst [vmem:[#allocation3 + $0x320] sm:$0xff] %v2898
        %3059 = vst [vmem:[#allocation3 + $0x328] sm:$0xff] %v2899
        %3060 = vst [vmem:[#allocation3 + $0x330] sm:$0xff] %v2900
        %3061 = vst [vmem:[#allocation3 + $0x338] sm:$0xff] %v2901
        %3062 = vst [vmem:[#allocation3 + $0x340] sm:$0xff] %v2902
        %3063 = vst [vmem:[#allocation3 + $0x348] sm:$0xff] %v2903
        %3064 = vst [vmem:[#allocation3 + $0x350] sm:$0xff] %v2904
        %3065 = vst [vmem:[#allocation3 + $0x358] sm:$0xff] %v2905
        %3066 = vst [vmem:[#allocation3 + $0x360] sm:$0xff] %v2906
        %3067 = vst [vmem:[#allocation3 + $0x368] sm:$0xff] %v2907
        %3068 = vst [vmem:[#allocation3 + $0x370] sm:$0xff] %v2908
        %3069 = vst [vmem:[#allocation3 + $0x378] sm:$0xff] %v2909
        %3070 = vst [vmem:[#allocation3 + $0x380] sm:$0xff] %v2910
        %3071 = vst [vmem:[#allocation3 + $0x388] sm:$0xff] %v2911
        %3072 = vst [vmem:[#allocation3 + $0x390] sm:$0xff] %v2912
        %3073 = vst [vmem:[#allocation3 + $0x398] sm:$0xff] %v2913
        %3074 = vst [vmem:[#allocation3 + $0x3a0] sm:$0xff] %v2914
        %3075 = vst [vmem:[#allocation3 + $0x3a8] sm:$0xff] %v2915
        %3076 = vst [vmem:[#allocation3 + $0x3b0] sm:$0xff] %v2916
        %3077 = vst [vmem:[#allocation3 + $0x3b8] sm:$0xff] %v2917
        %3078 = vst [vmem:[#allocation3 + $0x3c0] sm:$0xff] %v2918
        %3079 = vst [vmem:[#allocation3 + $0x3c8] sm:$0xff] %v2919
        %3080 = vst [vmem:[#allocation3 + $0x3d0] sm:$0xff] %v2920
        %3081 = vst [vmem:[#allocation3 + $0x3d8] sm:$0xff] %v2921
        %3082 = vst [vmem:[#allocation3 + $0x3e0] sm:$0xff] %v2922
        %3083 = vst [vmem:[#allocation3 + $0x3e8] sm:$0xff] %v2923
        %3084 = vst [vmem:[#allocation3 + $0x3f0] sm:$0xff] %v2924
        %3085 = vst [vmem:[#allocation3 + $0x3f8] sm:$0xff] %v2925
        %3086 = vst [vmem:[#allocation3 + $0x400] sm:$0xff] %v2926
        %3087 = vst [vmem:[#allocation3 + $0x408] sm:$0xff] %v2927
        %3088 = vst [vmem:[#allocation3 + $0x410] sm:$0xff] %v2928
        %3089 = vst [vmem:[#allocation3 + $0x418] sm:$0xff] %v2929
        %3090 = vst [vmem:[#allocation3 + $0x420] sm:$0xff] %v2930
        %3091 = vst [vmem:[#allocation3 + $0x428] sm:$0xff] %v2931
        %3092 = vst [vmem:[#allocation3 + $0x430] sm:$0xff] %v2932
        %3093 = vst [vmem:[#allocation3 + $0x438] sm:$0xff] %v2933
        %3094 = vst [vmem:[#allocation3 + $0x440] sm:$0xff] %v2934
        %3095 = vst [vmem:[#allocation3 + $0x448] sm:$0xff] %v2935
        %3096 = vst [vmem:[#allocation3 + $0x450] sm:$0xff] %v2936
        %3097 = vst [vmem:[#allocation3 + $0x458] sm:$0xff] %v2937
        %3098 = vst [vmem:[#allocation3 + $0x460] sm:$0xff] %v2938
        %3099 = vst [vmem:[#allocation3 + $0x468] sm:$0xff] %v2939
        %3100 = vst [vmem:[#allocation3 + $0x470] sm:$0xff] %v2940
        %3101 = vst [vmem:[#allocation3 + $0x478] sm:$0xff] %v2941
        %3102 = vst [vmem:[#allocation3 + $0x480] sm:$0xff] %v2942
        %3103 = vst [vmem:[#allocation3 + $0x488] sm:$0xff] %v2943
        %3104 = vst [vmem:[#allocation3 + $0x490] sm:$0xff] %v2944
        %3105 = vst [vmem:[#allocation3 + $0x498] sm:$0xff] %v2945
        %3106 = vst [vmem:[#allocation3 + $0x4a0] sm:$0xff] %v2946
        %3107 = vst [vmem:[#allocation3 + $0x4a8] sm:$0xff] %v2947
        %3108 = vst [vmem:[#allocation3 + $0x4b0] sm:$0xff] %v2948
        %3109 = vst [vmem:[#allocation3 + $0x4b8] sm:$0xff] %v2949
        %3110 = vst [vmem:[#allocation3 + $0x4c0] sm:$0xff] %v2950
        %3111 = vst [vmem:[#allocation3 + $0x4c8] sm:$0xff] %v2951
        %3112 = vst [vmem:[#allocation3 + $0x4d0] sm:$0xff] %v2952
        %3113 = vst [vmem:[#allocation3 + $0x4d8] sm:$0xff] %v2953
        %3114 = vst [vmem:[#allocation3 + $0x4e0] sm:$0xff] %v2954
        %3115 = vst [vmem:[#allocation3 + $0x4e8] sm:$0xff] %v2955
        %3116 = vst [vmem:[#allocation3 + $0x4f0] sm:$0xff] %v2956
        %3117 = vst [vmem:[#allocation3 + $0x4f8] sm:$0xff] %v2957
        // Predicated region
        $region49: #{tpu_custom_call.1} parent=31 // pred_check
          %p3118 = pneg %p278
        $region50: #{tpu_custom_call.1} parent=31 // pred_check_branch
          %3120 = sbr.rel (%p3118) target = $region52
        $region51: #{tpu_custom_call.1} parent=31 // pred_region
          %v3121 = vld [vmem:[#allocation2] sm:$0xff]
          %v3122 = vld [vmem:[#allocation2 + $0x8] sm:$0xff]
          %v3123 = vld [vmem:[#allocation2 + $0x10] sm:$0xff]
          %v3124 = vld [vmem:[#allocation2 + $0x18] sm:$0xff]
          %v3125 = vld [vmem:[#allocation2 + $0x20] sm:$0xff]
          %v3126 = vld [vmem:[#allocation2 + $0x28] sm:$0xff]
          %v3127 = vld [vmem:[#allocation2 + $0x30] sm:$0xff]
          %v3128 = vld [vmem:[#allocation2 + $0x38] sm:$0xff]
          %v3129 = vld [vmem:[#allocation2 + $0x40] sm:$0xff]
          %v3130 = vld [vmem:[#allocation2 + $0x48] sm:$0xff]
          %v3131 = vld [vmem:[#allocation2 + $0x50] sm:$0xff]
          %v3132 = vld [vmem:[#allocation2 + $0x58] sm:$0xff]
          %v3133 = vld [vmem:[#allocation2 + $0x60] sm:$0xff]
          %v3134 = vld [vmem:[#allocation2 + $0x68] sm:$0xff]
          %v3135 = vld [vmem:[#allocation2 + $0x70] sm:$0xff]
          %v3136 = vld [vmem:[#allocation2 + $0x78] sm:$0xff]
          %v3137 = vld [vmem:[#allocation2 + $0x80] sm:$0xff]
          %v3138 = vld [vmem:[#allocation2 + $0x88] sm:$0xff]
          %v3139 = vld [vmem:[#allocation2 + $0x90] sm:$0xff]
          %v3140 = vld [vmem:[#allocation2 + $0x98] sm:$0xff]
          %v3141 = vld [vmem:[#allocation2 + $0xa0] sm:$0xff]
          %v3142 = vld [vmem:[#allocation2 + $0xa8] sm:$0xff]
          %v3143 = vld [vmem:[#allocation2 + $0xb0] sm:$0xff]
          %v3144 = vld [vmem:[#allocation2 + $0xb8] sm:$0xff]
          %v3145 = vld [vmem:[#allocation2 + $0xc0] sm:$0xff]
          %v3146 = vld [vmem:[#allocation2 + $0xc8] sm:$0xff]
          %v3147 = vld [vmem:[#allocation2 + $0xd0] sm:$0xff]
          %v3148 = vld [vmem:[#allocation2 + $0xd8] sm:$0xff]
          %v3149 = vld [vmem:[#allocation2 + $0xe0] sm:$0xff]
          %v3150 = vld [vmem:[#allocation2 + $0xe8] sm:$0xff]
          %v3151 = vld [vmem:[#allocation2 + $0xf0] sm:$0xff]
          %v3152 = vld [vmem:[#allocation2 + $0xf8] sm:$0xff]
          %v3153 = vld [vmem:[#allocation2 + $0x100] sm:$0xff]
          %v3154 = vld [vmem:[#allocation2 + $0x108] sm:$0xff]
          %v3155 = vld [vmem:[#allocation2 + $0x110] sm:$0xff]
          %v3156 = vld [vmem:[#allocation2 + $0x118] sm:$0xff]
          %v3157 = vld [vmem:[#allocation2 + $0x120] sm:$0xff]
          %v3158 = vld [vmem:[#allocation2 + $0x128] sm:$0xff]
          %v3159 = vld [vmem:[#allocation2 + $0x130] sm:$0xff]
          %v3160 = vld [vmem:[#allocation2 + $0x138] sm:$0xff]
          %v3161 = vld [vmem:[#allocation2 + $0x140] sm:$0xff]
          %v3162 = vld [vmem:[#allocation2 + $0x148] sm:$0xff]
          %v3163 = vld [vmem:[#allocation2 + $0x150] sm:$0xff]
          %v3164 = vld [vmem:[#allocation2 + $0x158] sm:$0xff]
          %v3165 = vld [vmem:[#allocation2 + $0x160] sm:$0xff]
          %v3166 = vld [vmem:[#allocation2 + $0x168] sm:$0xff]
          %v3167 = vld [vmem:[#allocation2 + $0x170] sm:$0xff]
          %v3168 = vld [vmem:[#allocation2 + $0x178] sm:$0xff]
          %v3169 = vld [vmem:[#allocation2 + $0x180] sm:$0xff]
          %v3170 = vld [vmem:[#allocation2 + $0x188] sm:$0xff]
          %v3171 = vld [vmem:[#allocation2 + $0x190] sm:$0xff]
          %v3172 = vld [vmem:[#allocation2 + $0x198] sm:$0xff]
          %v3173 = vld [vmem:[#allocation2 + $0x1a0] sm:$0xff]
          %v3174 = vld [vmem:[#allocation2 + $0x1a8] sm:$0xff]
          %v3175 = vld [vmem:[#allocation2 + $0x1b0] sm:$0xff]
          %v3176 = vld [vmem:[#allocation2 + $0x1b8] sm:$0xff]
          %v3177 = vld [vmem:[#allocation2 + $0x1c0] sm:$0xff]
          %v3178 = vld [vmem:[#allocation2 + $0x1c8] sm:$0xff]
          %v3179 = vld [vmem:[#allocation2 + $0x1d0] sm:$0xff]
          %v3180 = vld [vmem:[#allocation2 + $0x1d8] sm:$0xff]
          %v3181 = vld [vmem:[#allocation2 + $0x1e0] sm:$0xff]
          %v3182 = vld [vmem:[#allocation2 + $0x1e8] sm:$0xff]
          %v3183 = vld [vmem:[#allocation2 + $0x1f0] sm:$0xff]
          %v3184 = vld [vmem:[#allocation2 + $0x1f8] sm:$0xff]
          %v3185 = vld [vmem:[#allocation2 + $0x200] sm:$0xff]
          %v3186 = vld [vmem:[#allocation2 + $0x208] sm:$0xff]
          %v3187 = vld [vmem:[#allocation2 + $0x210] sm:$0xff]
          %v3188 = vld [vmem:[#allocation2 + $0x218] sm:$0xff]
          %v3189 = vld [vmem:[#allocation2 + $0x220] sm:$0xff]
          %v3190 = vld [vmem:[#allocation2 + $0x228] sm:$0xff]
          %v3191 = vld [vmem:[#allocation2 + $0x230] sm:$0xff]
          %v3192 = vld [vmem:[#allocation2 + $0x238] sm:$0xff]
          %v3193 = vld [vmem:[#allocation2 + $0x240] sm:$0xff]
          %v3194 = vld [vmem:[#allocation2 + $0x248] sm:$0xff]
          %v3195 = vld [vmem:[#allocation2 + $0x250] sm:$0xff]
          %v3196 = vld [vmem:[#allocation2 + $0x258] sm:$0xff]
          %v3197 = vld [vmem:[#allocation2 + $0x260] sm:$0xff]
          %v3198 = vld [vmem:[#allocation2 + $0x268] sm:$0xff]
          %v3199 = vld [vmem:[#allocation2 + $0x270] sm:$0xff]
          %v3200 = vld [vmem:[#allocation2 + $0x278] sm:$0xff]
          %v3201 = vld [vmem:[#allocation2 + $0x280] sm:$0xff]
          %v3202 = vld [vmem:[#allocation2 + $0x288] sm:$0xff]
          %v3203 = vld [vmem:[#allocation2 + $0x290] sm:$0xff]
          %v3204 = vld [vmem:[#allocation2 + $0x298] sm:$0xff]
          %v3205 = vld [vmem:[#allocation2 + $0x2a0] sm:$0xff]
          %v3206 = vld [vmem:[#allocation2 + $0x2a8] sm:$0xff]
          %v3207 = vld [vmem:[#allocation2 + $0x2b0] sm:$0xff]
          %v3208 = vld [vmem:[#allocation2 + $0x2b8] sm:$0xff]
          %v3209 = vld [vmem:[#allocation2 + $0x2c0] sm:$0xff]
          %v3210 = vld [vmem:[#allocation2 + $0x2c8] sm:$0xff]
          %v3211 = vld [vmem:[#allocation2 + $0x2d0] sm:$0xff]
          %v3212 = vld [vmem:[#allocation2 + $0x2d8] sm:$0xff]
          %v3213 = vld [vmem:[#allocation2 + $0x2e0] sm:$0xff]
          %v3214 = vld [vmem:[#allocation2 + $0x2e8] sm:$0xff]
          %v3215 = vld [vmem:[#allocation2 + $0x2f0] sm:$0xff]
          %v3216 = vld [vmem:[#allocation2 + $0x2f8] sm:$0xff]
          %v3217 = vld [vmem:[#allocation2 + $0x300] sm:$0xff]
          %v3218 = vld [vmem:[#allocation2 + $0x308] sm:$0xff]
          %v3219 = vld [vmem:[#allocation2 + $0x310] sm:$0xff]
          %v3220 = vld [vmem:[#allocation2 + $0x318] sm:$0xff]
          %v3221 = vld [vmem:[#allocation2 + $0x320] sm:$0xff]
          %v3222 = vld [vmem:[#allocation2 + $0x328] sm:$0xff]
          %v3223 = vld [vmem:[#allocation2 + $0x330] sm:$0xff]
          %v3224 = vld [vmem:[#allocation2 + $0x338] sm:$0xff]
          %v3225 = vld [vmem:[#allocation2 + $0x340] sm:$0xff]
          %v3226 = vld [vmem:[#allocation2 + $0x348] sm:$0xff]
          %v3227 = vld [vmem:[#allocation2 + $0x350] sm:$0xff]
          %v3228 = vld [vmem:[#allocation2 + $0x358] sm:$0xff]
          %v3229 = vld [vmem:[#allocation2 + $0x360] sm:$0xff]
          %v3230 = vld [vmem:[#allocation2 + $0x368] sm:$0xff]
          %v3231 = vld [vmem:[#allocation2 + $0x370] sm:$0xff]
          %v3232 = vld [vmem:[#allocation2 + $0x378] sm:$0xff]
          %v3233 = vld [vmem:[#allocation2 + $0x380] sm:$0xff]
          %v3234 = vld [vmem:[#allocation2 + $0x388] sm:$0xff]
          %v3235 = vld [vmem:[#allocation2 + $0x390] sm:$0xff]
          %v3236 = vld [vmem:[#allocation2 + $0x398] sm:$0xff]
          %v3237 = vld [vmem:[#allocation2 + $0x3a0] sm:$0xff]
          %v3238 = vld [vmem:[#allocation2 + $0x3a8] sm:$0xff]
          %v3239 = vld [vmem:[#allocation2 + $0x3b0] sm:$0xff]
          %v3240 = vld [vmem:[#allocation2 + $0x3b8] sm:$0xff]
          %v3241 = vld [vmem:[#allocation2 + $0x3c0] sm:$0xff]
          %v3242 = vld [vmem:[#allocation2 + $0x3c8] sm:$0xff]
          %v3243 = vld [vmem:[#allocation2 + $0x3d0] sm:$0xff]
          %v3244 = vld [vmem:[#allocation2 + $0x3d8] sm:$0xff]
          %v3245 = vld [vmem:[#allocation2 + $0x3e0] sm:$0xff]
          %v3246 = vld [vmem:[#allocation2 + $0x3e8] sm:$0xff]
          %v3247 = vld [vmem:[#allocation2 + $0x3f0] sm:$0xff]
          %v3248 = vld [vmem:[#allocation2 + $0x3f8] sm:$0xff]
          %v3249 = vld [vmem:[#allocation2 + $0x400] sm:$0xff]
          %v3250 = vld [vmem:[#allocation2 + $0x408] sm:$0xff]
          %v3251 = vld [vmem:[#allocation2 + $0x410] sm:$0xff]
          %v3252 = vld [vmem:[#allocation2 + $0x418] sm:$0xff]
          %v3253 = vld [vmem:[#allocation2 + $0x420] sm:$0xff]
          %v3254 = vld [vmem:[#allocation2 + $0x428] sm:$0xff]
          %v3255 = vld [vmem:[#allocation2 + $0x430] sm:$0xff]
          %v3256 = vld [vmem:[#allocation2 + $0x438] sm:$0xff]
          %v3257 = vld [vmem:[#allocation2 + $0x440] sm:$0xff]
          %v3258 = vld [vmem:[#allocation2 + $0x448] sm:$0xff]
          %v3259 = vld [vmem:[#allocation2 + $0x450] sm:$0xff]
          %v3260 = vld [vmem:[#allocation2 + $0x458] sm:$0xff]
          %v3261 = vld [vmem:[#allocation2 + $0x460] sm:$0xff]
          %v3262 = vld [vmem:[#allocation2 + $0x468] sm:$0xff]
          %v3263 = vld [vmem:[#allocation2 + $0x470] sm:$0xff]
          %v3264 = vld [vmem:[#allocation2 + $0x478] sm:$0xff]
          %v3265 = vld [vmem:[#allocation2 + $0x480] sm:$0xff]
          %v3266 = vld [vmem:[#allocation2 + $0x488] sm:$0xff]
          %v3267 = vld [vmem:[#allocation2 + $0x490] sm:$0xff]
          %v3268 = vld [vmem:[#allocation2 + $0x498] sm:$0xff]
          %v3269 = vld [vmem:[#allocation2 + $0x4a0] sm:$0xff]
          %v3270 = vld [vmem:[#allocation2 + $0x4a8] sm:$0xff]
          %v3271 = vld [vmem:[#allocation2 + $0x4b0] sm:$0xff]
          %v3272 = vld [vmem:[#allocation2 + $0x4b8] sm:$0xff]
          %v3273 = vld [vmem:[#allocation2 + $0x4c0] sm:$0xff]
          %v3274 = vld [vmem:[#allocation2 + $0x4c8] sm:$0xff]
          %v3275 = vld [vmem:[#allocation2 + $0x4d0] sm:$0xff]
          %v3276 = vld [vmem:[#allocation2 + $0x4d8] sm:$0xff]
          %v3277 = vld [vmem:[#allocation2 + $0x4e0] sm:$0xff]
          %v3278 = vld [vmem:[#allocation2 + $0x4e8] sm:$0xff]
          %v3279 = vld [vmem:[#allocation2 + $0x4f0] sm:$0xff]
          %v3280 = vld [vmem:[#allocation2 + $0x4f8] sm:$0xff]
          %v3281 = vmul.f32 %v3121, 0.5
          %v3282 = vmul.f32 %v3122, 0.5
          %v3283 = vmul.f32 %v3123, 0.5
          %v3284 = vmul.f32 %v3124, 0.5
          %v3285 = vmul.f32 %v3125, 0.5
          %v3286 = vmul.f32 %v3126, 0.5
          %v3287 = vmul.f32 %v3127, 0.5
          %v3288 = vmul.f32 %v3128, 0.5
          %v3289 = vmul.f32 %v3129, 0.5
          %v3290 = vmul.f32 %v3130, 0.5
          %v3291 = vmul.f32 %v3131, 0.5
          %v3292 = vmul.f32 %v3132, 0.5
          %v3293 = vmul.f32 %v3133, 0.5
          %v3294 = vmul.f32 %v3134, 0.5
          %v3295 = vmul.f32 %v3135, 0.5
          %v3296 = vmul.f32 %v3136, 0.5
          %v3297 = vmul.f32 %v3137, 0.5
          %v3298 = vmul.f32 %v3138, 0.5
          %v3299 = vmul.f32 %v3139, 0.5
          %v3300 = vmul.f32 %v3140, 0.5
          %v3301 = vmul.f32 %v3141, 0.5
          %v3302 = vmul.f32 %v3142, 0.5
          %v3303 = vmul.f32 %v3143, 0.5
          %v3304 = vmul.f32 %v3144, 0.5
          %v3305 = vmul.f32 %v3145, 0.5
          %v3306 = vmul.f32 %v3146, 0.5
          %v3307 = vmul.f32 %v3147, 0.5
          %v3308 = vmul.f32 %v3148, 0.5
          %v3309 = vmul.f32 %v3149, 0.5
          %v3310 = vmul.f32 %v3150, 0.5
          %v3311 = vmul.f32 %v3151, 0.5
          %v3312 = vmul.f32 %v3152, 0.5
          %v3313 = vmul.f32 %v3153, 0.5
          %v3314 = vmul.f32 %v3154, 0.5
          %v3315 = vmul.f32 %v3155, 0.5
          %v3316 = vmul.f32 %v3156, 0.5
          %v3317 = vmul.f32 %v3157, 0.5
          %v3318 = vmul.f32 %v3158, 0.5
          %v3319 = vmul.f32 %v3159, 0.5
          %v3320 = vmul.f32 %v3160, 0.5
          %v3321 = vmul.f32 %v3161, 0.5
          %v3322 = vmul.f32 %v3162, 0.5
          %v3323 = vmul.f32 %v3163, 0.5
          %v3324 = vmul.f32 %v3164, 0.5
          %v3325 = vmul.f32 %v3165, 0.5
          %v3326 = vmul.f32 %v3166, 0.5
          %v3327 = vmul.f32 %v3167, 0.5
          %v3328 = vmul.f32 %v3168, 0.5
          %v3329 = vmul.f32 %v3169, 0.5
          %v3330 = vmul.f32 %v3170, 0.5
          %v3331 = vmul.f32 %v3171, 0.5
          %v3332 = vmul.f32 %v3172, 0.5
          %v3333 = vmul.f32 %v3173, 0.5
          %v3334 = vmul.f32 %v3174, 0.5
          %v3335 = vmul.f32 %v3175, 0.5
          %v3336 = vmul.f32 %v3176, 0.5
          %v3337 = vmul.f32 %v3177, 0.5
          %v3338 = vmul.f32 %v3178, 0.5
          %v3339 = vmul.f32 %v3179, 0.5
          %v3340 = vmul.f32 %v3180, 0.5
          %v3341 = vmul.f32 %v3181, 0.5
          %v3342 = vmul.f32 %v3182, 0.5
          %v3343 = vmul.f32 %v3183, 0.5
          %v3344 = vmul.f32 %v3184, 0.5
          %v3345 = vmul.f32 %v3185, 0.5
          %v3346 = vmul.f32 %v3186, 0.5
          %v3347 = vmul.f32 %v3187, 0.5
          %v3348 = vmul.f32 %v3188, 0.5
          %v3349 = vmul.f32 %v3189, 0.5
          %v3350 = vmul.f32 %v3190, 0.5
          %v3351 = vmul.f32 %v3191, 0.5
          %v3352 = vmul.f32 %v3192, 0.5
          %v3353 = vmul.f32 %v3193, 0.5
          %v3354 = vmul.f32 %v3194, 0.5
          %v3355 = vmul.f32 %v3195, 0.5
          %v3356 = vmul.f32 %v3196, 0.5
          %v3357 = vmul.f32 %v3197, 0.5
          %v3358 = vmul.f32 %v3198, 0.5
          %v3359 = vmul.f32 %v3199, 0.5
          %v3360 = vmul.f32 %v3200, 0.5
          %v3361 = vmul.f32 %v3201, 0.5
          %v3362 = vmul.f32 %v3202, 0.5
          %v3363 = vmul.f32 %v3203, 0.5
          %v3364 = vmul.f32 %v3204, 0.5
          %v3365 = vmul.f32 %v3205, 0.5
          %v3366 = vmul.f32 %v3206, 0.5
          %v3367 = vmul.f32 %v3207, 0.5
          %v3368 = vmul.f32 %v3208, 0.5
          %v3369 = vmul.f32 %v3209, 0.5
          %v3370 = vmul.f32 %v3210, 0.5
          %v3371 = vmul.f32 %v3211, 0.5
          %v3372 = vmul.f32 %v3212, 0.5
          %v3373 = vmul.f32 %v3213, 0.5
          %v3374 = vmul.f32 %v3214, 0.5
          %v3375 = vmul.f32 %v3215, 0.5
          %v3376 = vmul.f32 %v3216, 0.5
          %v3377 = vmul.f32 %v3217, 0.5
          %v3378 = vmul.f32 %v3218, 0.5
          %v3379 = vmul.f32 %v3219, 0.5
          %v3380 = vmul.f32 %v3220, 0.5
          %v3381 = vmul.f32 %v3221, 0.5
          %v3382 = vmul.f32 %v3222, 0.5
          %v3383 = vmul.f32 %v3223, 0.5
          %v3384 = vmul.f32 %v3224, 0.5
          %v3385 = vmul.f32 %v3225, 0.5
          %v3386 = vmul.f32 %v3226, 0.5
          %v3387 = vmul.f32 %v3227, 0.5
          %v3388 = vmul.f32 %v3228, 0.5
          %v3389 = vmul.f32 %v3229, 0.5
          %v3390 = vmul.f32 %v3230, 0.5
          %v3391 = vmul.f32 %v3231, 0.5
          %v3392 = vmul.f32 %v3232, 0.5
          %v3393 = vmul.f32 %v3233, 0.5
          %v3394 = vmul.f32 %v3234, 0.5
          %v3395 = vmul.f32 %v3235, 0.5
          %v3396 = vmul.f32 %v3236, 0.5
          %v3397 = vmul.f32 %v3237, 0.5
          %v3398 = vmul.f32 %v3238, 0.5
          %v3399 = vmul.f32 %v3239, 0.5
          %v3400 = vmul.f32 %v3240, 0.5
          %v3401 = vmul.f32 %v3241, 0.5
          %v3402 = vmul.f32 %v3242, 0.5
          %v3403 = vmul.f32 %v3243, 0.5
          %v3404 = vmul.f32 %v3244, 0.5
          %v3405 = vmul.f32 %v3245, 0.5
          %v3406 = vmul.f32 %v3246, 0.5
          %v3407 = vmul.f32 %v3247, 0.5
          %v3408 = vmul.f32 %v3248, 0.5
          %v3409 = vmul.f32 %v3249, 0.5
          %v3410 = vmul.f32 %v3250, 0.5
          %v3411 = vmul.f32 %v3251, 0.5
          %v3412 = vmul.f32 %v3252, 0.5
          %v3413 = vmul.f32 %v3253, 0.5
          %v3414 = vmul.f32 %v3254, 0.5
          %v3415 = vmul.f32 %v3255, 0.5
          %v3416 = vmul.f32 %v3256, 0.5
          %v3417 = vmul.f32 %v3257, 0.5
          %v3418 = vmul.f32 %v3258, 0.5
          %v3419 = vmul.f32 %v3259, 0.5
          %v3420 = vmul.f32 %v3260, 0.5
          %v3421 = vmul.f32 %v3261, 0.5
          %v3422 = vmul.f32 %v3262, 0.5
          %v3423 = vmul.f32 %v3263, 0.5
          %v3424 = vmul.f32 %v3264, 0.5
          %v3425 = vmul.f32 %v3265, 0.5
          %v3426 = vmul.f32 %v3266, 0.5
          %v3427 = vmul.f32 %v3267, 0.5
          %v3428 = vmul.f32 %v3268, 0.5
          %v3429 = vmul.f32 %v3269, 0.5
          %v3430 = vmul.f32 %v3270, 0.5
          %v3431 = vmul.f32 %v3271, 0.5
          %v3432 = vmul.f32 %v3272, 0.5
          %v3433 = vmul.f32 %v3273, 0.5
          %v3434 = vmul.f32 %v3274, 0.5
          %v3435 = vmul.f32 %v3275, 0.5
          %v3436 = vmul.f32 %v3276, 0.5
          %v3437 = vmul.f32 %v3277, 0.5
          %v3438 = vmul.f32 %v3278, 0.5
          %v3439 = vmul.f32 %v3279, 0.5
          %v3440 = vmul.f32 %v3280, 0.5
          %v3441 = vmul.f32 %v3121, 0.70710677
          %v3442 = vmul.f32 %v3122, 0.70710677
          %v3443 = vmul.f32 %v3123, 0.70710677
          %v3444 = vmul.f32 %v3124, 0.70710677
          %v3445 = vmul.f32 %v3125, 0.70710677
          %v3446 = vmul.f32 %v3126, 0.70710677
          %v3447 = vmul.f32 %v3127, 0.70710677
          %v3448 = vmul.f32 %v3128, 0.70710677
          %v3449 = vmul.f32 %v3129, 0.70710677
          %v3450 = vmul.f32 %v3130, 0.70710677
          %v3451 = vmul.f32 %v3131, 0.70710677
          %v3452 = vmul.f32 %v3132, 0.70710677
          %v3453 = vmul.f32 %v3133, 0.70710677
          %v3454 = vmul.f32 %v3134, 0.70710677
          %v3455 = vmul.f32 %v3135, 0.70710677
          %v3456 = vmul.f32 %v3136, 0.70710677
          %v3457 = vmul.f32 %v3137, 0.70710677
          %v3458 = vmul.f32 %v3138, 0.70710677
          %v3459 = vmul.f32 %v3139, 0.70710677
          %v3460 = vmul.f32 %v3140, 0.70710677
          %v3461 = vmul.f32 %v3141, 0.70710677
          %v3462 = vmul.f32 %v3142, 0.70710677
          %v3463 = vmul.f32 %v3143, 0.70710677
          %v3464 = vmul.f32 %v3144, 0.70710677
          %v3465 = vmul.f32 %v3145, 0.70710677
          %v3466 = vmul.f32 %v3146, 0.70710677
          %v3467 = vmul.f32 %v3147, 0.70710677
          %v3468 = vmul.f32 %v3148, 0.70710677
          %v3469 = vmul.f32 %v3149, 0.70710677
          %v3470 = vmul.f32 %v3150, 0.70710677
          %v3471 = vmul.f32 %v3151, 0.70710677
          %v3472 = vmul.f32 %v3152, 0.70710677
          %v3473 = vmul.f32 %v3153, 0.70710677
          %v3474 = vmul.f32 %v3154, 0.70710677
          %v3475 = vmul.f32 %v3155, 0.70710677
          %v3476 = vmul.f32 %v3156, 0.70710677
          %v3477 = vmul.f32 %v3157, 0.70710677
          %v3478 = vmul.f32 %v3158, 0.70710677
          %v3479 = vmul.f32 %v3159, 0.70710677
          %v3480 = vmul.f32 %v3160, 0.70710677
          %v3481 = vmul.f32 %v3161, 0.70710677
          %v3482 = vmul.f32 %v3162, 0.70710677
          %v3483 = vmul.f32 %v3163, 0.70710677
          %v3484 = vmul.f32 %v3164, 0.70710677
          %v3485 = vmul.f32 %v3165, 0.70710677
          %v3486 = vmul.f32 %v3166, 0.70710677
          %v3487 = vmul.f32 %v3167, 0.70710677
          %v3488 = vmul.f32 %v3168, 0.70710677
          %v3489 = vmul.f32 %v3169, 0.70710677
          %v3490 = vmul.f32 %v3170, 0.70710677
          %v3491 = vmul.f32 %v3171, 0.70710677
          %v3492 = vmul.f32 %v3172, 0.70710677
          %v3493 = vmul.f32 %v3173, 0.70710677
          %v3494 = vmul.f32 %v3174, 0.70710677
          %v3495 = vmul.f32 %v3175, 0.70710677
          %v3496 = vmul.f32 %v3176, 0.70710677
          %v3497 = vmul.f32 %v3177, 0.70710677
          %v3498 = vmul.f32 %v3178, 0.70710677
          %v3499 = vmul.f32 %v3179, 0.70710677
          %v3500 = vmul.f32 %v3180, 0.70710677
          %v3501 = vmul.f32 %v3181, 0.70710677
          %v3502 = vmul.f32 %v3182, 0.70710677
          %v3503 = vmul.f32 %v3183, 0.70710677
          %v3504 = vmul.f32 %v3184, 0.70710677
          %v3505 = vmul.f32 %v3185, 0.70710677
          %v3506 = vmul.f32 %v3186, 0.70710677
          %v3507 = vmul.f32 %v3187, 0.70710677
          %v3508 = vmul.f32 %v3188, 0.70710677
          %v3509 = vmul.f32 %v3189, 0.70710677
          %v3510 = vmul.f32 %v3190, 0.70710677
          %v3511 = vmul.f32 %v3191, 0.70710677
          %v3512 = vmul.f32 %v3192, 0.70710677
          %v3513 = vmul.f32 %v3193, 0.70710677
          %v3514 = vmul.f32 %v3194, 0.70710677
          %v3515 = vmul.f32 %v3195, 0.70710677
          %v3516 = vmul.f32 %v3196, 0.70710677
          %v3517 = vmul.f32 %v3197, 0.70710677
          %v3518 = vmul.f32 %v3198, 0.70710677
          %v3519 = vmul.f32 %v3199, 0.70710677
          %v3520 = vmul.f32 %v3200, 0.70710677
          %v3521 = vmul.f32 %v3201, 0.70710677
          %v3522 = vmul.f32 %v3202, 0.70710677
          %v3523 = vmul.f32 %v3203, 0.70710677
          %v3524 = vmul.f32 %v3204, 0.70710677
          %v3525 = vmul.f32 %v3205, 0.70710677
          %v3526 = vmul.f32 %v3206, 0.70710677
          %v3527 = vmul.f32 %v3207, 0.70710677
          %v3528 = vmul.f32 %v3208, 0.70710677
          %v3529 = vmul.f32 %v3209, 0.70710677
          %v3530 = vmul.f32 %v3210, 0.70710677
          %v3531 = vmul.f32 %v3211, 0.70710677
          %v3532 = vmul.f32 %v3212, 0.70710677
          %v3533 = vmul.f32 %v3213, 0.70710677
          %v3534 = vmul.f32 %v3214, 0.70710677
          %v3535 = vmul.f32 %v3215, 0.70710677
          %v3536 = vmul.f32 %v3216, 0.70710677
          %v3537 = vmul.f32 %v3217, 0.70710677
          %v3538 = vmul.f32 %v3218, 0.70710677
          %v3539 = vmul.f32 %v3219, 0.70710677
          %v3540 = vmul.f32 %v3220, 0.70710677
          %v3541 = vmul.f32 %v3221, 0.70710677
          %v3542 = vmul.f32 %v3222, 0.70710677
          %v3543 = vmul.f32 %v3223, 0.70710677
          %v3544 = vmul.f32 %v3224, 0.70710677
          %v3545 = vmul.f32 %v3225, 0.70710677
          %v3546 = vmul.f32 %v3226, 0.70710677
          %v3547 = vmul.f32 %v3227, 0.70710677
          %v3548 = vmul.f32 %v3228, 0.70710677
          %v3549 = vmul.f32 %v3229, 0.70710677
          %v3550 = vmul.f32 %v3230, 0.70710677
          %v3551 = vmul.f32 %v3231, 0.70710677
          %v3552 = vmul.f32 %v3232, 0.70710677
          %v3553 = vmul.f32 %v3233, 0.70710677
          %v3554 = vmul.f32 %v3234, 0.70710677
          %v3555 = vmul.f32 %v3235, 0.70710677
          %v3556 = vmul.f32 %v3236, 0.70710677
          %v3557 = vmul.f32 %v3237, 0.70710677
          %v3558 = vmul.f32 %v3238, 0.70710677
          %v3559 = vmul.f32 %v3239, 0.70710677
          %v3560 = vmul.f32 %v3240, 0.70710677
          %v3561 = vmul.f32 %v3241, 0.70710677
          %v3562 = vmul.f32 %v3242, 0.70710677
          %v3563 = vmul.f32 %v3243, 0.70710677
          %v3564 = vmul.f32 %v3244, 0.70710677
          %v3565 = vmul.f32 %v3245, 0.70710677
          %v3566 = vmul.f32 %v3246, 0.70710677
          %v3567 = vmul.f32 %v3247, 0.70710677
          %v3568 = vmul.f32 %v3248, 0.70710677
          %v3569 = vmul.f32 %v3249, 0.70710677
          %v3570 = vmul.f32 %v3250, 0.70710677
          %v3571 = vmul.f32 %v3251, 0.70710677
          %v3572 = vmul.f32 %v3252, 0.70710677
          %v3573 = vmul.f32 %v3253, 0.70710677
          %v3574 = vmul.f32 %v3254, 0.70710677
          %v3575 = vmul.f32 %v3255, 0.70710677
          %v3576 = vmul.f32 %v3256, 0.70710677
          %v3577 = vmul.f32 %v3257, 0.70710677
          %v3578 = vmul.f32 %v3258, 0.70710677
          %v3579 = vmul.f32 %v3259, 0.70710677
          %v3580 = vmul.f32 %v3260, 0.70710677
          %v3581 = vmul.f32 %v3261, 0.70710677
          %v3582 = vmul.f32 %v3262, 0.70710677
          %v3583 = vmul.f32 %v3263, 0.70710677
          %v3584 = vmul.f32 %v3264, 0.70710677
          %v3585 = vmul.f32 %v3265, 0.70710677
          %v3586 = vmul.f32 %v3266, 0.70710677
          %v3587 = vmul.f32 %v3267, 0.70710677
          %v3588 = vmul.f32 %v3268, 0.70710677
          %v3589 = vmul.f32 %v3269, 0.70710677
          %v3590 = vmul.f32 %v3270, 0.70710677
          %v3591 = vmul.f32 %v3271, 0.70710677
          %v3592 = vmul.f32 %v3272, 0.70710677
          %v3593 = vmul.f32 %v3273, 0.70710677
          %v3594 = vmul.f32 %v3274, 0.70710677
          %v3595 = vmul.f32 %v3275, 0.70710677
          %v3596 = vmul.f32 %v3276, 0.70710677
          %v3597 = vmul.f32 %v3277, 0.70710677
          %v3598 = vmul.f32 %v3278, 0.70710677
          %v3599 = vmul.f32 %v3279, 0.70710677
          %v3600 = vmul.f32 %v3280, 0.70710677
          %v3601 = verf.f32.pop %v3441
          %v3602 = verf.f32.pop %v3442
          %v3603 = verf.f32.pop %v3443
          %v3604 = verf.f32.pop %v3444
          %v3605 = verf.f32.pop %v3445
          %v3606 = verf.f32.pop %v3446
          %v3607 = verf.f32.pop %v3447
          %v3608 = verf.f32.pop %v3448
          %v3609 = verf.f32.pop %v3449
          %v3610 = verf.f32.pop %v3450
          %v3611 = verf.f32.pop %v3451
          %v3612 = verf.f32.pop %v3452
          %v3613 = verf.f32.pop %v3453
          %v3614 = verf.f32.pop %v3454
          %v3615 = verf.f32.pop %v3455
          %v3616 = verf.f32.pop %v3456
          %v3617 = verf.f32.pop %v3457
          %v3618 = verf.f32.pop %v3458
          %v3619 = verf.f32.pop %v3459
          %v3620 = verf.f32.pop %v3460
          %v3621 = verf.f32.pop %v3461
          %v3622 = verf.f32.pop %v3462
          %v3623 = verf.f32.pop %v3463
          %v3624 = verf.f32.pop %v3464
          %v3625 = verf.f32.pop %v3465
          %v3626 = verf.f32.pop %v3466
          %v3627 = verf.f32.pop %v3467
          %v3628 = verf.f32.pop %v3468
          %v3629 = verf.f32.pop %v3469
          %v3630 = verf.f32.pop %v3470
          %v3631 = verf.f32.pop %v3471
          %v3632 = verf.f32.pop %v3472
          %v3633 = verf.f32.pop %v3473
          %v3634 = verf.f32.pop %v3474
          %v3635 = verf.f32.pop %v3475
          %v3636 = verf.f32.pop %v3476
          %v3637 = verf.f32.pop %v3477
          %v3638 = verf.f32.pop %v3478
          %v3639 = verf.f32.pop %v3479
          %v3640 = verf.f32.pop %v3480
          %v3641 = verf.f32.pop %v3481
          %v3642 = verf.f32.pop %v3482
          %v3643 = verf.f32.pop %v3483
          %v3644 = verf.f32.pop %v3484
          %v3645 = verf.f32.pop %v3485
          %v3646 = verf.f32.pop %v3486
          %v3647 = verf.f32.pop %v3487
          %v3648 = verf.f32.pop %v3488
          %v3649 = verf.f32.pop %v3489
          %v3650 = verf.f32.pop %v3490
          %v3651 = verf.f32.pop %v3491
          %v3652 = verf.f32.pop %v3492
          %v3653 = verf.f32.pop %v3493
          %v3654 = verf.f32.pop %v3494
          %v3655 = verf.f32.pop %v3495
          %v3656 = verf.f32.pop %v3496
          %v3657 = verf.f32.pop %v3497
          %v3658 = verf.f32.pop %v3498
          %v3659 = verf.f32.pop %v3499
          %v3660 = verf.f32.pop %v3500
          %v3661 = verf.f32.pop %v3501
          %v3662 = verf.f32.pop %v3502
          %v3663 = verf.f32.pop %v3503
          %v3664 = verf.f32.pop %v3504
          %v3665 = verf.f32.pop %v3505
          %v3666 = verf.f32.pop %v3506
          %v3667 = verf.f32.pop %v3507
          %v3668 = verf.f32.pop %v3508
          %v3669 = verf.f32.pop %v3509
          %v3670 = verf.f32.pop %v3510
          %v3671 = verf.f32.pop %v3511
          %v3672 = verf.f32.pop %v3512
          %v3673 = verf.f32.pop %v3513
          %v3674 = verf.f32.pop %v3514
          %v3675 = verf.f32.pop %v3515
          %v3676 = verf.f32.pop %v3516
          %v3677 = verf.f32.pop %v3517
          %v3678 = verf.f32.pop %v3518
          %v3679 = verf.f32.pop %v3519
          %v3680 = verf.f32.pop %v3520
          %v3681 = verf.f32.pop %v3521
          %v3682 = verf.f32.pop %v3522
          %v3683 = verf.f32.pop %v3523
          %v3684 = verf.f32.pop %v3524
          %v3685 = verf.f32.pop %v3525
          %v3686 = verf.f32.pop %v3526
          %v3687 = verf.f32.pop %v3527
          %v3688 = verf.f32.pop %v3528
          %v3689 = verf.f32.pop %v3529
          %v3690 = verf.f32.pop %v3530
          %v3691 = verf.f32.pop %v3531
          %v3692 = verf.f32.pop %v3532
          %v3693 = verf.f32.pop %v3533
          %v3694 = verf.f32.pop %v3534
          %v3695 = verf.f32.pop %v3535
          %v3696 = verf.f32.pop %v3536
          %v3697 = verf.f32.pop %v3537
          %v3698 = verf.f32.pop %v3538
          %v3699 = verf.f32.pop %v3539
          %v3700 = verf.f32.pop %v3540
          %v3701 = verf.f32.pop %v3541
          %v3702 = verf.f32.pop %v3542
          %v3703 = verf.f32.pop %v3543
          %v3704 = verf.f32.pop %v3544
          %v3705 = verf.f32.pop %v3545
          %v3706 = verf.f32.pop %v3546
          %v3707 = verf.f32.pop %v3547
          %v3708 = verf.f32.pop %v3548
          %v3709 = verf.f32.pop %v3549
          %v3710 = verf.f32.pop %v3550
          %v3711 = verf.f32.pop %v3551
          %v3712 = verf.f32.pop %v3552
          %v3713 = verf.f32.pop %v3553
          %v3714 = verf.f32.pop %v3554
          %v3715 = verf.f32.pop %v3555
          %v3716 = verf.f32.pop %v3556
          %v3717 = verf.f32.pop %v3557
          %v3718 = verf.f32.pop %v3558
          %v3719 = verf.f32.pop %v3559
          %v3720 = verf.f32.pop %v3560
          %v3721 = verf.f32.pop %v3561
          %v3722 = verf.f32.pop %v3562
          %v3723 = verf.f32.pop %v3563
          %v3724 = verf.f32.pop %v3564
          %v3725 = verf.f32.pop %v3565
          %v3726 = verf.f32.pop %v3566
          %v3727 = verf.f32.pop %v3567
          %v3728 = verf.f32.pop %v3568
          %v3729 = verf.f32.pop %v3569
          %v3730 = verf.f32.pop %v3570
          %v3731 = verf.f32.pop %v3571
          %v3732 = verf.f32.pop %v3572
          %v3733 = verf.f32.pop %v3573
          %v3734 = verf.f32.pop %v3574
          %v3735 = verf.f32.pop %v3575
          %v3736 = verf.f32.pop %v3576
          %v3737 = verf.f32.pop %v3577
          %v3738 = verf.f32.pop %v3578
          %v3739 = verf.f32.pop %v3579
          %v3740 = verf.f32.pop %v3580
          %v3741 = verf.f32.pop %v3581
          %v3742 = verf.f32.pop %v3582
          %v3743 = verf.f32.pop %v3583
          %v3744 = verf.f32.pop %v3584
          %v3745 = verf.f32.pop %v3585
          %v3746 = verf.f32.pop %v3586
          %v3747 = verf.f32.pop %v3587
          %v3748 = verf.f32.pop %v3588
          %v3749 = verf.f32.pop %v3589
          %v3750 = verf.f32.pop %v3590
          %v3751 = verf.f32.pop %v3591
          %v3752 = verf.f32.pop %v3592
          %v3753 = verf.f32.pop %v3593
          %v3754 = verf.f32.pop %v3594
          %v3755 = verf.f32.pop %v3595
          %v3756 = verf.f32.pop %v3596
          %v3757 = verf.f32.pop %v3597
          %v3758 = verf.f32.pop %v3598
          %v3759 = verf.f32.pop %v3599
          %v3760 = verf.f32.pop %v3600
          %v3761 = vadd.f32 %v3601, 1.0
          %v3762 = vadd.f32 %v3602, 1.0
          %v3763 = vadd.f32 %v3603, 1.0
          %v3764 = vadd.f32 %v3604, 1.0
          %v3765 = vadd.f32 %v3605, 1.0
          %v3766 = vadd.f32 %v3606, 1.0
          %v3767 = vadd.f32 %v3607, 1.0
          %v3768 = vadd.f32 %v3608, 1.0
          %v3769 = vadd.f32 %v3609, 1.0
          %v3770 = vadd.f32 %v3610, 1.0
          %v3771 = vadd.f32 %v3611, 1.0
          %v3772 = vadd.f32 %v3612, 1.0
          %v3773 = vadd.f32 %v3613, 1.0
          %v3774 = vadd.f32 %v3614, 1.0
          %v3775 = vadd.f32 %v3615, 1.0
          %v3776 = vadd.f32 %v3616, 1.0
          %v3777 = vadd.f32 %v3617, 1.0
          %v3778 = vadd.f32 %v3618, 1.0
          %v3779 = vadd.f32 %v3619, 1.0
          %v3780 = vadd.f32 %v3620, 1.0
          %v3781 = vadd.f32 %v3621, 1.0
          %v3782 = vadd.f32 %v3622, 1.0
          %v3783 = vadd.f32 %v3623, 1.0
          %v3784 = vadd.f32 %v3624, 1.0
          %v3785 = vadd.f32 %v3625, 1.0
          %v3786 = vadd.f32 %v3626, 1.0
          %v3787 = vadd.f32 %v3627, 1.0
          %v3788 = vadd.f32 %v3628, 1.0
          %v3789 = vadd.f32 %v3629, 1.0
          %v3790 = vadd.f32 %v3630, 1.0
          %v3791 = vadd.f32 %v3631, 1.0
          %v3792 = vadd.f32 %v3632, 1.0
          %v3793 = vadd.f32 %v3633, 1.0
          %v3794 = vadd.f32 %v3634, 1.0
          %v3795 = vadd.f32 %v3635, 1.0
          %v3796 = vadd.f32 %v3636, 1.0
          %v3797 = vadd.f32 %v3637, 1.0
          %v3798 = vadd.f32 %v3638, 1.0
          %v3799 = vadd.f32 %v3639, 1.0
          %v3800 = vadd.f32 %v3640, 1.0
          %v3801 = vadd.f32 %v3641, 1.0
          %v3802 = vadd.f32 %v3642, 1.0
          %v3803 = vadd.f32 %v3643, 1.0
          %v3804 = vadd.f32 %v3644, 1.0
          %v3805 = vadd.f32 %v3645, 1.0
          %v3806 = vadd.f32 %v3646, 1.0
          %v3807 = vadd.f32 %v3647, 1.0
          %v3808 = vadd.f32 %v3648, 1.0
          %v3809 = vadd.f32 %v3649, 1.0
          %v3810 = vadd.f32 %v3650, 1.0
          %v3811 = vadd.f32 %v3651, 1.0
          %v3812 = vadd.f32 %v3652, 1.0
          %v3813 = vadd.f32 %v3653, 1.0
          %v3814 = vadd.f32 %v3654, 1.0
          %v3815 = vadd.f32 %v3655, 1.0
          %v3816 = vadd.f32 %v3656, 1.0
          %v3817 = vadd.f32 %v3657, 1.0
          %v3818 = vadd.f32 %v3658, 1.0
          %v3819 = vadd.f32 %v3659, 1.0
          %v3820 = vadd.f32 %v3660, 1.0
          %v3821 = vadd.f32 %v3661, 1.0
          %v3822 = vadd.f32 %v3662, 1.0
          %v3823 = vadd.f32 %v3663, 1.0
          %v3824 = vadd.f32 %v3664, 1.0
          %v3825 = vadd.f32 %v3665, 1.0
          %v3826 = vadd.f32 %v3666, 1.0
          %v3827 = vadd.f32 %v3667, 1.0
          %v3828 = vadd.f32 %v3668, 1.0
          %v3829 = vadd.f32 %v3669, 1.0
          %v3830 = vadd.f32 %v3670, 1.0
          %v3831 = vadd.f32 %v3671, 1.0
          %v3832 = vadd.f32 %v3672, 1.0
          %v3833 = vadd.f32 %v3673, 1.0
          %v3834 = vadd.f32 %v3674, 1.0
          %v3835 = vadd.f32 %v3675, 1.0
          %v3836 = vadd.f32 %v3676, 1.0
          %v3837 = vadd.f32 %v3677, 1.0
          %v3838 = vadd.f32 %v3678, 1.0
          %v3839 = vadd.f32 %v3679, 1.0
          %v3840 = vadd.f32 %v3680, 1.0
          %v3841 = vadd.f32 %v3681, 1.0
          %v3842 = vadd.f32 %v3682, 1.0
          %v3843 = vadd.f32 %v3683, 1.0
          %v3844 = vadd.f32 %v3684, 1.0
          %v3845 = vadd.f32 %v3685, 1.0
          %v3846 = vadd.f32 %v3686, 1.0
          %v3847 = vadd.f32 %v3687, 1.0
          %v3848 = vadd.f32 %v3688, 1.0
          %v3849 = vadd.f32 %v3689, 1.0
          %v3850 = vadd.f32 %v3690, 1.0
          %v3851 = vadd.f32 %v3691, 1.0
          %v3852 = vadd.f32 %v3692, 1.0
          %v3853 = vadd.f32 %v3693, 1.0
          %v3854 = vadd.f32 %v3694, 1.0
          %v3855 = vadd.f32 %v3695, 1.0
          %v3856 = vadd.f32 %v3696, 1.0
          %v3857 = vadd.f32 %v3697, 1.0
          %v3858 = vadd.f32 %v3698, 1.0
          %v3859 = vadd.f32 %v3699, 1.0
          %v3860 = vadd.f32 %v3700, 1.0
          %v3861 = vadd.f32 %v3701, 1.0
          %v3862 = vadd.f32 %v3702, 1.0
          %v3863 = vadd.f32 %v3703, 1.0
          %v3864 = vadd.f32 %v3704, 1.0
          %v3865 = vadd.f32 %v3705, 1.0
          %v3866 = vadd.f32 %v3706, 1.0
          %v3867 = vadd.f32 %v3707, 1.0
          %v3868 = vadd.f32 %v3708, 1.0
          %v3869 = vadd.f32 %v3709, 1.0
          %v3870 = vadd.f32 %v3710, 1.0
          %v3871 = vadd.f32 %v3711, 1.0
          %v3872 = vadd.f32 %v3712, 1.0
          %v3873 = vadd.f32 %v3713, 1.0
          %v3874 = vadd.f32 %v3714, 1.0
          %v3875 = vadd.f32 %v3715, 1.0
          %v3876 = vadd.f32 %v3716, 1.0
          %v3877 = vadd.f32 %v3717, 1.0
          %v3878 = vadd.f32 %v3718, 1.0
          %v3879 = vadd.f32 %v3719, 1.0
          %v3880 = vadd.f32 %v3720, 1.0
          %v3881 = vadd.f32 %v3721, 1.0
          %v3882 = vadd.f32 %v3722, 1.0
          %v3883 = vadd.f32 %v3723, 1.0
          %v3884 = vadd.f32 %v3724, 1.0
          %v3885 = vadd.f32 %v3725, 1.0
          %v3886 = vadd.f32 %v3726, 1.0
          %v3887 = vadd.f32 %v3727, 1.0
          %v3888 = vadd.f32 %v3728, 1.0
          %v3889 = vadd.f32 %v3729, 1.0
          %v3890 = vadd.f32 %v3730, 1.0
          %v3891 = vadd.f32 %v3731, 1.0
          %v3892 = vadd.f32 %v3732, 1.0
          %v3893 = vadd.f32 %v3733, 1.0
          %v3894 = vadd.f32 %v3734, 1.0
          %v3895 = vadd.f32 %v3735, 1.0
          %v3896 = vadd.f32 %v3736, 1.0
          %v3897 = vadd.f32 %v3737, 1.0
          %v3898 = vadd.f32 %v3738, 1.0
          %v3899 = vadd.f32 %v3739, 1.0
          %v3900 = vadd.f32 %v3740, 1.0
          %v3901 = vadd.f32 %v3741, 1.0
          %v3902 = vadd.f32 %v3742, 1.0
          %v3903 = vadd.f32 %v3743, 1.0
          %v3904 = vadd.f32 %v3744, 1.0
          %v3905 = vadd.f32 %v3745, 1.0
          %v3906 = vadd.f32 %v3746, 1.0
          %v3907 = vadd.f32 %v3747, 1.0
          %v3908 = vadd.f32 %v3748, 1.0
          %v3909 = vadd.f32 %v3749, 1.0
          %v3910 = vadd.f32 %v3750, 1.0
          %v3911 = vadd.f32 %v3751, 1.0
          %v3912 = vadd.f32 %v3752, 1.0
          %v3913 = vadd.f32 %v3753, 1.0
          %v3914 = vadd.f32 %v3754, 1.0
          %v3915 = vadd.f32 %v3755, 1.0
          %v3916 = vadd.f32 %v3756, 1.0
          %v3917 = vadd.f32 %v3757, 1.0
          %v3918 = vadd.f32 %v3758, 1.0
          %v3919 = vadd.f32 %v3759, 1.0
          %v3920 = vadd.f32 %v3760, 1.0
          %v3921 = vmul.f32 %v3281, %v3761
          %v3922 = vmul.f32 %v3282, %v3762
          %v3923 = vmul.f32 %v3283, %v3763
          %v3924 = vmul.f32 %v3284, %v3764
          %v3925 = vmul.f32 %v3285, %v3765
          %v3926 = vmul.f32 %v3286, %v3766
          %v3927 = vmul.f32 %v3287, %v3767
          %v3928 = vmul.f32 %v3288, %v3768
          %v3929 = vmul.f32 %v3289, %v3769
          %v3930 = vmul.f32 %v3290, %v3770
          %v3931 = vmul.f32 %v3291, %v3771
          %v3932 = vmul.f32 %v3292, %v3772
          %v3933 = vmul.f32 %v3293, %v3773
          %v3934 = vmul.f32 %v3294, %v3774
          %v3935 = vmul.f32 %v3295, %v3775
          %v3936 = vmul.f32 %v3296, %v3776
          %v3937 = vmul.f32 %v3297, %v3777
          %v3938 = vmul.f32 %v3298, %v3778
          %v3939 = vmul.f32 %v3299, %v3779
          %v3940 = vmul.f32 %v3300, %v3780
          %v3941 = vmul.f32 %v3301, %v3781
          %v3942 = vmul.f32 %v3302, %v3782
          %v3943 = vmul.f32 %v3303, %v3783
          %v3944 = vmul.f32 %v3304, %v3784
          %v3945 = vmul.f32 %v3305, %v3785
          %v3946 = vmul.f32 %v3306, %v3786
          %v3947 = vmul.f32 %v3307, %v3787
          %v3948 = vmul.f32 %v3308, %v3788
          %v3949 = vmul.f32 %v3309, %v3789
          %v3950 = vmul.f32 %v3310, %v3790
          %v3951 = vmul.f32 %v3311, %v3791
          %v3952 = vmul.f32 %v3312, %v3792
          %v3953 = vmul.f32 %v3313, %v3793
          %v3954 = vmul.f32 %v3314, %v3794
          %v3955 = vmul.f32 %v3315, %v3795
          %v3956 = vmul.f32 %v3316, %v3796
          %v3957 = vmul.f32 %v3317, %v3797
          %v3958 = vmul.f32 %v3318, %v3798
          %v3959 = vmul.f32 %v3319, %v3799
          %v3960 = vmul.f32 %v3320, %v3800
          %v3961 = vmul.f32 %v3321, %v3801
          %v3962 = vmul.f32 %v3322, %v3802
          %v3963 = vmul.f32 %v3323, %v3803
          %v3964 = vmul.f32 %v3324, %v3804
          %v3965 = vmul.f32 %v3325, %v3805
          %v3966 = vmul.f32 %v3326, %v3806
          %v3967 = vmul.f32 %v3327, %v3807
          %v3968 = vmul.f32 %v3328, %v3808
          %v3969 = vmul.f32 %v3329, %v3809
          %v3970 = vmul.f32 %v3330, %v3810
          %v3971 = vmul.f32 %v3331, %v3811
          %v3972 = vmul.f32 %v3332, %v3812
          %v3973 = vmul.f32 %v3333, %v3813
          %v3974 = vmul.f32 %v3334, %v3814
          %v3975 = vmul.f32 %v3335, %v3815
          %v3976 = vmul.f32 %v3336, %v3816
          %v3977 = vmul.f32 %v3337, %v3817
          %v3978 = vmul.f32 %v3338, %v3818
          %v3979 = vmul.f32 %v3339, %v3819
          %v3980 = vmul.f32 %v3340, %v3820
          %v3981 = vmul.f32 %v3341, %v3821
          %v3982 = vmul.f32 %v3342, %v3822
          %v3983 = vmul.f32 %v3343, %v3823
          %v3984 = vmul.f32 %v3344, %v3824
          %v3985 = vmul.f32 %v3345, %v3825
          %v3986 = vmul.f32 %v3346, %v3826
          %v3987 = vmul.f32 %v3347, %v3827
          %v3988 = vmul.f32 %v3348, %v3828
          %v3989 = vmul.f32 %v3349, %v3829
          %v3990 = vmul.f32 %v3350, %v3830
          %v3991 = vmul.f32 %v3351, %v3831
          %v3992 = vmul.f32 %v3352, %v3832
          %v3993 = vmul.f32 %v3353, %v3833
          %v3994 = vmul.f32 %v3354, %v3834
          %v3995 = vmul.f32 %v3355, %v3835
          %v3996 = vmul.f32 %v3356, %v3836
          %v3997 = vmul.f32 %v3357, %v3837
          %v3998 = vmul.f32 %v3358, %v3838
          %v3999 = vmul.f32 %v3359, %v3839
          %v4000 = vmul.f32 %v3360, %v3840
          %v4001 = vmul.f32 %v3361, %v3841
          %v4002 = vmul.f32 %v3362, %v3842
          %v4003 = vmul.f32 %v3363, %v3843
          %v4004 = vmul.f32 %v3364, %v3844
          %v4005 = vmul.f32 %v3365, %v3845
          %v4006 = vmul.f32 %v3366, %v3846
          %v4007 = vmul.f32 %v3367, %v3847
          %v4008 = vmul.f32 %v3368, %v3848
          %v4009 = vmul.f32 %v3369, %v3849
          %v4010 = vmul.f32 %v3370, %v3850
          %v4011 = vmul.f32 %v3371, %v3851
          %v4012 = vmul.f32 %v3372, %v3852
          %v4013 = vmul.f32 %v3373, %v3853
          %v4014 = vmul.f32 %v3374, %v3854
          %v4015 = vmul.f32 %v3375, %v3855
          %v4016 = vmul.f32 %v3376, %v3856
          %v4017 = vmul.f32 %v3377, %v3857
          %v4018 = vmul.f32 %v3378, %v3858
          %v4019 = vmul.f32 %v3379, %v3859
          %v4020 = vmul.f32 %v3380, %v3860
          %v4021 = vmul.f32 %v3381, %v3861
          %v4022 = vmul.f32 %v3382, %v3862
          %v4023 = vmul.f32 %v3383, %v3863
          %v4024 = vmul.f32 %v3384, %v3864
          %v4025 = vmul.f32 %v3385, %v3865
          %v4026 = vmul.f32 %v3386, %v3866
          %v4027 = vmul.f32 %v3387, %v3867
          %v4028 = vmul.f32 %v3388, %v3868
          %v4029 = vmul.f32 %v3389, %v3869
          %v4030 = vmul.f32 %v3390, %v3870
          %v4031 = vmul.f32 %v3391, %v3871
          %v4032 = vmul.f32 %v3392, %v3872
          %v4033 = vmul.f32 %v3393, %v3873
          %v4034 = vmul.f32 %v3394, %v3874
          %v4035 = vmul.f32 %v3395, %v3875
          %v4036 = vmul.f32 %v3396, %v3876
          %v4037 = vmul.f32 %v3397, %v3877
          %v4038 = vmul.f32 %v3398, %v3878
          %v4039 = vmul.f32 %v3399, %v3879
          %v4040 = vmul.f32 %v3400, %v3880
          %v4041 = vmul.f32 %v3401, %v3881
          %v4042 = vmul.f32 %v3402, %v3882
          %v4043 = vmul.f32 %v3403, %v3883
          %v4044 = vmul.f32 %v3404, %v3884
          %v4045 = vmul.f32 %v3405, %v3885
          %v4046 = vmul.f32 %v3406, %v3886
          %v4047 = vmul.f32 %v3407, %v3887
          %v4048 = vmul.f32 %v3408, %v3888
          %v4049 = vmul.f32 %v3409, %v3889
          %v4050 = vmul.f32 %v3410, %v3890
          %v4051 = vmul.f32 %v3411, %v3891
          %v4052 = vmul.f32 %v3412, %v3892
          %v4053 = vmul.f32 %v3413, %v3893
          %v4054 = vmul.f32 %v3414, %v3894
          %v4055 = vmul.f32 %v3415, %v3895
          %v4056 = vmul.f32 %v3416, %v3896
          %v4057 = vmul.f32 %v3417, %v3897
          %v4058 = vmul.f32 %v3418, %v3898
          %v4059 = vmul.f32 %v3419, %v3899
          %v4060 = vmul.f32 %v3420, %v3900
          %v4061 = vmul.f32 %v3421, %v3901
          %v4062 = vmul.f32 %v3422, %v3902
          %v4063 = vmul.f32 %v3423, %v3903
          %v4064 = vmul.f32 %v3424, %v3904
          %v4065 = vmul.f32 %v3425, %v3905
          %v4066 = vmul.f32 %v3426, %v3906
          %v4067 = vmul.f32 %v3427, %v3907
          %v4068 = vmul.f32 %v3428, %v3908
          %v4069 = vmul.f32 %v3429, %v3909
          %v4070 = vmul.f32 %v3430, %v3910
          %v4071 = vmul.f32 %v3431, %v3911
          %v4072 = vmul.f32 %v3432, %v3912
          %v4073 = vmul.f32 %v3433, %v3913
          %v4074 = vmul.f32 %v3434, %v3914
          %v4075 = vmul.f32 %v3435, %v3915
          %v4076 = vmul.f32 %v3436, %v3916
          %v4077 = vmul.f32 %v3437, %v3917
          %v4078 = vmul.f32 %v3438, %v3918
          %v4079 = vmul.f32 %v3439, %v3919
          %v4080 = vmul.f32 %v3440, %v3920
          %v4081 = vld [vmem:[#allocation3] sm:$0xff]
          %v4082 = vld [vmem:[#allocation3 + $0x8] sm:$0xff]
          %v4083 = vld [vmem:[#allocation3 + $0x10] sm:$0xff]
          %v4084 = vld [vmem:[#allocation3 + $0x18] sm:$0xff]
          %v4085 = vld [vmem:[#allocation3 + $0x20] sm:$0xff]
          %v4086 = vld [vmem:[#allocation3 + $0x28] sm:$0xff]
          %v4087 = vld [vmem:[#allocation3 + $0x30] sm:$0xff]
          %v4088 = vld [vmem:[#allocation3 + $0x38] sm:$0xff]
          %v4089 = vld [vmem:[#allocation3 + $0x40] sm:$0xff]
          %v4090 = vld [vmem:[#allocation3 + $0x48] sm:$0xff]
          %v4091 = vld [vmem:[#allocation3 + $0x50] sm:$0xff]
          %v4092 = vld [vmem:[#allocation3 + $0x58] sm:$0xff]
          %v4093 = vld [vmem:[#allocation3 + $0x60] sm:$0xff]
          %v4094 = vld [vmem:[#allocation3 + $0x68] sm:$0xff]
          %v4095 = vld [vmem:[#allocation3 + $0x70] sm:$0xff]
          %v4096 = vld [vmem:[#allocation3 + $0x78] sm:$0xff]
          %v4097 = vld [vmem:[#allocation3 + $0x80] sm:$0xff]
          %v4098 = vld [vmem:[#allocation3 + $0x88] sm:$0xff]
          %v4099 = vld [vmem:[#allocation3 + $0x90] sm:$0xff]
          %v4100 = vld [vmem:[#allocation3 + $0x98] sm:$0xff]
          %v4101 = vld [vmem:[#allocation3 + $0xa0] sm:$0xff]
          %v4102 = vld [vmem:[#allocation3 + $0xa8] sm:$0xff]
          %v4103 = vld [vmem:[#allocation3 + $0xb0] sm:$0xff]
          %v4104 = vld [vmem:[#allocation3 + $0xb8] sm:$0xff]
          %v4105 = vld [vmem:[#allocation3 + $0xc0] sm:$0xff]
          %v4106 = vld [vmem:[#allocation3 + $0xc8] sm:$0xff]
          %v4107 = vld [vmem:[#allocation3 + $0xd0] sm:$0xff]
          %v4108 = vld [vmem:[#allocation3 + $0xd8] sm:$0xff]
          %v4109 = vld [vmem:[#allocation3 + $0xe0] sm:$0xff]
          %v4110 = vld [vmem:[#allocation3 + $0xe8] sm:$0xff]
          %v4111 = vld [vmem:[#allocation3 + $0xf0] sm:$0xff]
          %v4112 = vld [vmem:[#allocation3 + $0xf8] sm:$0xff]
          %v4113 = vld [vmem:[#allocation3 + $0x100] sm:$0xff]
          %v4114 = vld [vmem:[#allocation3 + $0x108] sm:$0xff]
          %v4115 = vld [vmem:[#allocation3 + $0x110] sm:$0xff]
          %v4116 = vld [vmem:[#allocation3 + $0x118] sm:$0xff]
          %v4117 = vld [vmem:[#allocation3 + $0x120] sm:$0xff]
          %v4118 = vld [vmem:[#allocation3 + $0x128] sm:$0xff]
          %v4119 = vld [vmem:[#allocation3 + $0x130] sm:$0xff]
          %v4120 = vld [vmem:[#allocation3 + $0x138] sm:$0xff]
          %v4121 = vld [vmem:[#allocation3 + $0x140] sm:$0xff]
          %v4122 = vld [vmem:[#allocation3 + $0x148] sm:$0xff]
          %v4123 = vld [vmem:[#allocation3 + $0x150] sm:$0xff]
          %v4124 = vld [vmem:[#allocation3 + $0x158] sm:$0xff]
          %v4125 = vld [vmem:[#allocation3 + $0x160] sm:$0xff]
          %v4126 = vld [vmem:[#allocation3 + $0x168] sm:$0xff]
          %v4127 = vld [vmem:[#allocation3 + $0x170] sm:$0xff]
          %v4128 = vld [vmem:[#allocation3 + $0x178] sm:$0xff]
          %v4129 = vld [vmem:[#allocation3 + $0x180] sm:$0xff]
          %v4130 = vld [vmem:[#allocation3 + $0x188] sm:$0xff]
          %v4131 = vld [vmem:[#allocation3 + $0x190] sm:$0xff]
          %v4132 = vld [vmem:[#allocation3 + $0x198] sm:$0xff]
          %v4133 = vld [vmem:[#allocation3 + $0x1a0] sm:$0xff]
          %v4134 = vld [vmem:[#allocation3 + $0x1a8] sm:$0xff]
          %v4135 = vld [vmem:[#allocation3 + $0x1b0] sm:$0xff]
          %v4136 = vld [vmem:[#allocation3 + $0x1b8] sm:$0xff]
          %v4137 = vld [vmem:[#allocation3 + $0x1c0] sm:$0xff]
          %v4138 = vld [vmem:[#allocation3 + $0x1c8] sm:$0xff]
          %v4139 = vld [vmem:[#allocation3 + $0x1d0] sm:$0xff]
          %v4140 = vld [vmem:[#allocation3 + $0x1d8] sm:$0xff]
          %v4141 = vld [vmem:[#allocation3 + $0x1e0] sm:$0xff]
          %v4142 = vld [vmem:[#allocation3 + $0x1e8] sm:$0xff]
          %v4143 = vld [vmem:[#allocation3 + $0x1f0] sm:$0xff]
          %v4144 = vld [vmem:[#allocation3 + $0x1f8] sm:$0xff]
          %v4145 = vld [vmem:[#allocation3 + $0x200] sm:$0xff]
          %v4146 = vld [vmem:[#allocation3 + $0x208] sm:$0xff]
          %v4147 = vld [vmem:[#allocation3 + $0x210] sm:$0xff]
          %v4148 = vld [vmem:[#allocation3 + $0x218] sm:$0xff]
          %v4149 = vld [vmem:[#allocation3 + $0x220] sm:$0xff]
          %v4150 = vld [vmem:[#allocation3 + $0x228] sm:$0xff]
          %v4151 = vld [vmem:[#allocation3 + $0x230] sm:$0xff]
          %v4152 = vld [vmem:[#allocation3 + $0x238] sm:$0xff]
          %v4153 = vld [vmem:[#allocation3 + $0x240] sm:$0xff]
          %v4154 = vld [vmem:[#allocation3 + $0x248] sm:$0xff]
          %v4155 = vld [vmem:[#allocation3 + $0x250] sm:$0xff]
          %v4156 = vld [vmem:[#allocation3 + $0x258] sm:$0xff]
          %v4157 = vld [vmem:[#allocation3 + $0x260] sm:$0xff]
          %v4158 = vld [vmem:[#allocation3 + $0x268] sm:$0xff]
          %v4159 = vld [vmem:[#allocation3 + $0x270] sm:$0xff]
          %v4160 = vld [vmem:[#allocation3 + $0x278] sm:$0xff]
          %v4161 = vld [vmem:[#allocation3 + $0x280] sm:$0xff]
          %v4162 = vld [vmem:[#allocation3 + $0x288] sm:$0xff]
          %v4163 = vld [vmem:[#allocation3 + $0x290] sm:$0xff]
          %v4164 = vld [vmem:[#allocation3 + $0x298] sm:$0xff]
          %v4165 = vld [vmem:[#allocation3 + $0x2a0] sm:$0xff]
          %v4166 = vld [vmem:[#allocation3 + $0x2a8] sm:$0xff]
          %v4167 = vld [vmem:[#allocation3 + $0x2b0] sm:$0xff]
          %v4168 = vld [vmem:[#allocation3 + $0x2b8] sm:$0xff]
          %v4169 = vld [vmem:[#allocation3 + $0x2c0] sm:$0xff]
          %v4170 = vld [vmem:[#allocation3 + $0x2c8] sm:$0xff]
          %v4171 = vld [vmem:[#allocation3 + $0x2d0] sm:$0xff]
          %v4172 = vld [vmem:[#allocation3 + $0x2d8] sm:$0xff]
          %v4173 = vld [vmem:[#allocation3 + $0x2e0] sm:$0xff]
          %v4174 = vld [vmem:[#allocation3 + $0x2e8] sm:$0xff]
          %v4175 = vld [vmem:[#allocation3 + $0x2f0] sm:$0xff]
          %v4176 = vld [vmem:[#allocation3 + $0x2f8] sm:$0xff]
          %v4177 = vld [vmem:[#allocation3 + $0x300] sm:$0xff]
          %v4178 = vld [vmem:[#allocation3 + $0x308] sm:$0xff]
          %v4179 = vld [vmem:[#allocation3 + $0x310] sm:$0xff]
          %v4180 = vld [vmem:[#allocation3 + $0x318] sm:$0xff]
          %v4181 = vld [vmem:[#allocation3 + $0x320] sm:$0xff]
          %v4182 = vld [vmem:[#allocation3 + $0x328] sm:$0xff]
          %v4183 = vld [vmem:[#allocation3 + $0x330] sm:$0xff]
          %v4184 = vld [vmem:[#allocation3 + $0x338] sm:$0xff]
          %v4185 = vld [vmem:[#allocation3 + $0x340] sm:$0xff]
          %v4186 = vld [vmem:[#allocation3 + $0x348] sm:$0xff]
          %v4187 = vld [vmem:[#allocation3 + $0x350] sm:$0xff]
          %v4188 = vld [vmem:[#allocation3 + $0x358] sm:$0xff]
          %v4189 = vld [vmem:[#allocation3 + $0x360] sm:$0xff]
          %v4190 = vld [vmem:[#allocation3 + $0x368] sm:$0xff]
          %v4191 = vld [vmem:[#allocation3 + $0x370] sm:$0xff]
          %v4192 = vld [vmem:[#allocation3 + $0x378] sm:$0xff]
          %v4193 = vld [vmem:[#allocation3 + $0x380] sm:$0xff]
          %v4194 = vld [vmem:[#allocation3 + $0x388] sm:$0xff]
          %v4195 = vld [vmem:[#allocation3 + $0x390] sm:$0xff]
          %v4196 = vld [vmem:[#allocation3 + $0x398] sm:$0xff]
          %v4197 = vld [vmem:[#allocation3 + $0x3a0] sm:$0xff]
          %v4198 = vld [vmem:[#allocation3 + $0x3a8] sm:$0xff]
          %v4199 = vld [vmem:[#allocation3 + $0x3b0] sm:$0xff]
          %v4200 = vld [vmem:[#allocation3 + $0x3b8] sm:$0xff]
          %v4201 = vld [vmem:[#allocation3 + $0x3c0] sm:$0xff]
          %v4202 = vld [vmem:[#allocation3 + $0x3c8] sm:$0xff]
          %v4203 = vld [vmem:[#allocation3 + $0x3d0] sm:$0xff]
          %v4204 = vld [vmem:[#allocation3 + $0x3d8] sm:$0xff]
          %v4205 = vld [vmem:[#allocation3 + $0x3e0] sm:$0xff]
          %v4206 = vld [vmem:[#allocation3 + $0x3e8] sm:$0xff]
          %v4207 = vld [vmem:[#allocation3 + $0x3f0] sm:$0xff]
          %v4208 = vld [vmem:[#allocation3 + $0x3f8] sm:$0xff]
          %v4209 = vld [vmem:[#allocation3 + $0x400] sm:$0xff]
          %v4210 = vld [vmem:[#allocation3 + $0x408] sm:$0xff]
          %v4211 = vld [vmem:[#allocation3 + $0x410] sm:$0xff]
          %v4212 = vld [vmem:[#allocation3 + $0x418] sm:$0xff]
          %v4213 = vld [vmem:[#allocation3 + $0x420] sm:$0xff]
          %v4214 = vld [vmem:[#allocation3 + $0x428] sm:$0xff]
          %v4215 = vld [vmem:[#allocation3 + $0x430] sm:$0xff]
          %v4216 = vld [vmem:[#allocation3 + $0x438] sm:$0xff]
          %v4217 = vld [vmem:[#allocation3 + $0x440] sm:$0xff]
          %v4218 = vld [vmem:[#allocation3 + $0x448] sm:$0xff]
          %v4219 = vld [vmem:[#allocation3 + $0x450] sm:$0xff]
          %v4220 = vld [vmem:[#allocation3 + $0x458] sm:$0xff]
          %v4221 = vld [vmem:[#allocation3 + $0x460] sm:$0xff]
          %v4222 = vld [vmem:[#allocation3 + $0x468] sm:$0xff]
          %v4223 = vld [vmem:[#allocation3 + $0x470] sm:$0xff]
          %v4224 = vld [vmem:[#allocation3 + $0x478] sm:$0xff]
          %v4225 = vld [vmem:[#allocation3 + $0x480] sm:$0xff]
          %v4226 = vld [vmem:[#allocation3 + $0x488] sm:$0xff]
          %v4227 = vld [vmem:[#allocation3 + $0x490] sm:$0xff]
          %v4228 = vld [vmem:[#allocation3 + $0x498] sm:$0xff]
          %v4229 = vld [vmem:[#allocation3 + $0x4a0] sm:$0xff]
          %v4230 = vld [vmem:[#allocation3 + $0x4a8] sm:$0xff]
          %v4231 = vld [vmem:[#allocation3 + $0x4b0] sm:$0xff]
          %v4232 = vld [vmem:[#allocation3 + $0x4b8] sm:$0xff]
          %v4233 = vld [vmem:[#allocation3 + $0x4c0] sm:$0xff]
          %v4234 = vld [vmem:[#allocation3 + $0x4c8] sm:$0xff]
          %v4235 = vld [vmem:[#allocation3 + $0x4d0] sm:$0xff]
          %v4236 = vld [vmem:[#allocation3 + $0x4d8] sm:$0xff]
          %v4237 = vld [vmem:[#allocation3 + $0x4e0] sm:$0xff]
          %v4238 = vld [vmem:[#allocation3 + $0x4e8] sm:$0xff]
          %v4239 = vld [vmem:[#allocation3 + $0x4f0] sm:$0xff]
          %v4240 = vld [vmem:[#allocation3 + $0x4f8] sm:$0xff]
          %v4241 = vmul.f32 %v3921, %v4081
          %v4242 = vmul.f32 %v3922, %v4082
          %v4243 = vmul.f32 %v3923, %v4083
          %v4244 = vmul.f32 %v3924, %v4084
          %v4245 = vmul.f32 %v3925, %v4085
          %v4246 = vmul.f32 %v3926, %v4086
          %v4247 = vmul.f32 %v3927, %v4087
          %v4248 = vmul.f32 %v3928, %v4088
          %v4249 = vmul.f32 %v3929, %v4089
          %v4250 = vmul.f32 %v3930, %v4090
          %v4251 = vmul.f32 %v3931, %v4091
          %v4252 = vmul.f32 %v3932, %v4092
          %v4253 = vmul.f32 %v3933, %v4093
          %v4254 = vmul.f32 %v3934, %v4094
          %v4255 = vmul.f32 %v3935, %v4095
          %v4256 = vmul.f32 %v3936, %v4096
          %v4257 = vmul.f32 %v3937, %v4097
          %v4258 = vmul.f32 %v3938, %v4098
          %v4259 = vmul.f32 %v3939, %v4099
          %v4260 = vmul.f32 %v3940, %v4100
          %v4261 = vmul.f32 %v3941, %v4101
          %v4262 = vmul.f32 %v3942, %v4102
          %v4263 = vmul.f32 %v3943, %v4103
          %v4264 = vmul.f32 %v3944, %v4104
          %v4265 = vmul.f32 %v3945, %v4105
          %v4266 = vmul.f32 %v3946, %v4106
          %v4267 = vmul.f32 %v3947, %v4107
          %v4268 = vmul.f32 %v3948, %v4108
          %v4269 = vmul.f32 %v3949, %v4109
          %v4270 = vmul.f32 %v3950, %v4110
          %v4271 = vmul.f32 %v3951, %v4111
          %v4272 = vmul.f32 %v3952, %v4112
          %v4273 = vmul.f32 %v3953, %v4113
          %v4274 = vmul.f32 %v3954, %v4114
          %v4275 = vmul.f32 %v3955, %v4115
          %v4276 = vmul.f32 %v3956, %v4116
          %v4277 = vmul.f32 %v3957, %v4117
          %v4278 = vmul.f32 %v3958, %v4118
          %v4279 = vmul.f32 %v3959, %v4119
          %v4280 = vmul.f32 %v3960, %v4120
          %v4281 = vmul.f32 %v3961, %v4121
          %v4282 = vmul.f32 %v3962, %v4122
          %v4283 = vmul.f32 %v3963, %v4123
          %v4284 = vmul.f32 %v3964, %v4124
          %v4285 = vmul.f32 %v3965, %v4125
          %v4286 = vmul.f32 %v3966, %v4126
          %v4287 = vmul.f32 %v3967, %v4127
          %v4288 = vmul.f32 %v3968, %v4128
          %v4289 = vmul.f32 %v3969, %v4129
          %v4290 = vmul.f32 %v3970, %v4130
          %v4291 = vmul.f32 %v3971, %v4131
          %v4292 = vmul.f32 %v3972, %v4132
          %v4293 = vmul.f32 %v3973, %v4133
          %v4294 = vmul.f32 %v3974, %v4134
          %v4295 = vmul.f32 %v3975, %v4135
          %v4296 = vmul.f32 %v3976, %v4136
          %v4297 = vmul.f32 %v3977, %v4137
          %v4298 = vmul.f32 %v3978, %v4138
          %v4299 = vmul.f32 %v3979, %v4139
          %v4300 = vmul.f32 %v3980, %v4140
          %v4301 = vmul.f32 %v3981, %v4141
          %v4302 = vmul.f32 %v3982, %v4142
          %v4303 = vmul.f32 %v3983, %v4143
          %v4304 = vmul.f32 %v3984, %v4144
          %v4305 = vmul.f32 %v3985, %v4145
          %v4306 = vmul.f32 %v3986, %v4146
          %v4307 = vmul.f32 %v3987, %v4147
          %v4308 = vmul.f32 %v3988, %v4148
          %v4309 = vmul.f32 %v3989, %v4149
          %v4310 = vmul.f32 %v3990, %v4150
          %v4311 = vmul.f32 %v3991, %v4151
          %v4312 = vmul.f32 %v3992, %v4152
          %v4313 = vmul.f32 %v3993, %v4153
          %v4314 = vmul.f32 %v3994, %v4154
          %v4315 = vmul.f32 %v3995, %v4155
          %v4316 = vmul.f32 %v3996, %v4156
          %v4317 = vmul.f32 %v3997, %v4157
          %v4318 = vmul.f32 %v3998, %v4158
          %v4319 = vmul.f32 %v3999, %v4159
          %v4320 = vmul.f32 %v4000, %v4160
          %v4321 = vmul.f32 %v4001, %v4161
          %v4322 = vmul.f32 %v4002, %v4162
          %v4323 = vmul.f32 %v4003, %v4163
          %v4324 = vmul.f32 %v4004, %v4164
          %v4325 = vmul.f32 %v4005, %v4165
          %v4326 = vmul.f32 %v4006, %v4166
          %v4327 = vmul.f32 %v4007, %v4167
          %v4328 = vmul.f32 %v4008, %v4168
          %v4329 = vmul.f32 %v4009, %v4169
          %v4330 = vmul.f32 %v4010, %v4170
          %v4331 = vmul.f32 %v4011, %v4171
          %v4332 = vmul.f32 %v4012, %v4172
          %v4333 = vmul.f32 %v4013, %v4173
          %v4334 = vmul.f32 %v4014, %v4174
          %v4335 = vmul.f32 %v4015, %v4175
          %v4336 = vmul.f32 %v4016, %v4176
          %v4337 = vmul.f32 %v4017, %v4177
          %v4338 = vmul.f32 %v4018, %v4178
          %v4339 = vmul.f32 %v4019, %v4179
          %v4340 = vmul.f32 %v4020, %v4180
          %v4341 = vmul.f32 %v4021, %v4181
          %v4342 = vmul.f32 %v4022, %v4182
          %v4343 = vmul.f32 %v4023, %v4183
          %v4344 = vmul.f32 %v4024, %v4184
          %v4345 = vmul.f32 %v4025, %v4185
          %v4346 = vmul.f32 %v4026, %v4186
          %v4347 = vmul.f32 %v4027, %v4187
          %v4348 = vmul.f32 %v4028, %v4188
          %v4349 = vmul.f32 %v4029, %v4189
          %v4350 = vmul.f32 %v4030, %v4190
          %v4351 = vmul.f32 %v4031, %v4191
          %v4352 = vmul.f32 %v4032, %v4192
          %v4353 = vmul.f32 %v4033, %v4193
          %v4354 = vmul.f32 %v4034, %v4194
          %v4355 = vmul.f32 %v4035, %v4195
          %v4356 = vmul.f32 %v4036, %v4196
          %v4357 = vmul.f32 %v4037, %v4197
          %v4358 = vmul.f32 %v4038, %v4198
          %v4359 = vmul.f32 %v4039, %v4199
          %v4360 = vmul.f32 %v4040, %v4200
          %v4361 = vmul.f32 %v4041, %v4201
          %v4362 = vmul.f32 %v4042, %v4202
          %v4363 = vmul.f32 %v4043, %v4203
          %v4364 = vmul.f32 %v4044, %v4204
          %v4365 = vmul.f32 %v4045, %v4205
          %v4366 = vmul.f32 %v4046, %v4206
          %v4367 = vmul.f32 %v4047, %v4207
          %v4368 = vmul.f32 %v4048, %v4208
          %v4369 = vmul.f32 %v4049, %v4209
          %v4370 = vmul.f32 %v4050, %v4210
          %v4371 = vmul.f32 %v4051, %v4211
          %v4372 = vmul.f32 %v4052, %v4212
          %v4373 = vmul.f32 %v4053, %v4213
          %v4374 = vmul.f32 %v4054, %v4214
          %v4375 = vmul.f32 %v4055, %v4215
          %v4376 = vmul.f32 %v4056, %v4216
          %v4377 = vmul.f32 %v4057, %v4217
          %v4378 = vmul.f32 %v4058, %v4218
          %v4379 = vmul.f32 %v4059, %v4219
          %v4380 = vmul.f32 %v4060, %v4220
          %v4381 = vmul.f32 %v4061, %v4221
          %v4382 = vmul.f32 %v4062, %v4222
          %v4383 = vmul.f32 %v4063, %v4223
          %v4384 = vmul.f32 %v4064, %v4224
          %v4385 = vmul.f32 %v4065, %v4225
          %v4386 = vmul.f32 %v4066, %v4226
          %v4387 = vmul.f32 %v4067, %v4227
          %v4388 = vmul.f32 %v4068, %v4228
          %v4389 = vmul.f32 %v4069, %v4229
          %v4390 = vmul.f32 %v4070, %v4230
          %v4391 = vmul.f32 %v4071, %v4231
          %v4392 = vmul.f32 %v4072, %v4232
          %v4393 = vmul.f32 %v4073, %v4233
          %v4394 = vmul.f32 %v4074, %v4234
          %v4395 = vmul.f32 %v4075, %v4235
          %v4396 = vmul.f32 %v4076, %v4236
          %v4397 = vmul.f32 %v4077, %v4237
          %v4398 = vmul.f32 %v4078, %v4238
          %v4399 = vmul.f32 %v4079, %v4239
          %v4400 = vmul.f32 %v4080, %v4240
          %4401 = vst [vmem:[%s269] sm:$0xff] %v4241
          %4402 = vst [vmem:[%s269 + $0x8] sm:$0xff] %v4242
          %4403 = vst [vmem:[%s269 + $0x10] sm:$0xff] %v4243
          %4404 = vst [vmem:[%s269 + $0x18] sm:$0xff] %v4244
          %4405 = vst [vmem:[%s269 + $0x20] sm:$0xff] %v4245
          %4406 = vst [vmem:[%s269 + $0x28] sm:$0xff] %v4246
          %4407 = vst [vmem:[%s269 + $0x30] sm:$0xff] %v4247
          %4408 = vst [vmem:[%s269 + $0x38] sm:$0xff] %v4248
          %4409 = vst [vmem:[%s269 + $0x40] sm:$0xff] %v4249
          %4410 = vst [vmem:[%s269 + $0x48] sm:$0xff] %v4250
          %4411 = vst [vmem:[%s269 + $0x50] sm:$0xff] %v4251
          %4412 = vst [vmem:[%s269 + $0x58] sm:$0xff] %v4252
          %4413 = vst [vmem:[%s269 + $0x60] sm:$0xff] %v4253
          %4414 = vst [vmem:[%s269 + $0x68] sm:$0xff] %v4254
          %4415 = vst [vmem:[%s269 + $0x70] sm:$0xff] %v4255
          %4416 = vst [vmem:[%s269 + $0x78] sm:$0xff] %v4256
          %4417 = vst [vmem:[%s269 + $0x80] sm:$0xff] %v4257
          %4418 = vst [vmem:[%s269 + $0x88] sm:$0xff] %v4258
          %4419 = vst [vmem:[%s269 + $0x90] sm:$0xff] %v4259
          %4420 = vst [vmem:[%s269 + $0x98] sm:$0xff] %v4260
          %4421 = vst [vmem:[%s269 + $0xa0] sm:$0xff] %v4261
          %4422 = vst [vmem:[%s269 + $0xa8] sm:$0xff] %v4262
          %4423 = vst [vmem:[%s269 + $0xb0] sm:$0xff] %v4263
          %4424 = vst [vmem:[%s269 + $0xb8] sm:$0xff] %v4264
          %4425 = vst [vmem:[%s269 + $0xc0] sm:$0xff] %v4265
          %4426 = vst [vmem:[%s269 + $0xc8] sm:$0xff] %v4266
          %4427 = vst [vmem:[%s269 + $0xd0] sm:$0xff] %v4267
          %4428 = vst [vmem:[%s269 + $0xd8] sm:$0xff] %v4268
          %4429 = vst [vmem:[%s269 + $0xe0] sm:$0xff] %v4269
          %4430 = vst [vmem:[%s269 + $0xe8] sm:$0xff] %v4270
          %4431 = vst [vmem:[%s269 + $0xf0] sm:$0xff] %v4271
          %4432 = vst [vmem:[%s269 + $0xf8] sm:$0xff] %v4272
          %4433 = vst [vmem:[%s269 + $0x100] sm:$0xff] %v4273
          %4434 = vst [vmem:[%s269 + $0x108] sm:$0xff] %v4274
          %4435 = vst [vmem:[%s269 + $0x110] sm:$0xff] %v4275
          %4436 = vst [vmem:[%s269 + $0x118] sm:$0xff] %v4276
          %4437 = vst [vmem:[%s269 + $0x120] sm:$0xff] %v4277
          %4438 = vst [vmem:[%s269 + $0x128] sm:$0xff] %v4278
          %4439 = vst [vmem:[%s269 + $0x130] sm:$0xff] %v4279
          %4440 = vst [vmem:[%s269 + $0x138] sm:$0xff] %v4280
          %4441 = vst [vmem:[%s269 + $0x140] sm:$0xff] %v4281
          %4442 = vst [vmem:[%s269 + $0x148] sm:$0xff] %v4282
          %4443 = vst [vmem:[%s269 + $0x150] sm:$0xff] %v4283
          %4444 = vst [vmem:[%s269 + $0x158] sm:$0xff] %v4284
          %4445 = vst [vmem:[%s269 + $0x160] sm:$0xff] %v4285
          %4446 = vst [vmem:[%s269 + $0x168] sm:$0xff] %v4286
          %4447 = vst [vmem:[%s269 + $0x170] sm:$0xff] %v4287
          %4448 = vst [vmem:[%s269 + $0x178] sm:$0xff] %v4288
          %4449 = vst [vmem:[%s269 + $0x180] sm:$0xff] %v4289
          %4450 = vst [vmem:[%s269 + $0x188] sm:$0xff] %v4290
          %4451 = vst [vmem:[%s269 + $0x190] sm:$0xff] %v4291
          %4452 = vst [vmem:[%s269 + $0x198] sm:$0xff] %v4292
          %4453 = vst [vmem:[%s269 + $0x1a0] sm:$0xff] %v4293
          %4454 = vst [vmem:[%s269 + $0x1a8] sm:$0xff] %v4294
          %4455 = vst [vmem:[%s269 + $0x1b0] sm:$0xff] %v4295
          %4456 = vst [vmem:[%s269 + $0x1b8] sm:$0xff] %v4296
          %4457 = vst [vmem:[%s269 + $0x1c0] sm:$0xff] %v4297
          %4458 = vst [vmem:[%s269 + $0x1c8] sm:$0xff] %v4298
          %4459 = vst [vmem:[%s269 + $0x1d0] sm:$0xff] %v4299
          %4460 = vst [vmem:[%s269 + $0x1d8] sm:$0xff] %v4300
          %4461 = vst [vmem:[%s269 + $0x1e0] sm:$0xff] %v4301
          %4462 = vst [vmem:[%s269 + $0x1e8] sm:$0xff] %v4302
          %4463 = vst [vmem:[%s269 + $0x1f0] sm:$0xff] %v4303
          %4464 = vst [vmem:[%s269 + $0x1f8] sm:$0xff] %v4304
          %4465 = vst [vmem:[%s269 + $0x200] sm:$0xff] %v4305
          %4466 = vst [vmem:[%s269 + $0x208] sm:$0xff] %v4306
          %4467 = vst [vmem:[%s269 + $0x210] sm:$0xff] %v4307
          %4468 = vst [vmem:[%s269 + $0x218] sm:$0xff] %v4308
          %4469 = vst [vmem:[%s269 + $0x220] sm:$0xff] %v4309
          %4470 = vst [vmem:[%s269 + $0x228] sm:$0xff] %v4310
          %4471 = vst [vmem:[%s269 + $0x230] sm:$0xff] %v4311
          %4472 = vst [vmem:[%s269 + $0x238] sm:$0xff] %v4312
          %4473 = vst [vmem:[%s269 + $0x240] sm:$0xff] %v4313
          %4474 = vst [vmem:[%s269 + $0x248] sm:$0xff] %v4314
          %4475 = vst [vmem:[%s269 + $0x250] sm:$0xff] %v4315
          %4476 = vst [vmem:[%s269 + $0x258] sm:$0xff] %v4316
          %4477 = vst [vmem:[%s269 + $0x260] sm:$0xff] %v4317
          %4478 = vst [vmem:[%s269 + $0x268] sm:$0xff] %v4318
          %4479 = vst [vmem:[%s269 + $0x270] sm:$0xff] %v4319
          %4480 = vst [vmem:[%s269 + $0x278] sm:$0xff] %v4320
          %4481 = vst [vmem:[%s269 + $0x280] sm:$0xff] %v4321
          %4482 = vst [vmem:[%s269 + $0x288] sm:$0xff] %v4322
          %4483 = vst [vmem:[%s269 + $0x290] sm:$0xff] %v4323
          %4484 = vst [vmem:[%s269 + $0x298] sm:$0xff] %v4324
          %4485 = vst [vmem:[%s269 + $0x2a0] sm:$0xff] %v4325
          %4486 = vst [vmem:[%s269 + $0x2a8] sm:$0xff] %v4326
          %4487 = vst [vmem:[%s269 + $0x2b0] sm:$0xff] %v4327
          %4488 = vst [vmem:[%s269 + $0x2b8] sm:$0xff] %v4328
          %4489 = vst [vmem:[%s269 + $0x2c0] sm:$0xff] %v4329
          %4490 = vst [vmem:[%s269 + $0x2c8] sm:$0xff] %v4330
          %4491 = vst [vmem:[%s269 + $0x2d0] sm:$0xff] %v4331
          %4492 = vst [vmem:[%s269 + $0x2d8] sm:$0xff] %v4332
          %4493 = vst [vmem:[%s269 + $0x2e0] sm:$0xff] %v4333
          %4494 = vst [vmem:[%s269 + $0x2e8] sm:$0xff] %v4334
          %4495 = vst [vmem:[%s269 + $0x2f0] sm:$0xff] %v4335
          %4496 = vst [vmem:[%s269 + $0x2f8] sm:$0xff] %v4336
          %4497 = vst [vmem:[%s269 + $0x300] sm:$0xff] %v4337
          %4498 = vst [vmem:[%s269 + $0x308] sm:$0xff] %v4338
          %4499 = vst [vmem:[%s269 + $0x310] sm:$0xff] %v4339
          %4500 = vst [vmem:[%s269 + $0x318] sm:$0xff] %v4340
          %4501 = vst [vmem:[%s269 + $0x320] sm:$0xff] %v4341
          %4502 = vst [vmem:[%s269 + $0x328] sm:$0xff] %v4342
          %4503 = vst [vmem:[%s269 + $0x330] sm:$0xff] %v4343
          %4504 = vst [vmem:[%s269 + $0x338] sm:$0xff] %v4344
          %4505 = vst [vmem:[%s269 + $0x340] sm:$0xff] %v4345
          %4506 = vst [vmem:[%s269 + $0x348] sm:$0xff] %v4346
          %4507 = vst [vmem:[%s269 + $0x350] sm:$0xff] %v4347
          %4508 = vst [vmem:[%s269 + $0x358] sm:$0xff] %v4348
          %4509 = vst [vmem:[%s269 + $0x360] sm:$0xff] %v4349
          %4510 = vst [vmem:[%s269 + $0x368] sm:$0xff] %v4350
          %4511 = vst [vmem:[%s269 + $0x370] sm:$0xff] %v4351
          %4512 = vst [vmem:[%s269 + $0x378] sm:$0xff] %v4352
          %4513 = vst [vmem:[%s269 + $0x380] sm:$0xff] %v4353
          %4514 = vst [vmem:[%s269 + $0x388] sm:$0xff] %v4354
          %4515 = vst [vmem:[%s269 + $0x390] sm:$0xff] %v4355
          %4516 = vst [vmem:[%s269 + $0x398] sm:$0xff] %v4356
          %4517 = vst [vmem:[%s269 + $0x3a0] sm:$0xff] %v4357
          %4518 = vst [vmem:[%s269 + $0x3a8] sm:$0xff] %v4358
          %4519 = vst [vmem:[%s269 + $0x3b0] sm:$0xff] %v4359
          %4520 = vst [vmem:[%s269 + $0x3b8] sm:$0xff] %v4360
          %4521 = vst [vmem:[%s269 + $0x3c0] sm:$0xff] %v4361
          %4522 = vst [vmem:[%s269 + $0x3c8] sm:$0xff] %v4362
          %4523 = vst [vmem:[%s269 + $0x3d0] sm:$0xff] %v4363
          %4524 = vst [vmem:[%s269 + $0x3d8] sm:$0xff] %v4364
          %4525 = vst [vmem:[%s269 + $0x3e0] sm:$0xff] %v4365
          %4526 = vst [vmem:[%s269 + $0x3e8] sm:$0xff] %v4366
          %4527 = vst [vmem:[%s269 + $0x3f0] sm:$0xff] %v4367
          %4528 = vst [vmem:[%s269 + $0x3f8] sm:$0xff] %v4368
          %4529 = vst [vmem:[%s269 + $0x400] sm:$0xff] %v4369
          %4530 = vst [vmem:[%s269 + $0x408] sm:$0xff] %v4370
          %4531 = vst [vmem:[%s269 + $0x410] sm:$0xff] %v4371
          %4532 = vst [vmem:[%s269 + $0x418] sm:$0xff] %v4372
          %4533 = vst [vmem:[%s269 + $0x420] sm:$0xff] %v4373
          %4534 = vst [vmem:[%s269 + $0x428] sm:$0xff] %v4374
          %4535 = vst [vmem:[%s269 + $0x430] sm:$0xff] %v4375
          %4536 = vst [vmem:[%s269 + $0x438] sm:$0xff] %v4376
          %4537 = vst [vmem:[%s269 + $0x440] sm:$0xff] %v4377
          %4538 = vst [vmem:[%s269 + $0x448] sm:$0xff] %v4378
          %4539 = vst [vmem:[%s269 + $0x450] sm:$0xff] %v4379
          %4540 = vst [vmem:[%s269 + $0x458] sm:$0xff] %v4380
          %4541 = vst [vmem:[%s269 + $0x460] sm:$0xff] %v4381
          %4542 = vst [vmem:[%s269 + $0x468] sm:$0xff] %v4382
          %4543 = vst [vmem:[%s269 + $0x470] sm:$0xff] %v4383
          %4544 = vst [vmem:[%s269 + $0x478] sm:$0xff] %v4384
          %4545 = vst [vmem:[%s269 + $0x480] sm:$0xff] %v4385
          %4546 = vst [vmem:[%s269 + $0x488] sm:$0xff] %v4386
          %4547 = vst [vmem:[%s269 + $0x490] sm:$0xff] %v4387
          %4548 = vst [vmem:[%s269 + $0x498] sm:$0xff] %v4388
          %4549 = vst [vmem:[%s269 + $0x4a0] sm:$0xff] %v4389
          %4550 = vst [vmem:[%s269 + $0x4a8] sm:$0xff] %v4390
          %4551 = vst [vmem:[%s269 + $0x4b0] sm:$0xff] %v4391
          %4552 = vst [vmem:[%s269 + $0x4b8] sm:$0xff] %v4392
          %4553 = vst [vmem:[%s269 + $0x4c0] sm:$0xff] %v4393
          %4554 = vst [vmem:[%s269 + $0x4c8] sm:$0xff] %v4394
          %4555 = vst [vmem:[%s269 + $0x4d0] sm:$0xff] %v4395
          %4556 = vst [vmem:[%s269 + $0x4d8] sm:$0xff] %v4396
          %4557 = vst [vmem:[%s269 + $0x4e0] sm:$0xff] %v4397
          %4558 = vst [vmem:[%s269 + $0x4e8] sm:$0xff] %v4398
          %4559 = vst [vmem:[%s269 + $0x4f0] sm:$0xff] %v4399
          %4560 = vst [vmem:[%s269 + $0x4f8] sm:$0xff] %v4400
        $region52: #{tpu_custom_call.1} parent=31 // pred_fallthru
          _
        %s4561 = sand.u32 %s134, 1
        %s4562 = scalar_lea.sflag [#allocation6], %s4561
        %s4563 = sand.u32 %s134, 1
        %s4564 = smul.addr %s4563, 1280
        %s4565 = scalar_lea.vmem [#allocation10], %s4564
        // Predicated region
        $region53: #{tpu_custom_call.1} parent=31 // pred_check
          %p4566 = pneg %p144
        $region54: #{tpu_custom_call.1} parent=31 // pred_check_branch
          %4568 = sbr.rel (%p4566) target = $region56
        $region55: #{tpu_custom_call.1} parent=31 // pred_region
          %s4569 = smul.u32 40, %s26
          %s4570 = smul.u32 4, %s27
          %s4572 = ssub.s32 20480, 20480
          %4573 = vsyncadd %s4562, %s4572
          %s4574 = smul.addr %s4569, 4
          %s4575 = sadd.s32 %s4570, %s4574
          %s4576 = smul.addr %s4575, 128
          %s4577 = scalar_lea.hbm %s3, %s4576
          %s4578 = sshll.u32 %s4565, 4
          %s4579 = int_to_ptr.vmem [resolvable:$true] %s4578
          %4584 = dma.vmem_to_hbm [thread:$0]  %s4579, 20480, %s4577, %s4562, 512, 512, 32
        $region56: #{tpu_custom_call.1} parent=31 // pred_fallthru
          _
      $region32: #{tpu_custom_call.1} parent=5 // pred_fallthru
        _
      %p4585 = scmp.le.s32.totalorder 2, %s16
      // Predicated region
      $region57: #{tpu_custom_call.1} parent=5 // pred_check
        %p4586 = pneg %p4585
      $region58: #{tpu_custom_call.1} parent=5 // pred_check_branch
        %4588 = sbr.rel (%p4586) target = $region60
      $region59: #{tpu_custom_call.1} parent=5 // pred_region
        %s4589 = ssub.s32 %s16, 2
        // Predicated region
        $region61: #{tpu_custom_call.1} parent=59 // pred_check
          %p4590 = pneg %p150
        $region62: #{tpu_custom_call.1} parent=59 // pred_check_branch
          %4592 = sbr.rel (%p4590) target = $region64
        $region63: #{tpu_custom_call.1} parent=59 // pred_region
          %s4593 = sand.u32 %s135, 1
          %s4594 = scalar_lea.sflag [#allocation6], %s4593
          %s4595 = sand.u32 %s135, 1
          %s4596 = smul.addr %s4595, 1280
          %s4597 = scalar_lea.vmem [#allocation10], %s4596
          %4598 = dma.done %s4594, 20480
        $region64: #{tpu_custom_call.1} parent=59 // pred_fallthru
          _
      $region60: #{tpu_custom_call.1} parent=5 // pred_fallthru
        _
    $region6: #{tpu_custom_call.1} parent=1 // loop_footer
      %s20 = sadd.s32 1, %s16
    $region7: #{tpu_custom_call.1} parent=1 // loop_footer_branch
      %15 = sbr.rel target = $region3
    $region8: #{tpu_custom_call.1} parent=1 // loop_exit
      _
    %4599 = vsyncpa [#allocation5], 1
    %s4600 = scalar_lea.sflag [#allocation5], 1
    %4601 = vsyncpa %s4600, 1
    %4602 = vsyncpa [#allocation8], 1
    %4603 = vsyncpa [#allocation6], 1
    %s4604 = scalar_lea.sflag [#allocation6], 1
    %4605 = vsyncpa %s4604, 1

</llo_original>
